<compile_context>
chip_gen: v5e
topology: v5e:2x2
jax: 0.10.0
libtpu: 0.0.40
codegen_flags: <defaults>
</compile_context>

<pallas_src>
import jax
import jax.numpy as jnp
from jax import lax
from jax.experimental import pallas as pl
from jax.experimental.pallas import tpu as pltpu

IN_FEATURES = 25088          # 25088 = 196 * 128 -> lane-aligned
HIDDEN = 32                  # Last_FC_num
NUM_CLASSES = 8              # class_num


def classifier2_kernel(x_ref, w1t_ref, b1_ref, w2_ref, b2_ref, o_ref):
    # fc1: (B, K) . (H, K) contracted on K -> (B, H), f32 MXU accumulation.
    h = lax.dot_general(
        x_ref[...], w1t_ref[...],
        dimension_numbers=(((1,), (1,)), ((), ())),
        preferred_element_type=jnp.float32,
    )
    h = jnp.maximum(h + b1_ref[...], 0.0)                       # bias + ReLU
    # fc2: (B, H) @ (H, C) -> (B, C), tiny f32 matmul.
    y = jnp.dot(h, w2_ref[...], preferred_element_type=jnp.float32)
    o_ref[...] = (y + b2_ref[...]).astype(o_ref.dtype)


def classifier2_forward(x, w1, b1, w2, b2):
    """x: (B, 25088) f32; w1: (25088, 32); b1: (32,); w2: (32, 8); b2: (8,)."""
    B = x.shape[0]

    # Layout + dtype fixes done once in the wrapper (outside the kernel):
    #   - transpose w1 to (H, K): lane-dense, no padding of a (K, 32) block
    #   - bf16 cast for the bandwidth-bound HBM->VMEM path
    x_bf16 = x.astype(jnp.bfloat16)
    w1t_bf16 = jnp.transpose(w1).astype(jnp.bfloat16)            # (HIDDEN, K)
    b1_2d = b1.reshape(1, HIDDEN).astype(jnp.float32)
    b2_2d = b2.reshape(1, NUM_CLASSES).astype(jnp.float32)
    w2_f32 = w2.astype(jnp.float32)

    # Total VMEM: x ~0.1 MB + w1 ~1.6 MB (bf16) + tiny tensors, double-buffered
    # -> well under the default scoped-VMEM limit on v5e/v6e/v7x.
    # TODO(synk): with a realistic batch, add a leading 'parallel' batch grid
    # axis so v7x's second TensorCore shares the work (moot at B=2).
    return pl.pallas_call(
        classifier2_kernel,
        out_shape=jax.ShapeDtypeStruct((B, NUM_CLASSES), jnp.float32),
        grid=(1,),
        in_specs=[
            pl.BlockSpec((B, IN_FEATURES), lambda i: (0, 0)),          # x (bf16)
            pl.BlockSpec((HIDDEN, IN_FEATURES), lambda i: (0, 0)),     # w1^T (bf16)
            pl.BlockSpec((1, HIDDEN), lambda i: (0, 0)),               # b1
            pl.BlockSpec((HIDDEN, NUM_CLASSES), lambda i: (0, 0)),     # w2
            pl.BlockSpec((1, NUM_CLASSES), lambda i: (0, 0)),          # b2
        ],
        out_specs=pl.BlockSpec((B, NUM_CLASSES), lambda i: (0, 0)),
        compiler_params=pltpu.CompilerParams(
            dimension_semantics=("arbitrary",),
        ),
    )(x_bf16, w1t_bf16, b1_2d, w2_f32, b2_2d)


def init_params(key):
    """Deterministic init mimicking nn.Linear's uniform(-1/sqrt(fan_in), +)."""
    k1, k2, k3, k4 = jax.random.split(key, 4)
    bound1 = 1.0 / jnp.sqrt(float(IN_FEATURES))
    bound2 = 1.0 / jnp.sqrt(float(HIDDEN))
    w1 = jax.random.uniform(k1, (IN_FEATURES, HIDDEN), jnp.float32, -bound1, bound1)
    b1 = jax.random.uniform(k2, (HIDDEN,), jnp.float32, -bound1, bound1)
    w2 = jax.random.uniform(k3, (HIDDEN, NUM_CLASSES), jnp.float32, -bound2, bound2)
    b2 = jax.random.uniform(k4, (NUM_CLASSES,), jnp.float32, -bound2, bound2)
    return w1, b1, w2, b2


if __name__ == "__main__":
    key = jax.random.PRNGKey(0)
    kx, kp = jax.random.split(key)

    batch = 2
    x = jax.random.normal(kx, (batch, IN_FEATURES), jnp.float32)
    w1, b1, w2, b2 = init_params(kp)

    out = classifier2_forward(x, w1, b1, w2, b2)
    out = jax.block_until_ready(out)
    assert out.shape == (batch, NUM_CLASSES)

    # Reference with the same bf16 input/weight rounding the kernel sees
    # (f32 accumulation in both) -> tight tolerance.
    xb = x.astype(jnp.bfloat16).astype(jnp.float32)
    w1b = w1.astype(jnp.bfloat16).astype(jnp.float32)
    ref_bf16 = jnp.maximum(xb @ w1b + b1, 0.0) @ w2 + b2
    assert jnp.allclose(out, ref_bf16, atol=2e-3, rtol=2e-3), "mismatch vs bf16 reference"

    # Loose sanity check against the pure-f32 PyTorch-equivalent forward.
    ref_f32 = jnp.maximum(x @ w1 + b1, 0.0) @ w2 + b2
    assert jnp.allclose(out, ref_f32, atol=5e-2, rtol=5e-2), "mismatch vs f32 reference"

    print("KERNEL_OK")
</pallas_src>

<mosaic_0001>
module attributes {stable_mosaic.version = 11 : i64} {
  func.func @classifier2_kernel(%arg0: i32, %arg1: memref<2x25088xbf16, #tpu.memory_space<vmem>>, %arg2: memref<32x25088xbf16, #tpu.memory_space<vmem>>, %arg3: memref<1x32xf32, #tpu.memory_space<vmem>>, %arg4: memref<32x8xf32, #tpu.memory_space<vmem>>, %arg5: memref<1x8xf32, #tpu.memory_space<vmem>>, %arg6: memref<2x8xf32, #tpu.memory_space<vmem>>) attributes {dimension_semantics = [#tpu.dimension_semantics<arbitrary>], iteration_bounds = array<i64: 1>, scalar_prefetch = 0 : i64, scratch_operands = 0 : i64, tpu.core_type = #tpu.core_type<tc>, window_params = [{pipeline_mode = #tpu.pipeline_mode<synchronous>, transform_indices = @transform_0, window_bounds = array<i64: 2, 25088>}, {pipeline_mode = #tpu.pipeline_mode<synchronous>, transform_indices = @transform_1, window_bounds = array<i64: 32, 25088>}, {pipeline_mode = #tpu.pipeline_mode<synchronous>, transform_indices = @transform_2, window_bounds = array<i64: 1, 32>}, {pipeline_mode = #tpu.pipeline_mode<synchronous>, transform_indices = @transform_3, window_bounds = array<i64: 32, 8>}, {pipeline_mode = #tpu.pipeline_mode<synchronous>, transform_indices = @transform_4, window_bounds = array<i64: 1, 8>}, {pipeline_mode = #tpu.pipeline_mode<synchronous>, transform_indices = @transform_5, window_bounds = array<i64: 2, 8>}]} {
    %c0 = arith.constant 0 : index
    %c0_0 = arith.constant 0 : index
    %0 = vector.load %arg1[%c0, %c0_0] : memref<2x25088xbf16, #tpu.memory_space<vmem>>, vector<2x25088xbf16>
    %c0_1 = arith.constant 0 : index
    %c0_2 = arith.constant 0 : index
    %1 = vector.load %arg2[%c0_1, %c0_2] : memref<32x25088xbf16, #tpu.memory_space<vmem>>, vector<32x25088xbf16>
    %cst = arith.constant dense<0.000000e+00> : vector<2x32xf32>
    %2 = tpu.matmul %0, %1, %cst {dimension_numbers = #tpu.dot_dimension_numbers<[1], [1], [0], [0], [0, 0, 1, 0], [], []>} : vector<2x25088xbf16>, vector<32x25088xbf16>, vector<2x32xf32> -> vector<2x32xf32>
    %c0_3 = arith.constant 0 : index
    %c0_4 = arith.constant 0 : index
    %3 = vector.load %arg3[%c0_3, %c0_4] : memref<1x32xf32, #tpu.memory_space<vmem>>, vector<1x32xf32>
    %4 = vector.broadcast %3 : vector<1x32xf32> to vector<2x32xf32>
    %5 = arith.addf %2, %4 : vector<2x32xf32>
    %cst_5 = arith.constant 0.000000e+00 : f32
    %6 = vector.broadcast %cst_5 : f32 to vector<2x32xf32>
    %7 = arith.maximumf %5, %6 : vector<2x32xf32>
    %c0_6 = arith.constant 0 : index
    %c0_7 = arith.constant 0 : index
    %8 = vector.load %arg4[%c0_6, %c0_7] : memref<32x8xf32, #tpu.memory_space<vmem>>, vector<32x8xf32>
    %cst_8 = arith.constant dense<0.000000e+00> : vector<2x8xf32>
    %9 = tpu.matmul %7, %8, %cst_8 {dimension_numbers = #tpu.dot_dimension_numbers<[1], [0], [0], [1], [0, 0, 1, 1], [], []>} : vector<2x32xf32>, vector<32x8xf32>, vector<2x8xf32> -> vector<2x8xf32>
    %c0_9 = arith.constant 0 : index
    %c0_10 = arith.constant 0 : index
    %10 = vector.load %arg5[%c0_9, %c0_10] : memref<1x8xf32, #tpu.memory_space<vmem>>, vector<1x8xf32>
    %11 = vector.broadcast %10 : vector<1x8xf32> to vector<2x8xf32>
    %12 = arith.addf %9, %11 : vector<2x8xf32>
    %c0_11 = arith.constant 0 : index
    %c0_12 = arith.constant 0 : index
    %13 = vector.load %arg6[%c0_11, %c0_12] : memref<2x8xf32, #tpu.memory_space<vmem>>, vector<2x8xf32>
    tpu.vector_store %arg6[%c0_11, %c0_12], %12 {strides = array<i32>} : memref<2x8xf32, #tpu.memory_space<vmem>>, vector<2x8xf32>,
    return
  }
  func.func @transform_0(%arg0: i32) -> (i32, i32) {
    %c0_i32 = arith.constant 0 : i32
    %c0_i32_0 = arith.constant 0 : i32
    %c0_i32_1 = arith.constant 0 : i32
    return %c0_i32, %c0_i32_0 : i32, i32
  }
  func.func @transform_1(%arg0: i32) -> (i32, i32) {
    %c0_i32 = arith.constant 0 : i32
    %c0_i32_0 = arith.constant 0 : i32
    %c0_i32_1 = arith.constant 0 : i32
    return %c0_i32, %c0_i32_0 : i32, i32
  }
  func.func @transform_2(%arg0: i32) -> (i32, i32) {
    %c0_i32 = arith.constant 0 : i32
    %c0_i32_0 = arith.constant 0 : i32
    %c0_i32_1 = arith.constant 0 : i32
    return %c0_i32, %c0_i32_0 : i32, i32
  }
  func.func @transform_3(%arg0: i32) -> (i32, i32) {
    %c0_i32 = arith.constant 0 : i32
    %c0_i32_0 = arith.constant 0 : i32
    %c0_i32_1 = arith.constant 0 : i32
    return %c0_i32, %c0_i32_0 : i32, i32
  }
  func.func @transform_4(%arg0: i32) -> (i32, i32) {
    %c0_i32 = arith.constant 0 : i32
    %c0_i32_0 = arith.constant 0 : i32
    %c0_i32_1 = arith.constant 0 : i32
    return %c0_i32, %c0_i32_0 : i32, i32
  }
  func.func @transform_5(%arg0: i32) -> (i32, i32) {
    %c0_i32 = arith.constant 0 : i32
    %c0_i32_0 = arith.constant 0 : i32
    %c0_i32_1 = arith.constant 0 : i32
    return %c0_i32, %c0_i32_0 : i32, i32
  }
}

</mosaic_0001>

<llo_original>
// kernel: tpu_custom_call.1
$region0: #{tpu_custom_call.1}
  #allocation0 [shape = 'u32[]', space=smem, size = 0x4, offset = 0x4, fixed_abs, tag = 'smem constant byte address 0x4 - core index']
  #allocation1 [shape = 'u32[72,128]{1,0:T(1,128)}', space=vmem, size = 0x9000, scoped, tag = 'internal scratch']
  %s0 = inlined_call_operand.hbm [shape: bf16[2,25088], index: 0, kind: input, shape index: {}]
  %s1 = inlined_call_operand.hbm [shape: bf16[32,25088], index: 1, kind: input, shape index: {}]
  %s2 = inlined_call_operand.hbm [shape: f32[1,32], index: 2, kind: input, shape index: {}]
  %s3 = inlined_call_operand.vmem [shape: f32[32,8], index: 3, kind: input, shape index: {}]
  %s4 = inlined_call_operand.hbm [shape: f32[1,8], index: 4, kind: input, shape index: {}]
  %s5 = inlined_call_operand.hbm [shape: f32[2,8], index: 5, kind: output, shape index: {}]
  %s6 = sld [smem:[#allocation0]]
  $region46: #{tpu_custom_call.1} parent=0
    _
  %s8 = ssub.s32 1, %s6
  %s9 = scalar_select 0, %s8, %s6
  $region1: #{tpu_custom_call.1} parent=0
    #allocation2 [shape = 'u8[100352]{0}', space=vmem, size = 0x18800, scoped, tag = 'input window, operand 0, single buffered']
    #allocation3 [shape = 's32[1]{0}', space=sflag, size = 0x4, scoped, tag = 'scoped memory for tpu_custom_call.1']
    #allocation4 [shape = 's32[1]{0}', space=sflag, size = 0x4, scoped, tag = 'scoped memory for tpu_custom_call.1']
    #allocation5 [shape = 'u8[1605632]{0}', space=vmem, size = 0x188000, scoped, tag = 'input window, operand 1, single buffered']
    #allocation6 [shape = 's32[1]{0}', space=sflag, size = 0x4, scoped, tag = 'scoped memory for tpu_custom_call.1']
    #allocation7 [shape = 'u8[512]{0}', space=vmem, size = 0x400, scoped, tag = 'input window, operand 2, single buffered']
    #allocation8 [shape = 'u8[512]{0}', space=vmem, size = 0x400, scoped, tag = 'input window, operand 4, single buffered']
    #allocation9 [shape = 's32[1]{0}', space=sflag, size = 0x4, scoped, tag = 'scoped memory for tpu_custom_call.1']
    #allocation10 [shape = 'u8[1024]{0}', space=vmem, size = 0x400, scoped, tag = 'output window, operand 0, single buffered']
    %10 = vsyncpa [#allocation3], 0
    %11 = vsyncpa [#allocation6], 0
    %12 = vsyncpa [#allocation9], 0
    %13 = vsyncpa [#allocation4], 0
    // Predicated region
    $region2: #{tpu_custom_call.1} parent=1 // pred_check
      _
    $region3: #{tpu_custom_call.1} parent=1 // pred_check_branch
      %15 = sbr.rel (0) target = $region5
    $region4: #{tpu_custom_call.1} parent=1 // pred_region
      %17 = vsyncadd [#allocation3], 0
      %s19 = sshll.u32 %s0, 4
      %s20 = int_to_ptr.hbm [resolvable:$true] %s19
      %s21 = sshll.u32 [#allocation2], 4
      %s22 = int_to_ptr.vmem [resolvable:$true] %s21
      %24 = dma.hbm_to_vmem [thread:$0]  %s20, 3136, %s22, [#allocation3]
    $region5: #{tpu_custom_call.1} parent=1 // pred_fallthru
      _
    // Predicated region
    $region6: #{tpu_custom_call.1} parent=1 // pred_check
      _
    $region7: #{tpu_custom_call.1} parent=1 // pred_check_branch
      %26 = sbr.rel (0) target = $region9
    $region8: #{tpu_custom_call.1} parent=1 // pred_region
      %28 = vsyncadd [#allocation6], 0
      %s29 = sshll.u32 %s1, 4
      %s30 = int_to_ptr.hbm [resolvable:$true] %s29
      %s31 = sshll.u32 [#allocation5], 4
      %s32 = int_to_ptr.vmem [resolvable:$true] %s31
      %37 = dma.hbm_to_vmem [thread:$0]  %s30, 50176, %s32, [#allocation6], 12544, 12544, 784
    $region9: #{tpu_custom_call.1} parent=1 // pred_fallthru
      _
    // Predicated region
    $region10: #{tpu_custom_call.1} parent=1 // pred_check
      _
    $region11: #{tpu_custom_call.1} parent=1 // pred_check_branch
      %39 = sbr.rel (0) target = $region13
    $region12: #{tpu_custom_call.1} parent=1 // pred_region
      %41 = vsyncadd [#allocation6], 0
      %s43 = sshll.u32 %s2, 4
      %s44 = int_to_ptr.hbm [resolvable:$true] %s43
      %s45 = sshll.u32 [#allocation7], 4
      %s46 = int_to_ptr.vmem [resolvable:$true] %s45
      %48 = dma.hbm_to_vmem [thread:$0]  %s44, 16, %s46, [#allocation6]
    $region13: #{tpu_custom_call.1} parent=1 // pred_fallthru
      _
    // Predicated region
    $region14: #{tpu_custom_call.1} parent=1 // pred_check
      _
    $region15: #{tpu_custom_call.1} parent=1 // pred_check_branch
      %50 = sbr.rel (0) target = $region17
    $region16: #{tpu_custom_call.1} parent=1 // pred_region
      _
    $region17: #{tpu_custom_call.1} parent=1 // pred_fallthru
      _
    // Predicated region
    $region18: #{tpu_custom_call.1} parent=1 // pred_check
      _
    $region19: #{tpu_custom_call.1} parent=1 // pred_check_branch
      %52 = sbr.rel (0) target = $region21
    $region20: #{tpu_custom_call.1} parent=1 // pred_region
      %54 = vsyncadd [#allocation9], 0
      %s56 = sshll.u32 %s4, 4
      %s57 = int_to_ptr.hbm [resolvable:$true] %s56
      %s58 = sshll.u32 [#allocation8], 4
      %s59 = int_to_ptr.vmem [resolvable:$true] %s58
      %61 = dma.hbm_to_vmem [thread:$0]  %s57, 16, %s59, [#allocation9]
    $region21: #{tpu_custom_call.1} parent=1 // pred_fallthru
      _
    // Predicated region
    $region22: #{tpu_custom_call.1} parent=1 // pred_check
      _
    $region23: #{tpu_custom_call.1} parent=1 // pred_check_branch
      %63 = sbr.rel (0) target = $region25
    $region24: #{tpu_custom_call.1} parent=1 // pred_region
      %65 = dma.done [#allocation3], 3136
    $region25: #{tpu_custom_call.1} parent=1 // pred_fallthru
      _
    // Predicated region
    $region26: #{tpu_custom_call.1} parent=1 // pred_check
      _
    $region27: #{tpu_custom_call.1} parent=1 // pred_check_branch
      %67 = sbr.rel (0) target = $region29
    $region28: #{tpu_custom_call.1} parent=1 // pred_region
      %69 = dma.done [#allocation6], 50176
    $region29: #{tpu_custom_call.1} parent=1 // pred_fallthru
      _
    // Predicated region
    $region30: #{tpu_custom_call.1} parent=1 // pred_check
      _
    $region31: #{tpu_custom_call.1} parent=1 // pred_check_branch
      %71 = sbr.rel (0) target = $region33
    $region32: #{tpu_custom_call.1} parent=1 // pred_region
      %73 = dma.done [#allocation6], 16
    $region33: #{tpu_custom_call.1} parent=1 // pred_fallthru
      _
    // Predicated region
    $region34: #{tpu_custom_call.1} parent=1 // pred_check
      _
    $region35: #{tpu_custom_call.1} parent=1 // pred_check_branch
      %75 = sbr.rel (0) target = $region37
    $region36: #{tpu_custom_call.1} parent=1 // pred_region
      %77 = dma.done [#allocation9], 16
    $region37: #{tpu_custom_call.1} parent=1 // pred_fallthru
      _
    %v79 = vld [vmem:[#allocation2] sm:$0xff]
    %v80 = vld [vmem:[#allocation2 + $0x8] sm:$0xff]
    %v81 = vld [vmem:[#allocation2 + $0x10] sm:$0xff]
    %v82 = vld [vmem:[#allocation2 + $0x18] sm:$0xff]
    %v83 = vld [vmem:[#allocation2 + $0x20] sm:$0xff]
    %v84 = vld [vmem:[#allocation2 + $0x28] sm:$0xff]
    %v85 = vld [vmem:[#allocation2 + $0x30] sm:$0xff]
    %v86 = vld [vmem:[#allocation2 + $0x38] sm:$0xff]
    %v87 = vld [vmem:[#allocation2 + $0x40] sm:$0xff]
    %v88 = vld [vmem:[#allocation2 + $0x48] sm:$0xff]
    %v89 = vld [vmem:[#allocation2 + $0x50] sm:$0xff]
    %v90 = vld [vmem:[#allocation2 + $0x58] sm:$0xff]
    %v91 = vld [vmem:[#allocation2 + $0x60] sm:$0xff]
    %v92 = vld [vmem:[#allocation2 + $0x68] sm:$0xff]
    %v93 = vld [vmem:[#allocation2 + $0x70] sm:$0xff]
    %v94 = vld [vmem:[#allocation2 + $0x78] sm:$0xff]
    %v95 = vld [vmem:[#allocation2 + $0x80] sm:$0xff]
    %v96 = vld [vmem:[#allocation2 + $0x88] sm:$0xff]
    %v97 = vld [vmem:[#allocation2 + $0x90] sm:$0xff]
    %v98 = vld [vmem:[#allocation2 + $0x98] sm:$0xff]
    %v99 = vld [vmem:[#allocation2 + $0xa0] sm:$0xff]
    %v100 = vld [vmem:[#allocation2 + $0xa8] sm:$0xff]
    %v101 = vld [vmem:[#allocation2 + $0xb0] sm:$0xff]
    %v102 = vld [vmem:[#allocation2 + $0xb8] sm:$0xff]
    %v103 = vld [vmem:[#allocation2 + $0xc0] sm:$0xf]
    %v104 = vld [vmem:[#allocation5] sm:$0xff]
    %v105 = vld [vmem:[#allocation5 + $0x8] sm:$0xff]
    %v106 = vld [vmem:[#allocation5 + $0x10] sm:$0xff]
    %v107 = vld [vmem:[#allocation5 + $0x18] sm:$0xff]
    %v108 = vld [vmem:[#allocation5 + $0x20] sm:$0xff]
    %v109 = vld [vmem:[#allocation5 + $0x28] sm:$0xff]
    %v110 = vld [vmem:[#allocation5 + $0x30] sm:$0xff]
    %v111 = vld [vmem:[#allocation5 + $0x38] sm:$0xff]
    %v112 = vld [vmem:[#allocation5 + $0x40] sm:$0xff]
    %v113 = vld [vmem:[#allocation5 + $0x48] sm:$0xff]
    %v114 = vld [vmem:[#allocation5 + $0x50] sm:$0xff]
    %v115 = vld [vmem:[#allocation5 + $0x58] sm:$0xff]
    %v116 = vld [vmem:[#allocation5 + $0x60] sm:$0xff]
    %v117 = vld [vmem:[#allocation5 + $0x68] sm:$0xff]
    %v118 = vld [vmem:[#allocation5 + $0x70] sm:$0xff]
    %v119 = vld [vmem:[#allocation5 + $0x78] sm:$0xff]
    %v120 = vld [vmem:[#allocation5 + $0x80] sm:$0xff]
    %v121 = vld [vmem:[#allocation5 + $0x88] sm:$0xff]
    %v122 = vld [vmem:[#allocation5 + $0x90] sm:$0xff]
    %v123 = vld [vmem:[#allocation5 + $0x98] sm:$0xff]
    %v124 = vld [vmem:[#allocation5 + $0xa0] sm:$0xff]
    %v125 = vld [vmem:[#allocation5 + $0xa8] sm:$0xff]
    %v126 = vld [vmem:[#allocation5 + $0xb0] sm:$0xff]
    %v127 = vld [vmem:[#allocation5 + $0xb8] sm:$0xff]
    %v128 = vld [vmem:[#allocation5 + $0xc0] sm:$0xff]
    %v129 = vld [vmem:[#allocation5 + $0xc8] sm:$0xff]
    %v130 = vld [vmem:[#allocation5 + $0xd0] sm:$0xff]
    %v131 = vld [vmem:[#allocation5 + $0xd8] sm:$0xff]
    %v132 = vld [vmem:[#allocation5 + $0xe0] sm:$0xff]
    %v133 = vld [vmem:[#allocation5 + $0xe8] sm:$0xff]
    %v134 = vld [vmem:[#allocation5 + $0xf0] sm:$0xff]
    %v135 = vld [vmem:[#allocation5 + $0xf8] sm:$0xff]
    %v136 = vld [vmem:[#allocation5 + $0x100] sm:$0xff]
    %v137 = vld [vmem:[#allocation5 + $0x108] sm:$0xff]
    %v138 = vld [vmem:[#allocation5 + $0x110] sm:$0xff]
    %v139 = vld [vmem:[#allocation5 + $0x118] sm:$0xff]
    %v140 = vld [vmem:[#allocation5 + $0x120] sm:$0xff]
    %v141 = vld [vmem:[#allocation5 + $0x128] sm:$0xff]
    %v142 = vld [vmem:[#allocation5 + $0x130] sm:$0xff]
    %v143 = vld [vmem:[#allocation5 + $0x138] sm:$0xff]
    %v144 = vld [vmem:[#allocation5 + $0x140] sm:$0xff]
    %v145 = vld [vmem:[#allocation5 + $0x148] sm:$0xff]
    %v146 = vld [vmem:[#allocation5 + $0x150] sm:$0xff]
    %v147 = vld [vmem:[#allocation5 + $0x158] sm:$0xff]
    %v148 = vld [vmem:[#allocation5 + $0x160] sm:$0xff]
    %v149 = vld [vmem:[#allocation5 + $0x168] sm:$0xff]
    %v150 = vld [vmem:[#allocation5 + $0x170] sm:$0xff]
    %v151 = vld [vmem:[#allocation5 + $0x178] sm:$0xff]
    %v152 = vld [vmem:[#allocation5 + $0x180] sm:$0xff]
    %v153 = vld [vmem:[#allocation5 + $0x188] sm:$0xff]
    %v154 = vld [vmem:[#allocation5 + $0x190] sm:$0xff]
    %v155 = vld [vmem:[#allocation5 + $0x198] sm:$0xff]
    %v156 = vld [vmem:[#allocation5 + $0x1a0] sm:$0xff]
    %v157 = vld [vmem:[#allocation5 + $0x1a8] sm:$0xff]
    %v158 = vld [vmem:[#allocation5 + $0x1b0] sm:$0xff]
    %v159 = vld [vmem:[#allocation5 + $0x1b8] sm:$0xff]
    %v160 = vld [vmem:[#allocation5 + $0x1c0] sm:$0xff]
    %v161 = vld [vmem:[#allocation5 + $0x1c8] sm:$0xff]
    %v162 = vld [vmem:[#allocation5 + $0x1d0] sm:$0xff]
    %v163 = vld [vmem:[#allocation5 + $0x1d8] sm:$0xff]
    %v164 = vld [vmem:[#allocation5 + $0x1e0] sm:$0xff]
    %v165 = vld [vmem:[#allocation5 + $0x1e8] sm:$0xff]
    %v166 = vld [vmem:[#allocation5 + $0x1f0] sm:$0xff]
    %v167 = vld [vmem:[#allocation5 + $0x1f8] sm:$0xff]
    %v168 = vld [vmem:[#allocation5 + $0x200] sm:$0xff]
    %v169 = vld [vmem:[#allocation5 + $0x208] sm:$0xff]
    %v170 = vld [vmem:[#allocation5 + $0x210] sm:$0xff]
    %v171 = vld [vmem:[#allocation5 + $0x218] sm:$0xff]
    %v172 = vld [vmem:[#allocation5 + $0x220] sm:$0xff]
    %v173 = vld [vmem:[#allocation5 + $0x228] sm:$0xff]
    %v174 = vld [vmem:[#allocation5 + $0x230] sm:$0xff]
    %v175 = vld [vmem:[#allocation5 + $0x238] sm:$0xff]
    %v176 = vld [vmem:[#allocation5 + $0x240] sm:$0xff]
    %v177 = vld [vmem:[#allocation5 + $0x248] sm:$0xff]
    %v178 = vld [vmem:[#allocation5 + $0x250] sm:$0xff]
    %v179 = vld [vmem:[#allocation5 + $0x258] sm:$0xff]
    %v180 = vld [vmem:[#allocation5 + $0x260] sm:$0xff]
    %v181 = vld [vmem:[#allocation5 + $0x268] sm:$0xff]
    %v182 = vld [vmem:[#allocation5 + $0x270] sm:$0xff]
    %v183 = vld [vmem:[#allocation5 + $0x278] sm:$0xff]
    %v184 = vld [vmem:[#allocation5 + $0x280] sm:$0xff]
    %v185 = vld [vmem:[#allocation5 + $0x288] sm:$0xff]
    %v186 = vld [vmem:[#allocation5 + $0x290] sm:$0xff]
    %v187 = vld [vmem:[#allocation5 + $0x298] sm:$0xff]
    %v188 = vld [vmem:[#allocation5 + $0x2a0] sm:$0xff]
    %v189 = vld [vmem:[#allocation5 + $0x2a8] sm:$0xff]
    %v190 = vld [vmem:[#allocation5 + $0x2b0] sm:$0xff]
    %v191 = vld [vmem:[#allocation5 + $0x2b8] sm:$0xff]
    %v192 = vld [vmem:[#allocation5 + $0x2c0] sm:$0xff]
    %v193 = vld [vmem:[#allocation5 + $0x2c8] sm:$0xff]
    %v194 = vld [vmem:[#allocation5 + $0x2d0] sm:$0xff]
    %v195 = vld [vmem:[#allocation5 + $0x2d8] sm:$0xff]
    %v196 = vld [vmem:[#allocation5 + $0x2e0] sm:$0xff]
    %v197 = vld [vmem:[#allocation5 + $0x2e8] sm:$0xff]
    %v198 = vld [vmem:[#allocation5 + $0x2f0] sm:$0xff]
    %v199 = vld [vmem:[#allocation5 + $0x2f8] sm:$0xff]
    %v200 = vld [vmem:[#allocation5 + $0x300] sm:$0xff]
    %v201 = vld [vmem:[#allocation5 + $0x308] sm:$0xff]
    %v202 = vld [vmem:[#allocation5 + $0x310] sm:$0xff]
    %v203 = vld [vmem:[#allocation5 + $0x318] sm:$0xff]
    %v204 = vld [vmem:[#allocation5 + $0x320] sm:$0xff]
    %v205 = vld [vmem:[#allocation5 + $0x328] sm:$0xff]
    %v206 = vld [vmem:[#allocation5 + $0x330] sm:$0xff]
    %v207 = vld [vmem:[#allocation5 + $0x338] sm:$0xff]
    %v208 = vld [vmem:[#allocation5 + $0x340] sm:$0xff]
    %v209 = vld [vmem:[#allocation5 + $0x348] sm:$0xff]
    %v210 = vld [vmem:[#allocation5 + $0x350] sm:$0xff]
    %v211 = vld [vmem:[#allocation5 + $0x358] sm:$0xff]
    %v212 = vld [vmem:[#allocation5 + $0x360] sm:$0xff]
    %v213 = vld [vmem:[#allocation5 + $0x368] sm:$0xff]
    %v214 = vld [vmem:[#allocation5 + $0x370] sm:$0xff]
    %v215 = vld [vmem:[#allocation5 + $0x378] sm:$0xff]
    %v216 = vld [vmem:[#allocation5 + $0x380] sm:$0xff]
    %v217 = vld [vmem:[#allocation5 + $0x388] sm:$0xff]
    %v218 = vld [vmem:[#allocation5 + $0x390] sm:$0xff]
    %v219 = vld [vmem:[#allocation5 + $0x398] sm:$0xff]
    %v220 = vld [vmem:[#allocation5 + $0x3a0] sm:$0xff]
    %v221 = vld [vmem:[#allocation5 + $0x3a8] sm:$0xff]
    %v222 = vld [vmem:[#allocation5 + $0x3b0] sm:$0xff]
    %v223 = vld [vmem:[#allocation5 + $0x3b8] sm:$0xff]
    %v224 = vld [vmem:[#allocation5 + $0x3c0] sm:$0xff]
    %v225 = vld [vmem:[#allocation5 + $0x3c8] sm:$0xff]
    %v226 = vld [vmem:[#allocation5 + $0x3d0] sm:$0xff]
    %v227 = vld [vmem:[#allocation5 + $0x3d8] sm:$0xff]
    %v228 = vld [vmem:[#allocation5 + $0x3e0] sm:$0xff]
    %v229 = vld [vmem:[#allocation5 + $0x3e8] sm:$0xff]
    %v230 = vld [vmem:[#allocation5 + $0x3f0] sm:$0xff]
    %v231 = vld [vmem:[#allocation5 + $0x3f8] sm:$0xff]
    %v232 = vld [vmem:[#allocation5 + $0x400] sm:$0xff]
    %v233 = vld [vmem:[#allocation5 + $0x408] sm:$0xff]
    %v234 = vld [vmem:[#allocation5 + $0x410] sm:$0xff]
    %v235 = vld [vmem:[#allocation5 + $0x418] sm:$0xff]
    %v236 = vld [vmem:[#allocation5 + $0x420] sm:$0xff]
    %v237 = vld [vmem:[#allocation5 + $0x428] sm:$0xff]
    %v238 = vld [vmem:[#allocation5 + $0x430] sm:$0xff]
    %v239 = vld [vmem:[#allocation5 + $0x438] sm:$0xff]
    %v240 = vld [vmem:[#allocation5 + $0x440] sm:$0xff]
    %v241 = vld [vmem:[#allocation5 + $0x448] sm:$0xff]
    %v242 = vld [vmem:[#allocation5 + $0x450] sm:$0xff]
    %v243 = vld [vmem:[#allocation5 + $0x458] sm:$0xff]
    %v244 = vld [vmem:[#allocation5 + $0x460] sm:$0xff]
    %v245 = vld [vmem:[#allocation5 + $0x468] sm:$0xff]
    %v246 = vld [vmem:[#allocation5 + $0x470] sm:$0xff]
    %v247 = vld [vmem:[#allocation5 + $0x478] sm:$0xff]
    %v248 = vld [vmem:[#allocation5 + $0x480] sm:$0xff]
    %v249 = vld [vmem:[#allocation5 + $0x488] sm:$0xff]
    %v250 = vld [vmem:[#allocation5 + $0x490] sm:$0xff]
    %v251 = vld [vmem:[#allocation5 + $0x498] sm:$0xff]
    %v252 = vld [vmem:[#allocation5 + $0x4a0] sm:$0xff]
    %v253 = vld [vmem:[#allocation5 + $0x4a8] sm:$0xff]
    %v254 = vld [vmem:[#allocation5 + $0x4b0] sm:$0xff]
    %v255 = vld [vmem:[#allocation5 + $0x4b8] sm:$0xff]
    %v256 = vld [vmem:[#allocation5 + $0x4c0] sm:$0xff]
    %v257 = vld [vmem:[#allocation5 + $0x4c8] sm:$0xff]
    %v258 = vld [vmem:[#allocation5 + $0x4d0] sm:$0xff]
    %v259 = vld [vmem:[#allocation5 + $0x4d8] sm:$0xff]
    %v260 = vld [vmem:[#allocation5 + $0x4e0] sm:$0xff]
    %v261 = vld [vmem:[#allocation5 + $0x4e8] sm:$0xff]
    %v262 = vld [vmem:[#allocation5 + $0x4f0] sm:$0xff]
    %v263 = vld [vmem:[#allocation5 + $0x4f8] sm:$0xff]
    %v264 = vld [vmem:[#allocation5 + $0x500] sm:$0xff]
    %v265 = vld [vmem:[#allocation5 + $0x508] sm:$0xff]
    %v266 = vld [vmem:[#allocation5 + $0x510] sm:$0xff]
    %v267 = vld [vmem:[#allocation5 + $0x518] sm:$0xff]
    %v268 = vld [vmem:[#allocation5 + $0x520] sm:$0xff]
    %v269 = vld [vmem:[#allocation5 + $0x528] sm:$0xff]
    %v270 = vld [vmem:[#allocation5 + $0x530] sm:$0xff]
    %v271 = vld [vmem:[#allocation5 + $0x538] sm:$0xff]
    %v272 = vld [vmem:[#allocation5 + $0x540] sm:$0xff]
    %v273 = vld [vmem:[#allocation5 + $0x548] sm:$0xff]
    %v274 = vld [vmem:[#allocation5 + $0x550] sm:$0xff]
    %v275 = vld [vmem:[#allocation5 + $0x558] sm:$0xff]
    %v276 = vld [vmem:[#allocation5 + $0x560] sm:$0xff]
    %v277 = vld [vmem:[#allocation5 + $0x568] sm:$0xff]
    %v278 = vld [vmem:[#allocation5 + $0x570] sm:$0xff]
    %v279 = vld [vmem:[#allocation5 + $0x578] sm:$0xff]
    %v280 = vld [vmem:[#allocation5 + $0x580] sm:$0xff]
    %v281 = vld [vmem:[#allocation5 + $0x588] sm:$0xff]
    %v282 = vld [vmem:[#allocation5 + $0x590] sm:$0xff]
    %v283 = vld [vmem:[#allocation5 + $0x598] sm:$0xff]
    %v284 = vld [vmem:[#allocation5 + $0x5a0] sm:$0xff]
    %v285 = vld [vmem:[#allocation5 + $0x5a8] sm:$0xff]
    %v286 = vld [vmem:[#allocation5 + $0x5b0] sm:$0xff]
    %v287 = vld [vmem:[#allocation5 + $0x5b8] sm:$0xff]
    %v288 = vld [vmem:[#allocation5 + $0x5c0] sm:$0xff]
    %v289 = vld [vmem:[#allocation5 + $0x5c8] sm:$0xff]
    %v290 = vld [vmem:[#allocation5 + $0x5d0] sm:$0xff]
    %v291 = vld [vmem:[#allocation5 + $0x5d8] sm:$0xff]
    %v292 = vld [vmem:[#allocation5 + $0x5e0] sm:$0xff]
    %v293 = vld [vmem:[#allocation5 + $0x5e8] sm:$0xff]
    %v294 = vld [vmem:[#allocation5 + $0x5f0] sm:$0xff]
    %v295 = vld [vmem:[#allocation5 + $0x5f8] sm:$0xff]
    %v296 = vld [vmem:[#allocation5 + $0x600] sm:$0xff]
    %v297 = vld [vmem:[#allocation5 + $0x608] sm:$0xff]
    %v298 = vld [vmem:[#allocation5 + $0x610] sm:$0xff]
    %v299 = vld [vmem:[#allocation5 + $0x618] sm:$0xff]
    %v300 = vld [vmem:[#allocation5 + $0x620] sm:$0xff]
    %v301 = vld [vmem:[#allocation5 + $0x628] sm:$0xff]
    %v302 = vld [vmem:[#allocation5 + $0x630] sm:$0xff]
    %v303 = vld [vmem:[#allocation5 + $0x638] sm:$0xff]
    %v304 = vld [vmem:[#allocation5 + $0x640] sm:$0xff]
    %v305 = vld [vmem:[#allocation5 + $0x648] sm:$0xff]
    %v306 = vld [vmem:[#allocation5 + $0x650] sm:$0xff]
    %v307 = vld [vmem:[#allocation5 + $0x658] sm:$0xff]
    %v308 = vld [vmem:[#allocation5 + $0x660] sm:$0xff]
    %v309 = vld [vmem:[#allocation5 + $0x668] sm:$0xff]
    %v310 = vld [vmem:[#allocation5 + $0x670] sm:$0xff]
    %v311 = vld [vmem:[#allocation5 + $0x678] sm:$0xff]
    %v312 = vld [vmem:[#allocation5 + $0x680] sm:$0xff]
    %v313 = vld [vmem:[#allocation5 + $0x688] sm:$0xff]
    %v314 = vld [vmem:[#allocation5 + $0x690] sm:$0xff]
    %v315 = vld [vmem:[#allocation5 + $0x698] sm:$0xff]
    %v316 = vld [vmem:[#allocation5 + $0x6a0] sm:$0xff]
    %v317 = vld [vmem:[#allocation5 + $0x6a8] sm:$0xff]
    %v318 = vld [vmem:[#allocation5 + $0x6b0] sm:$0xff]
    %v319 = vld [vmem:[#allocation5 + $0x6b8] sm:$0xff]
    %v320 = vld [vmem:[#allocation5 + $0x6c0] sm:$0xff]
    %v321 = vld [vmem:[#allocation5 + $0x6c8] sm:$0xff]
    %v322 = vld [vmem:[#allocation5 + $0x6d0] sm:$0xff]
    %v323 = vld [vmem:[#allocation5 + $0x6d8] sm:$0xff]
    %v324 = vld [vmem:[#allocation5 + $0x6e0] sm:$0xff]
    %v325 = vld [vmem:[#allocation5 + $0x6e8] sm:$0xff]
    %v326 = vld [vmem:[#allocation5 + $0x6f0] sm:$0xff]
    %v327 = vld [vmem:[#allocation5 + $0x6f8] sm:$0xff]
    %v328 = vld [vmem:[#allocation5 + $0x700] sm:$0xff]
    %v329 = vld [vmem:[#allocation5 + $0x708] sm:$0xff]
    %v330 = vld [vmem:[#allocation5 + $0x710] sm:$0xff]
    %v331 = vld [vmem:[#allocation5 + $0x718] sm:$0xff]
    %v332 = vld [vmem:[#allocation5 + $0x720] sm:$0xff]
    %v333 = vld [vmem:[#allocation5 + $0x728] sm:$0xff]
    %v334 = vld [vmem:[#allocation5 + $0x730] sm:$0xff]
    %v335 = vld [vmem:[#allocation5 + $0x738] sm:$0xff]
    %v336 = vld [vmem:[#allocation5 + $0x740] sm:$0xff]
    %v337 = vld [vmem:[#allocation5 + $0x748] sm:$0xff]
    %v338 = vld [vmem:[#allocation5 + $0x750] sm:$0xff]
    %v339 = vld [vmem:[#allocation5 + $0x758] sm:$0xff]
    %v340 = vld [vmem:[#allocation5 + $0x760] sm:$0xff]
    %v341 = vld [vmem:[#allocation5 + $0x768] sm:$0xff]
    %v342 = vld [vmem:[#allocation5 + $0x770] sm:$0xff]
    %v343 = vld [vmem:[#allocation5 + $0x778] sm:$0xff]
    %v344 = vld [vmem:[#allocation5 + $0x780] sm:$0xff]
    %v345 = vld [vmem:[#allocation5 + $0x788] sm:$0xff]
    %v346 = vld [vmem:[#allocation5 + $0x790] sm:$0xff]
    %v347 = vld [vmem:[#allocation5 + $0x798] sm:$0xff]
    %v348 = vld [vmem:[#allocation5 + $0x7a0] sm:$0xff]
    %v349 = vld [vmem:[#allocation5 + $0x7a8] sm:$0xff]
    %v350 = vld [vmem:[#allocation5 + $0x7b0] sm:$0xff]
    %v351 = vld [vmem:[#allocation5 + $0x7b8] sm:$0xff]
    %v352 = vld [vmem:[#allocation5 + $0x7c0] sm:$0xff]
    %v353 = vld [vmem:[#allocation5 + $0x7c8] sm:$0xff]
    %v354 = vld [vmem:[#allocation5 + $0x7d0] sm:$0xff]
    %v355 = vld [vmem:[#allocation5 + $0x7d8] sm:$0xff]
    %v356 = vld [vmem:[#allocation5 + $0x7e0] sm:$0xff]
    %v357 = vld [vmem:[#allocation5 + $0x7e8] sm:$0xff]
    %v358 = vld [vmem:[#allocation5 + $0x7f0] sm:$0xff]
    %v359 = vld [vmem:[#allocation5 + $0x7f8] sm:$0xff]
    %v360 = vld [vmem:[#allocation5 + $0x800] sm:$0xff]
    %v361 = vld [vmem:[#allocation5 + $0x808] sm:$0xff]
    %v362 = vld [vmem:[#allocation5 + $0x810] sm:$0xff]
    %v363 = vld [vmem:[#allocation5 + $0x818] sm:$0xff]
    %v364 = vld [vmem:[#allocation5 + $0x820] sm:$0xff]
    %v365 = vld [vmem:[#allocation5 + $0x828] sm:$0xff]
    %v366 = vld [vmem:[#allocation5 + $0x830] sm:$0xff]
    %v367 = vld [vmem:[#allocation5 + $0x838] sm:$0xff]
    %v368 = vld [vmem:[#allocation5 + $0x840] sm:$0xff]
    %v369 = vld [vmem:[#allocation5 + $0x848] sm:$0xff]
    %v370 = vld [vmem:[#allocation5 + $0x850] sm:$0xff]
    %v371 = vld [vmem:[#allocation5 + $0x858] sm:$0xff]
    %v372 = vld [vmem:[#allocation5 + $0x860] sm:$0xff]
    %v373 = vld [vmem:[#allocation5 + $0x868] sm:$0xff]
    %v374 = vld [vmem:[#allocation5 + $0x870] sm:$0xff]
    %v375 = vld [vmem:[#allocation5 + $0x878] sm:$0xff]
    %v376 = vld [vmem:[#allocation5 + $0x880] sm:$0xff]
    %v377 = vld [vmem:[#allocation5 + $0x888] sm:$0xff]
    %v378 = vld [vmem:[#allocation5 + $0x890] sm:$0xff]
    %v379 = vld [vmem:[#allocation5 + $0x898] sm:$0xff]
    %v380 = vld [vmem:[#allocation5 + $0x8a0] sm:$0xff]
    %v381 = vld [vmem:[#allocation5 + $0x8a8] sm:$0xff]
    %v382 = vld [vmem:[#allocation5 + $0x8b0] sm:$0xff]
    %v383 = vld [vmem:[#allocation5 + $0x8b8] sm:$0xff]
    %v384 = vld [vmem:[#allocation5 + $0x8c0] sm:$0xff]
    %v385 = vld [vmem:[#allocation5 + $0x8c8] sm:$0xff]
    %v386 = vld [vmem:[#allocation5 + $0x8d0] sm:$0xff]
    %v387 = vld [vmem:[#allocation5 + $0x8d8] sm:$0xff]
    %v388 = vld [vmem:[#allocation5 + $0x8e0] sm:$0xff]
    %v389 = vld [vmem:[#allocation5 + $0x8e8] sm:$0xff]
    %v390 = vld [vmem:[#allocation5 + $0x8f0] sm:$0xff]
    %v391 = vld [vmem:[#allocation5 + $0x8f8] sm:$0xff]
    %v392 = vld [vmem:[#allocation5 + $0x900] sm:$0xff]
    %v393 = vld [vmem:[#allocation5 + $0x908] sm:$0xff]
    %v394 = vld [vmem:[#allocation5 + $0x910] sm:$0xff]
    %v395 = vld [vmem:[#allocation5 + $0x918] sm:$0xff]
    %v396 = vld [vmem:[#allocation5 + $0x920] sm:$0xff]
    %v397 = vld [vmem:[#allocation5 + $0x928] sm:$0xff]
    %v398 = vld [vmem:[#allocation5 + $0x930] sm:$0xff]
    %v399 = vld [vmem:[#allocation5 + $0x938] sm:$0xff]
    %v400 = vld [vmem:[#allocation5 + $0x940] sm:$0xff]
    %v401 = vld [vmem:[#allocation5 + $0x948] sm:$0xff]
    %v402 = vld [vmem:[#allocation5 + $0x950] sm:$0xff]
    %v403 = vld [vmem:[#allocation5 + $0x958] sm:$0xff]
    %v404 = vld [vmem:[#allocation5 + $0x960] sm:$0xff]
    %v405 = vld [vmem:[#allocation5 + $0x968] sm:$0xff]
    %v406 = vld [vmem:[#allocation5 + $0x970] sm:$0xff]
    %v407 = vld [vmem:[#allocation5 + $0x978] sm:$0xff]
    %v408 = vld [vmem:[#allocation5 + $0x980] sm:$0xff]
    %v409 = vld [vmem:[#allocation5 + $0x988] sm:$0xff]
    %v410 = vld [vmem:[#allocation5 + $0x990] sm:$0xff]
    %v411 = vld [vmem:[#allocation5 + $0x998] sm:$0xff]
    %v412 = vld [vmem:[#allocation5 + $0x9a0] sm:$0xff]
    %v413 = vld [vmem:[#allocation5 + $0x9a8] sm:$0xff]
    %v414 = vld [vmem:[#allocation5 + $0x9b0] sm:$0xff]
    %v415 = vld [vmem:[#allocation5 + $0x9b8] sm:$0xff]
    %v416 = vld [vmem:[#allocation5 + $0x9c0] sm:$0xff]
    %v417 = vld [vmem:[#allocation5 + $0x9c8] sm:$0xff]
    %v418 = vld [vmem:[#allocation5 + $0x9d0] sm:$0xff]
    %v419 = vld [vmem:[#allocation5 + $0x9d8] sm:$0xff]
    %v420 = vld [vmem:[#allocation5 + $0x9e0] sm:$0xff]
    %v421 = vld [vmem:[#allocation5 + $0x9e8] sm:$0xff]
    %v422 = vld [vmem:[#allocation5 + $0x9f0] sm:$0xff]
    %v423 = vld [vmem:[#allocation5 + $0x9f8] sm:$0xff]
    %v424 = vld [vmem:[#allocation5 + $0xa00] sm:$0xff]
    %v425 = vld [vmem:[#allocation5 + $0xa08] sm:$0xff]
    %v426 = vld [vmem:[#allocation5 + $0xa10] sm:$0xff]
    %v427 = vld [vmem:[#allocation5 + $0xa18] sm:$0xff]
    %v428 = vld [vmem:[#allocation5 + $0xa20] sm:$0xff]
    %v429 = vld [vmem:[#allocation5 + $0xa28] sm:$0xff]
    %v430 = vld [vmem:[#allocation5 + $0xa30] sm:$0xff]
    %v431 = vld [vmem:[#allocation5 + $0xa38] sm:$0xff]
    %v432 = vld [vmem:[#allocation5 + $0xa40] sm:$0xff]
    %v433 = vld [vmem:[#allocation5 + $0xa48] sm:$0xff]
    %v434 = vld [vmem:[#allocation5 + $0xa50] sm:$0xff]
    %v435 = vld [vmem:[#allocation5 + $0xa58] sm:$0xff]
    %v436 = vld [vmem:[#allocation5 + $0xa60] sm:$0xff]
    %v437 = vld [vmem:[#allocation5 + $0xa68] sm:$0xff]
    %v438 = vld [vmem:[#allocation5 + $0xa70] sm:$0xff]
    %v439 = vld [vmem:[#allocation5 + $0xa78] sm:$0xff]
    %v440 = vld [vmem:[#allocation5 + $0xa80] sm:$0xff]
    %v441 = vld [vmem:[#allocation5 + $0xa88] sm:$0xff]
    %v442 = vld [vmem:[#allocation5 + $0xa90] sm:$0xff]
    %v443 = vld [vmem:[#allocation5 + $0xa98] sm:$0xff]
    %v444 = vld [vmem:[#allocation5 + $0xaa0] sm:$0xff]
    %v445 = vld [vmem:[#allocation5 + $0xaa8] sm:$0xff]
    %v446 = vld [vmem:[#allocation5 + $0xab0] sm:$0xff]
    %v447 = vld [vmem:[#allocation5 + $0xab8] sm:$0xff]
    %v448 = vld [vmem:[#allocation5 + $0xac0] sm:$0xff]
    %v449 = vld [vmem:[#allocation5 + $0xac8] sm:$0xff]
    %v450 = vld [vmem:[#allocation5 + $0xad0] sm:$0xff]
    %v451 = vld [vmem:[#allocation5 + $0xad8] sm:$0xff]
    %v452 = vld [vmem:[#allocation5 + $0xae0] sm:$0xff]
    %v453 = vld [vmem:[#allocation5 + $0xae8] sm:$0xff]
    %v454 = vld [vmem:[#allocation5 + $0xaf0] sm:$0xff]
    %v455 = vld [vmem:[#allocation5 + $0xaf8] sm:$0xff]
    %v456 = vld [vmem:[#allocation5 + $0xb00] sm:$0xff]
    %v457 = vld [vmem:[#allocation5 + $0xb08] sm:$0xff]
    %v458 = vld [vmem:[#allocation5 + $0xb10] sm:$0xff]
    %v459 = vld [vmem:[#allocation5 + $0xb18] sm:$0xff]
    %v460 = vld [vmem:[#allocation5 + $0xb20] sm:$0xff]
    %v461 = vld [vmem:[#allocation5 + $0xb28] sm:$0xff]
    %v462 = vld [vmem:[#allocation5 + $0xb30] sm:$0xff]
    %v463 = vld [vmem:[#allocation5 + $0xb38] sm:$0xff]
    %v464 = vld [vmem:[#allocation5 + $0xb40] sm:$0xff]
    %v465 = vld [vmem:[#allocation5 + $0xb48] sm:$0xff]
    %v466 = vld [vmem:[#allocation5 + $0xb50] sm:$0xff]
    %v467 = vld [vmem:[#allocation5 + $0xb58] sm:$0xff]
    %v468 = vld [vmem:[#allocation5 + $0xb60] sm:$0xff]
    %v469 = vld [vmem:[#allocation5 + $0xb68] sm:$0xff]
    %v470 = vld [vmem:[#allocation5 + $0xb70] sm:$0xff]
    %v471 = vld [vmem:[#allocation5 + $0xb78] sm:$0xff]
    %v472 = vld [vmem:[#allocation5 + $0xb80] sm:$0xff]
    %v473 = vld [vmem:[#allocation5 + $0xb88] sm:$0xff]
    %v474 = vld [vmem:[#allocation5 + $0xb90] sm:$0xff]
    %v475 = vld [vmem:[#allocation5 + $0xb98] sm:$0xff]
    %v476 = vld [vmem:[#allocation5 + $0xba0] sm:$0xff]
    %v477 = vld [vmem:[#allocation5 + $0xba8] sm:$0xff]
    %v478 = vld [vmem:[#allocation5 + $0xbb0] sm:$0xff]
    %v479 = vld [vmem:[#allocation5 + $0xbb8] sm:$0xff]
    %v480 = vld [vmem:[#allocation5 + $0xbc0] sm:$0xff]
    %v481 = vld [vmem:[#allocation5 + $0xbc8] sm:$0xff]
    %v482 = vld [vmem:[#allocation5 + $0xbd0] sm:$0xff]
    %v483 = vld [vmem:[#allocation5 + $0xbd8] sm:$0xff]
    %v484 = vld [vmem:[#allocation5 + $0xbe0] sm:$0xff]
    %v485 = vld [vmem:[#allocation5 + $0xbe8] sm:$0xff]
    %v486 = vld [vmem:[#allocation5 + $0xbf0] sm:$0xff]
    %v487 = vld [vmem:[#allocation5 + $0xbf8] sm:$0xff]
    %v488 = vld [vmem:[#allocation5 + $0xc00] sm:$0xff]
    %v489 = vld [vmem:[#allocation5 + $0xc08] sm:$0xff]
    %v490 = vld [vmem:[#allocation5 + $0xc10] sm:$0xff]
    %v491 = vld [vmem:[#allocation5 + $0xc18] sm:$0xff]
    %v492 = vld [vmem:[#allocation5 + $0xc20] sm:$0xff]
    %v493 = vld [vmem:[#allocation5 + $0xc28] sm:$0xff]
    %v494 = vld [vmem:[#allocation5 + $0xc30] sm:$0xff]
    %v495 = vld [vmem:[#allocation5 + $0xc38] sm:$0xff]
    %v496 = vld [vmem:[#allocation7] sm:$0x1]
    %v498 = vperm.slane %v496, 0
    %501 = vst [vmem:[#allocation1] ss:$9 sm:$0xff] %v79
    %v502 = vld [vmem:[#allocation1] sm:$0xff]
    %v503 = vld [vmem:[#allocation1 + $0x9] sm:$0xff]
    %v504 = vld [vmem:[#allocation1 + $0x12] sm:$0xff]
    %v505 = vld [vmem:[#allocation1 + $0x1b] sm:$0xff]
    %v506 = vld [vmem:[#allocation1 + $0x24] sm:$0xff]
    %v507 = vld [vmem:[#allocation1 + $0x2d] sm:$0xff]
    %v508 = vld [vmem:[#allocation1 + $0x36] sm:$0xff]
    %v509 = vld [vmem:[#allocation1 + $0x3f] sm:$0xff]
    %511 = vst [vmem:[#allocation1] ss:$9 sm:$0xff] %v80
    %v512 = vld [vmem:[#allocation1] sm:$0xff]
    %v513 = vld [vmem:[#allocation1 + $0x9] sm:$0xff]
    %v514 = vld [vmem:[#allocation1 + $0x12] sm:$0xff]
    %v515 = vld [vmem:[#allocation1 + $0x1b] sm:$0xff]
    %v516 = vld [vmem:[#allocation1 + $0x24] sm:$0xff]
    %v517 = vld [vmem:[#allocation1 + $0x2d] sm:$0xff]
    %v518 = vld [vmem:[#allocation1 + $0x36] sm:$0xff]
    %v519 = vld [vmem:[#allocation1 + $0x3f] sm:$0xff]
    %521 = vst [vmem:[#allocation1] ss:$9 sm:$0xff] %v81
    %v522 = vld [vmem:[#allocation1] sm:$0xff]
    %v523 = vld [vmem:[#allocation1 + $0x9] sm:$0xff]
    %v524 = vld [vmem:[#allocation1 + $0x12] sm:$0xff]
    %v525 = vld [vmem:[#allocation1 + $0x1b] sm:$0xff]
    %v526 = vld [vmem:[#allocation1 + $0x24] sm:$0xff]
    %v527 = vld [vmem:[#allocation1 + $0x2d] sm:$0xff]
    %v528 = vld [vmem:[#allocation1 + $0x36] sm:$0xff]
    %v529 = vld [vmem:[#allocation1 + $0x3f] sm:$0xff]
    %531 = vst [vmem:[#allocation1] ss:$9 sm:$0xff] %v82
    %v532 = vld [vmem:[#allocation1] sm:$0xff]
    %v533 = vld [vmem:[#allocation1 + $0x9] sm:$0xff]
    %v534 = vld [vmem:[#allocation1 + $0x12] sm:$0xff]
    %v535 = vld [vmem:[#allocation1 + $0x1b] sm:$0xff]
    %v536 = vld [vmem:[#allocation1 + $0x24] sm:$0xff]
    %v537 = vld [vmem:[#allocation1 + $0x2d] sm:$0xff]
    %v538 = vld [vmem:[#allocation1 + $0x36] sm:$0xff]
    %v539 = vld [vmem:[#allocation1 + $0x3f] sm:$0xff]
    %541 = vst [vmem:[#allocation1] ss:$9 sm:$0xff] %v83
    %v542 = vld [vmem:[#allocation1] sm:$0xff]
    %v543 = vld [vmem:[#allocation1 + $0x9] sm:$0xff]
    %v544 = vld [vmem:[#allocation1 + $0x12] sm:$0xff]
    %v545 = vld [vmem:[#allocation1 + $0x1b] sm:$0xff]
    %v546 = vld [vmem:[#allocation1 + $0x24] sm:$0xff]
    %v547 = vld [vmem:[#allocation1 + $0x2d] sm:$0xff]
    %v548 = vld [vmem:[#allocation1 + $0x36] sm:$0xff]
    %v549 = vld [vmem:[#allocation1 + $0x3f] sm:$0xff]
    %551 = vst [vmem:[#allocation1] ss:$9 sm:$0xff] %v84
    %v552 = vld [vmem:[#allocation1] sm:$0xff]
    %v553 = vld [vmem:[#allocation1 + $0x9] sm:$0xff]
    %v554 = vld [vmem:[#allocation1 + $0x12] sm:$0xff]
    %v555 = vld [vmem:[#allocation1 + $0x1b] sm:$0xff]
    %v556 = vld [vmem:[#allocation1 + $0x24] sm:$0xff]
    %v557 = vld [vmem:[#allocation1 + $0x2d] sm:$0xff]
    %v558 = vld [vmem:[#allocation1 + $0x36] sm:$0xff]
    %v559 = vld [vmem:[#allocation1 + $0x3f] sm:$0xff]
    %561 = vst [vmem:[#allocation1] ss:$9 sm:$0xff] %v85
    %v562 = vld [vmem:[#allocation1] sm:$0xff]
    %v563 = vld [vmem:[#allocation1 + $0x9] sm:$0xff]
    %v564 = vld [vmem:[#allocation1 + $0x12] sm:$0xff]
    %v565 = vld [vmem:[#allocation1 + $0x1b] sm:$0xff]
    %v566 = vld [vmem:[#allocation1 + $0x24] sm:$0xff]
    %v567 = vld [vmem:[#allocation1 + $0x2d] sm:$0xff]
    %v568 = vld [vmem:[#allocation1 + $0x36] sm:$0xff]
    %v569 = vld [vmem:[#allocation1 + $0x3f] sm:$0xff]
    %571 = vst [vmem:[#allocation1] ss:$9 sm:$0xff] %v86
    %v572 = vld [vmem:[#allocation1] sm:$0xff]
    %v573 = vld [vmem:[#allocation1 + $0x9] sm:$0xff]
    %v574 = vld [vmem:[#allocation1 + $0x12] sm:$0xff]
    %v575 = vld [vmem:[#allocation1 + $0x1b] sm:$0xff]
    %v576 = vld [vmem:[#allocation1 + $0x24] sm:$0xff]
    %v577 = vld [vmem:[#allocation1 + $0x2d] sm:$0xff]
    %v578 = vld [vmem:[#allocation1 + $0x36] sm:$0xff]
    %v579 = vld [vmem:[#allocation1 + $0x3f] sm:$0xff]
    %581 = vst [vmem:[#allocation1] ss:$9 sm:$0xff] %v87
    %v582 = vld [vmem:[#allocation1] sm:$0xff]
    %v583 = vld [vmem:[#allocation1 + $0x9] sm:$0xff]
    %v584 = vld [vmem:[#allocation1 + $0x12] sm:$0xff]
    %v585 = vld [vmem:[#allocation1 + $0x1b] sm:$0xff]
    %v586 = vld [vmem:[#allocation1 + $0x24] sm:$0xff]
    %v587 = vld [vmem:[#allocation1 + $0x2d] sm:$0xff]
    %v588 = vld [vmem:[#allocation1 + $0x36] sm:$0xff]
    %v589 = vld [vmem:[#allocation1 + $0x3f] sm:$0xff]
    %591 = vst [vmem:[#allocation1] ss:$9 sm:$0xff] %v88
    %v592 = vld [vmem:[#allocation1] sm:$0xff]
    %v593 = vld [vmem:[#allocation1 + $0x9] sm:$0xff]
    %v594 = vld [vmem:[#allocation1 + $0x12] sm:$0xff]
    %v595 = vld [vmem:[#allocation1 + $0x1b] sm:$0xff]
    %v596 = vld [vmem:[#allocation1 + $0x24] sm:$0xff]
    %v597 = vld [vmem:[#allocation1 + $0x2d] sm:$0xff]
    %v598 = vld [vmem:[#allocation1 + $0x36] sm:$0xff]
    %v599 = vld [vmem:[#allocation1 + $0x3f] sm:$0xff]
    %601 = vst [vmem:[#allocation1] ss:$9 sm:$0xff] %v89
    %v602 = vld [vmem:[#allocation1] sm:$0xff]
    %v603 = vld [vmem:[#allocation1 + $0x9] sm:$0xff]
    %v604 = vld [vmem:[#allocation1 + $0x12] sm:$0xff]
    %v605 = vld [vmem:[#allocation1 + $0x1b] sm:$0xff]
    %v606 = vld [vmem:[#allocation1 + $0x24] sm:$0xff]
    %v607 = vld [vmem:[#allocation1 + $0x2d] sm:$0xff]
    %v608 = vld [vmem:[#allocation1 + $0x36] sm:$0xff]
    %v609 = vld [vmem:[#allocation1 + $0x3f] sm:$0xff]
    %611 = vst [vmem:[#allocation1] ss:$9 sm:$0xff] %v90
    %v612 = vld [vmem:[#allocation1] sm:$0xff]
    %v613 = vld [vmem:[#allocation1 + $0x9] sm:$0xff]
    %v614 = vld [vmem:[#allocation1 + $0x12] sm:$0xff]
    %v615 = vld [vmem:[#allocation1 + $0x1b] sm:$0xff]
    %v616 = vld [vmem:[#allocation1 + $0x24] sm:$0xff]
    %v617 = vld [vmem:[#allocation1 + $0x2d] sm:$0xff]
    %v618 = vld [vmem:[#allocation1 + $0x36] sm:$0xff]
    %v619 = vld [vmem:[#allocation1 + $0x3f] sm:$0xff]
    %621 = vst [vmem:[#allocation1] ss:$9 sm:$0xff] %v91
    %v622 = vld [vmem:[#allocation1] sm:$0xff]
    %v623 = vld [vmem:[#allocation1 + $0x9] sm:$0xff]
    %v624 = vld [vmem:[#allocation1 + $0x12] sm:$0xff]
    %v625 = vld [vmem:[#allocation1 + $0x1b] sm:$0xff]
    %v626 = vld [vmem:[#allocation1 + $0x24] sm:$0xff]
    %v627 = vld [vmem:[#allocation1 + $0x2d] sm:$0xff]
    %v628 = vld [vmem:[#allocation1 + $0x36] sm:$0xff]
    %v629 = vld [vmem:[#allocation1 + $0x3f] sm:$0xff]
    %631 = vst [vmem:[#allocation1] ss:$9 sm:$0xff] %v92
    %v632 = vld [vmem:[#allocation1] sm:$0xff]
    %v633 = vld [vmem:[#allocation1 + $0x9] sm:$0xff]
    %v634 = vld [vmem:[#allocation1 + $0x12] sm:$0xff]
    %v635 = vld [vmem:[#allocation1 + $0x1b] sm:$0xff]
    %v636 = vld [vmem:[#allocation1 + $0x24] sm:$0xff]
    %v637 = vld [vmem:[#allocation1 + $0x2d] sm:$0xff]
    %v638 = vld [vmem:[#allocation1 + $0x36] sm:$0xff]
    %v639 = vld [vmem:[#allocation1 + $0x3f] sm:$0xff]
    %641 = vst [vmem:[#allocation1] ss:$9 sm:$0xff] %v93
    %v642 = vld [vmem:[#allocation1] sm:$0xff]
    %v643 = vld [vmem:[#allocation1 + $0x9] sm:$0xff]
    %v644 = vld [vmem:[#allocation1 + $0x12] sm:$0xff]
    %v645 = vld [vmem:[#allocation1 + $0x1b] sm:$0xff]
    %v646 = vld [vmem:[#allocation1 + $0x24] sm:$0xff]
    %v647 = vld [vmem:[#allocation1 + $0x2d] sm:$0xff]
    %v648 = vld [vmem:[#allocation1 + $0x36] sm:$0xff]
    %v649 = vld [vmem:[#allocation1 + $0x3f] sm:$0xff]
    %651 = vst [vmem:[#allocation1] ss:$9 sm:$0xff] %v94
    %v652 = vld [vmem:[#allocation1] sm:$0xff]
    %v653 = vld [vmem:[#allocation1 + $0x9] sm:$0xff]
    %v654 = vld [vmem:[#allocation1 + $0x12] sm:$0xff]
    %v655 = vld [vmem:[#allocation1 + $0x1b] sm:$0xff]
    %v656 = vld [vmem:[#allocation1 + $0x24] sm:$0xff]
    %v657 = vld [vmem:[#allocation1 + $0x2d] sm:$0xff]
    %v658 = vld [vmem:[#allocation1 + $0x36] sm:$0xff]
    %v659 = vld [vmem:[#allocation1 + $0x3f] sm:$0xff]
    %661 = vst [vmem:[#allocation1] ss:$9 sm:$0xff] %v95
    %v662 = vld [vmem:[#allocation1] sm:$0xff]
    %v663 = vld [vmem:[#allocation1 + $0x9] sm:$0xff]
    %v664 = vld [vmem:[#allocation1 + $0x12] sm:$0xff]
    %v665 = vld [vmem:[#allocation1 + $0x1b] sm:$0xff]
    %v666 = vld [vmem:[#allocation1 + $0x24] sm:$0xff]
    %v667 = vld [vmem:[#allocation1 + $0x2d] sm:$0xff]
    %v668 = vld [vmem:[#allocation1 + $0x36] sm:$0xff]
    %v669 = vld [vmem:[#allocation1 + $0x3f] sm:$0xff]
    %671 = vst [vmem:[#allocation1] ss:$9 sm:$0xff] %v96
    %v672 = vld [vmem:[#allocation1] sm:$0xff]
    %v673 = vld [vmem:[#allocation1 + $0x9] sm:$0xff]
    %v674 = vld [vmem:[#allocation1 + $0x12] sm:$0xff]
    %v675 = vld [vmem:[#allocation1 + $0x1b] sm:$0xff]
    %v676 = vld [vmem:[#allocation1 + $0x24] sm:$0xff]
    %v677 = vld [vmem:[#allocation1 + $0x2d] sm:$0xff]
    %v678 = vld [vmem:[#allocation1 + $0x36] sm:$0xff]
    %v679 = vld [vmem:[#allocation1 + $0x3f] sm:$0xff]
    %681 = vst [vmem:[#allocation1] ss:$9 sm:$0xff] %v97
    %v682 = vld [vmem:[#allocation1] sm:$0xff]
    %v683 = vld [vmem:[#allocation1 + $0x9] sm:$0xff]
    %v684 = vld [vmem:[#allocation1 + $0x12] sm:$0xff]
    %v685 = vld [vmem:[#allocation1 + $0x1b] sm:$0xff]
    %v686 = vld [vmem:[#allocation1 + $0x24] sm:$0xff]
    %v687 = vld [vmem:[#allocation1 + $0x2d] sm:$0xff]
    %v688 = vld [vmem:[#allocation1 + $0x36] sm:$0xff]
    %v689 = vld [vmem:[#allocation1 + $0x3f] sm:$0xff]
    %691 = vst [vmem:[#allocation1] ss:$9 sm:$0xff] %v98
    %v692 = vld [vmem:[#allocation1] sm:$0xff]
    %v693 = vld [vmem:[#allocation1 + $0x9] sm:$0xff]
    %v694 = vld [vmem:[#allocation1 + $0x12] sm:$0xff]
    %v695 = vld [vmem:[#allocation1 + $0x1b] sm:$0xff]
    %v696 = vld [vmem:[#allocation1 + $0x24] sm:$0xff]
    %v697 = vld [vmem:[#allocation1 + $0x2d] sm:$0xff]
    %v698 = vld [vmem:[#allocation1 + $0x36] sm:$0xff]
    %v699 = vld [vmem:[#allocation1 + $0x3f] sm:$0xff]
    %701 = vst [vmem:[#allocation1] ss:$9 sm:$0xff] %v99
    %v702 = vld [vmem:[#allocation1] sm:$0xff]
    %v703 = vld [vmem:[#allocation1 + $0x9] sm:$0xff]
    %v704 = vld [vmem:[#allocation1 + $0x12] sm:$0xff]
    %v705 = vld [vmem:[#allocation1 + $0x1b] sm:$0xff]
    %v706 = vld [vmem:[#allocation1 + $0x24] sm:$0xff]
    %v707 = vld [vmem:[#allocation1 + $0x2d] sm:$0xff]
    %v708 = vld [vmem:[#allocation1 + $0x36] sm:$0xff]
    %v709 = vld [vmem:[#allocation1 + $0x3f] sm:$0xff]
    %711 = vst [vmem:[#allocation1] ss:$9 sm:$0xff] %v100
    %v712 = vld [vmem:[#allocation1] sm:$0xff]
    %v713 = vld [vmem:[#allocation1 + $0x9] sm:$0xff]
    %v714 = vld [vmem:[#allocation1 + $0x12] sm:$0xff]
    %v715 = vld [vmem:[#allocation1 + $0x1b] sm:$0xff]
    %v716 = vld [vmem:[#allocation1 + $0x24] sm:$0xff]
    %v717 = vld [vmem:[#allocation1 + $0x2d] sm:$0xff]
    %v718 = vld [vmem:[#allocation1 + $0x36] sm:$0xff]
    %v719 = vld [vmem:[#allocation1 + $0x3f] sm:$0xff]
    %721 = vst [vmem:[#allocation1] ss:$9 sm:$0xff] %v101
    %v722 = vld [vmem:[#allocation1] sm:$0xff]
    %v723 = vld [vmem:[#allocation1 + $0x9] sm:$0xff]
    %v724 = vld [vmem:[#allocation1 + $0x12] sm:$0xff]
    %v725 = vld [vmem:[#allocation1 + $0x1b] sm:$0xff]
    %v726 = vld [vmem:[#allocation1 + $0x24] sm:$0xff]
    %v727 = vld [vmem:[#allocation1 + $0x2d] sm:$0xff]
    %v728 = vld [vmem:[#allocation1 + $0x36] sm:$0xff]
    %v729 = vld [vmem:[#allocation1 + $0x3f] sm:$0xff]
    %731 = vst [vmem:[#allocation1] ss:$9 sm:$0xff] %v102
    %v732 = vld [vmem:[#allocation1] sm:$0xff]
    %v733 = vld [vmem:[#allocation1 + $0x9] sm:$0xff]
    %v734 = vld [vmem:[#allocation1 + $0x12] sm:$0xff]
    %v735 = vld [vmem:[#allocation1 + $0x1b] sm:$0xff]
    %v736 = vld [vmem:[#allocation1 + $0x24] sm:$0xff]
    %v737 = vld [vmem:[#allocation1 + $0x2d] sm:$0xff]
    %v738 = vld [vmem:[#allocation1 + $0x36] sm:$0xff]
    %v739 = vld [vmem:[#allocation1 + $0x3f] sm:$0xff]
    %741 = vst [vmem:[#allocation1] ss:$9 sm:$0xff] %v103
    %v742 = vld [vmem:[#allocation1] sm:$0xff]
    %v743 = vld [vmem:[#allocation1 + $0x9] sm:$0xff]
    %v744 = vld [vmem:[#allocation1 + $0x12] sm:$0xff]
    %v745 = vld [vmem:[#allocation1 + $0x1b] sm:$0xff]
    %v1334 = vunpack.c.l.b16 %v104
    %v1335 = vunpack.c.h.b16 %v104
    %v1336 = vunpack.c.l.b16 %v105
    %v1337 = vunpack.c.h.b16 %v105
    %v1338 = vunpack.c.l.b16 %v106
    %v1339 = vunpack.c.h.b16 %v106
    %v1340 = vunpack.c.l.b16 %v107
    %v1341 = vunpack.c.h.b16 %v107
    %v1342 = vunpack.c.l.b16 %v108
    %v1343 = vunpack.c.h.b16 %v108
    %v1344 = vunpack.c.l.b16 %v109
    %v1345 = vunpack.c.h.b16 %v109
    %v1346 = vunpack.c.l.b16 %v110
    %v1347 = vunpack.c.h.b16 %v110
    %v1348 = vunpack.c.l.b16 %v111
    %v1349 = vunpack.c.h.b16 %v111
    %v1350 = vunpack.c.l.b16 %v112
    %v1351 = vunpack.c.h.b16 %v112
    %v1352 = vunpack.c.l.b16 %v113
    %v1353 = vunpack.c.h.b16 %v113
    %v1354 = vunpack.c.l.b16 %v114
    %v1355 = vunpack.c.h.b16 %v114
    %v1356 = vunpack.c.l.b16 %v115
    %v1357 = vunpack.c.h.b16 %v115
    %v1358 = vunpack.c.l.b16 %v116
    %v1359 = vunpack.c.h.b16 %v116
    %v1360 = vunpack.c.l.b16 %v117
    %v1361 = vunpack.c.h.b16 %v117
    %v1362 = vunpack.c.l.b16 %v118
    %v1363 = vunpack.c.h.b16 %v118
    %v1364 = vunpack.c.l.b16 %v119
    %v1365 = vunpack.c.h.b16 %v119
    %v1366 = vunpack.c.l.b16 %v120
    %v1367 = vunpack.c.h.b16 %v120
    %v1368 = vunpack.c.l.b16 %v121
    %v1369 = vunpack.c.h.b16 %v121
    %v1370 = vunpack.c.l.b16 %v122
    %v1371 = vunpack.c.h.b16 %v122
    %v1372 = vunpack.c.l.b16 %v123
    %v1373 = vunpack.c.h.b16 %v123
    %v1374 = vunpack.c.l.b16 %v124
    %v1375 = vunpack.c.h.b16 %v124
    %v1376 = vunpack.c.l.b16 %v125
    %v1377 = vunpack.c.h.b16 %v125
    %v1378 = vunpack.c.l.b16 %v126
    %v1379 = vunpack.c.h.b16 %v126
    %v1380 = vunpack.c.l.b16 %v127
    %v1381 = vunpack.c.h.b16 %v127
    %v1382 = vunpack.c.l.b16 %v128
    %v1383 = vunpack.c.h.b16 %v128
    %v1384 = vunpack.c.l.b16 %v129
    %v1385 = vunpack.c.h.b16 %v129
    %v1386 = vunpack.c.l.b16 %v130
    %v1387 = vunpack.c.h.b16 %v130
    %v1388 = vunpack.c.l.b16 %v131
    %v1389 = vunpack.c.h.b16 %v131
    %v1390 = vunpack.c.l.b16 %v132
    %v1391 = vunpack.c.h.b16 %v132
    %v1392 = vunpack.c.l.b16 %v133
    %v1393 = vunpack.c.h.b16 %v133
    %v1394 = vunpack.c.l.b16 %v134
    %v1395 = vunpack.c.h.b16 %v134
    %v1396 = vunpack.c.l.b16 %v135
    %v1397 = vunpack.c.h.b16 %v135
    %v1398 = vunpack.c.l.b16 %v136
    %v1399 = vunpack.c.h.b16 %v136
    %v1400 = vunpack.c.l.b16 %v137
    %v1401 = vunpack.c.h.b16 %v137
    %v1402 = vunpack.c.l.b16 %v138
    %v1403 = vunpack.c.h.b16 %v138
    %v1404 = vunpack.c.l.b16 %v139
    %v1405 = vunpack.c.h.b16 %v139
    %v1406 = vunpack.c.l.b16 %v140
    %v1407 = vunpack.c.h.b16 %v140
    %v1408 = vunpack.c.l.b16 %v141
    %v1409 = vunpack.c.h.b16 %v141
    %v1410 = vunpack.c.l.b16 %v142
    %v1411 = vunpack.c.h.b16 %v142
    %v1412 = vunpack.c.l.b16 %v143
    %v1413 = vunpack.c.h.b16 %v143
    %v1414 = vunpack.c.l.b16 %v144
    %v1415 = vunpack.c.h.b16 %v144
    %v1416 = vunpack.c.l.b16 %v145
    %v1417 = vunpack.c.h.b16 %v145
    %v1418 = vunpack.c.l.b16 %v146
    %v1419 = vunpack.c.h.b16 %v146
    %v1420 = vunpack.c.l.b16 %v147
    %v1421 = vunpack.c.h.b16 %v147
    %v1422 = vunpack.c.l.b16 %v148
    %v1423 = vunpack.c.h.b16 %v148
    %v1424 = vunpack.c.l.b16 %v149
    %v1425 = vunpack.c.h.b16 %v149
    %v1426 = vunpack.c.l.b16 %v150
    %v1427 = vunpack.c.h.b16 %v150
    %v1428 = vunpack.c.l.b16 %v151
    %v1429 = vunpack.c.h.b16 %v151
    %v1430 = vunpack.c.l.b16 %v152
    %v1431 = vunpack.c.h.b16 %v152
    %v1432 = vunpack.c.l.b16 %v153
    %v1433 = vunpack.c.h.b16 %v153
    %v1434 = vunpack.c.l.b16 %v154
    %v1435 = vunpack.c.h.b16 %v154
    %v1436 = vunpack.c.l.b16 %v155
    %v1437 = vunpack.c.h.b16 %v155
    %v1438 = vunpack.c.l.b16 %v156
    %v1439 = vunpack.c.h.b16 %v156
    %v1440 = vunpack.c.l.b16 %v157
    %v1441 = vunpack.c.h.b16 %v157
    %v1442 = vunpack.c.l.b16 %v158
    %v1443 = vunpack.c.h.b16 %v158
    %v1444 = vunpack.c.l.b16 %v159
    %v1445 = vunpack.c.h.b16 %v159
    %v1446 = vunpack.c.l.b16 %v160
    %v1447 = vunpack.c.h.b16 %v160
    %v1448 = vunpack.c.l.b16 %v161
    %v1449 = vunpack.c.h.b16 %v161
    %v1450 = vunpack.c.l.b16 %v162
    %v1451 = vunpack.c.h.b16 %v162
    %v1452 = vunpack.c.l.b16 %v163
    %v1453 = vunpack.c.h.b16 %v163
    %v1454 = vunpack.c.l.b16 %v164
    %v1455 = vunpack.c.h.b16 %v164
    %v1456 = vunpack.c.l.b16 %v165
    %v1457 = vunpack.c.h.b16 %v165
    %v1458 = vunpack.c.l.b16 %v166
    %v1459 = vunpack.c.h.b16 %v166
    %v1460 = vunpack.c.l.b16 %v167
    %v1461 = vunpack.c.h.b16 %v167
    %v1462 = vunpack.c.l.b16 %v168
    %v1463 = vunpack.c.h.b16 %v168
    %v1464 = vunpack.c.l.b16 %v169
    %v1465 = vunpack.c.h.b16 %v169
    %v1466 = vunpack.c.l.b16 %v170
    %v1467 = vunpack.c.h.b16 %v170
    %v1468 = vunpack.c.l.b16 %v171
    %v1469 = vunpack.c.h.b16 %v171
    %v1470 = vunpack.c.l.b16 %v172
    %v1471 = vunpack.c.h.b16 %v172
    %v1472 = vunpack.c.l.b16 %v173
    %v1473 = vunpack.c.h.b16 %v173
    %v1474 = vunpack.c.l.b16 %v174
    %v1475 = vunpack.c.h.b16 %v174
    %v1476 = vunpack.c.l.b16 %v175
    %v1477 = vunpack.c.h.b16 %v175
    %v1478 = vunpack.c.l.b16 %v176
    %v1479 = vunpack.c.h.b16 %v176
    %v1480 = vunpack.c.l.b16 %v177
    %v1481 = vunpack.c.h.b16 %v177
    %v1482 = vunpack.c.l.b16 %v178
    %v1483 = vunpack.c.h.b16 %v178
    %v1484 = vunpack.c.l.b16 %v179
    %v1485 = vunpack.c.h.b16 %v179
    %v1486 = vunpack.c.l.b16 %v180
    %v1487 = vunpack.c.h.b16 %v180
    %v1488 = vunpack.c.l.b16 %v181
    %v1489 = vunpack.c.h.b16 %v181
    %v1490 = vunpack.c.l.b16 %v182
    %v1491 = vunpack.c.h.b16 %v182
    %v1492 = vunpack.c.l.b16 %v183
    %v1493 = vunpack.c.h.b16 %v183
    %v1494 = vunpack.c.l.b16 %v184
    %v1495 = vunpack.c.h.b16 %v184
    %v1496 = vunpack.c.l.b16 %v185
    %v1497 = vunpack.c.h.b16 %v185
    %v1498 = vunpack.c.l.b16 %v186
    %v1499 = vunpack.c.h.b16 %v186
    %v1500 = vunpack.c.l.b16 %v187
    %v1501 = vunpack.c.h.b16 %v187
    %v1502 = vunpack.c.l.b16 %v188
    %v1503 = vunpack.c.h.b16 %v188
    %v1504 = vunpack.c.l.b16 %v189
    %v1505 = vunpack.c.h.b16 %v189
    %v1506 = vunpack.c.l.b16 %v190
    %v1507 = vunpack.c.h.b16 %v190
    %v1508 = vunpack.c.l.b16 %v191
    %v1509 = vunpack.c.h.b16 %v191
    %v1510 = vunpack.c.l.b16 %v192
    %v1511 = vunpack.c.h.b16 %v192
    %v1512 = vunpack.c.l.b16 %v193
    %v1513 = vunpack.c.h.b16 %v193
    %v1514 = vunpack.c.l.b16 %v194
    %v1515 = vunpack.c.h.b16 %v194
    %v1516 = vunpack.c.l.b16 %v195
    %v1517 = vunpack.c.h.b16 %v195
    %v1518 = vunpack.c.l.b16 %v196
    %v1519 = vunpack.c.h.b16 %v196
    %v1520 = vunpack.c.l.b16 %v197
    %v1521 = vunpack.c.h.b16 %v197
    %v1522 = vunpack.c.l.b16 %v198
    %v1523 = vunpack.c.h.b16 %v198
    %v1524 = vunpack.c.l.b16 %v199
    %v1525 = vunpack.c.h.b16 %v199
    %v1526 = vunpack.c.l.b16 %v200
    %v1527 = vunpack.c.h.b16 %v200
    %v1528 = vunpack.c.l.b16 %v201
    %v1529 = vunpack.c.h.b16 %v201
    %v1530 = vunpack.c.l.b16 %v202
    %v1531 = vunpack.c.h.b16 %v202
    %v1532 = vunpack.c.l.b16 %v203
    %v1533 = vunpack.c.h.b16 %v203
    %v1534 = vunpack.c.l.b16 %v204
    %v1535 = vunpack.c.h.b16 %v204
    %v1536 = vunpack.c.l.b16 %v205
    %v1537 = vunpack.c.h.b16 %v205
    %v1538 = vunpack.c.l.b16 %v206
    %v1539 = vunpack.c.h.b16 %v206
    %v1540 = vunpack.c.l.b16 %v207
    %v1541 = vunpack.c.h.b16 %v207
    %v1542 = vunpack.c.l.b16 %v208
    %v1543 = vunpack.c.h.b16 %v208
    %v1544 = vunpack.c.l.b16 %v209
    %v1545 = vunpack.c.h.b16 %v209
    %v1546 = vunpack.c.l.b16 %v210
    %v1547 = vunpack.c.h.b16 %v210
    %v1548 = vunpack.c.l.b16 %v211
    %v1549 = vunpack.c.h.b16 %v211
    %v1550 = vunpack.c.l.b16 %v212
    %v1551 = vunpack.c.h.b16 %v212
    %v1552 = vunpack.c.l.b16 %v213
    %v1553 = vunpack.c.h.b16 %v213
    %v1554 = vunpack.c.l.b16 %v214
    %v1555 = vunpack.c.h.b16 %v214
    %v1556 = vunpack.c.l.b16 %v215
    %v1557 = vunpack.c.h.b16 %v215
    %v1558 = vunpack.c.l.b16 %v216
    %v1559 = vunpack.c.h.b16 %v216
    %v1560 = vunpack.c.l.b16 %v217
    %v1561 = vunpack.c.h.b16 %v217
    %v1562 = vunpack.c.l.b16 %v218
    %v1563 = vunpack.c.h.b16 %v218
    %v1564 = vunpack.c.l.b16 %v219
    %v1565 = vunpack.c.h.b16 %v219
    %v1566 = vunpack.c.l.b16 %v220
    %v1567 = vunpack.c.h.b16 %v220
    %v1568 = vunpack.c.l.b16 %v221
    %v1569 = vunpack.c.h.b16 %v221
    %v1570 = vunpack.c.l.b16 %v222
    %v1571 = vunpack.c.h.b16 %v222
    %v1572 = vunpack.c.l.b16 %v223
    %v1573 = vunpack.c.h.b16 %v223
    %v1574 = vunpack.c.l.b16 %v224
    %v1575 = vunpack.c.h.b16 %v224
    %v1576 = vunpack.c.l.b16 %v225
    %v1577 = vunpack.c.h.b16 %v225
    %v1578 = vunpack.c.l.b16 %v226
    %v1579 = vunpack.c.h.b16 %v226
    %v1580 = vunpack.c.l.b16 %v227
    %v1581 = vunpack.c.h.b16 %v227
    %v1582 = vunpack.c.l.b16 %v228
    %v1583 = vunpack.c.h.b16 %v228
    %v1584 = vunpack.c.l.b16 %v229
    %v1585 = vunpack.c.h.b16 %v229
    %v1586 = vunpack.c.l.b16 %v230
    %v1587 = vunpack.c.h.b16 %v230
    %v1588 = vunpack.c.l.b16 %v231
    %v1589 = vunpack.c.h.b16 %v231
    %v1590 = vunpack.c.l.b16 %v232
    %v1591 = vunpack.c.h.b16 %v232
    %v1592 = vunpack.c.l.b16 %v233
    %v1593 = vunpack.c.h.b16 %v233
    %v1594 = vunpack.c.l.b16 %v234
    %v1595 = vunpack.c.h.b16 %v234
    %v1596 = vunpack.c.l.b16 %v235
    %v1597 = vunpack.c.h.b16 %v235
    %v1598 = vunpack.c.l.b16 %v236
    %v1599 = vunpack.c.h.b16 %v236
    %v1600 = vunpack.c.l.b16 %v237
    %v1601 = vunpack.c.h.b16 %v237
    %v1602 = vunpack.c.l.b16 %v238
    %v1603 = vunpack.c.h.b16 %v238
    %v1604 = vunpack.c.l.b16 %v239
    %v1605 = vunpack.c.h.b16 %v239
    %v1606 = vunpack.c.l.b16 %v240
    %v1607 = vunpack.c.h.b16 %v240
    %v1608 = vunpack.c.l.b16 %v241
    %v1609 = vunpack.c.h.b16 %v241
    %v1610 = vunpack.c.l.b16 %v242
    %v1611 = vunpack.c.h.b16 %v242
    %v1612 = vunpack.c.l.b16 %v243
    %v1613 = vunpack.c.h.b16 %v243
    %v1614 = vunpack.c.l.b16 %v244
    %v1615 = vunpack.c.h.b16 %v244
    %v1616 = vunpack.c.l.b16 %v245
    %v1617 = vunpack.c.h.b16 %v245
    %v1618 = vunpack.c.l.b16 %v246
    %v1619 = vunpack.c.h.b16 %v246
    %v1620 = vunpack.c.l.b16 %v247
    %v1621 = vunpack.c.h.b16 %v247
    %v1622 = vunpack.c.l.b16 %v248
    %v1623 = vunpack.c.h.b16 %v248
    %v1624 = vunpack.c.l.b16 %v249
    %v1625 = vunpack.c.h.b16 %v249
    %v1626 = vunpack.c.l.b16 %v250
    %v1627 = vunpack.c.h.b16 %v250
    %v1628 = vunpack.c.l.b16 %v251
    %v1629 = vunpack.c.h.b16 %v251
    %v1630 = vunpack.c.l.b16 %v252
    %v1631 = vunpack.c.h.b16 %v252
    %v1632 = vunpack.c.l.b16 %v253
    %v1633 = vunpack.c.h.b16 %v253
    %v1634 = vunpack.c.l.b16 %v254
    %v1635 = vunpack.c.h.b16 %v254
    %v1636 = vunpack.c.l.b16 %v255
    %v1637 = vunpack.c.h.b16 %v255
    %v1638 = vunpack.c.l.b16 %v256
    %v1639 = vunpack.c.h.b16 %v256
    %v1640 = vunpack.c.l.b16 %v257
    %v1641 = vunpack.c.h.b16 %v257
    %v1642 = vunpack.c.l.b16 %v258
    %v1643 = vunpack.c.h.b16 %v258
    %v1644 = vunpack.c.l.b16 %v259
    %v1645 = vunpack.c.h.b16 %v259
    %v1646 = vunpack.c.l.b16 %v260
    %v1647 = vunpack.c.h.b16 %v260
    %v1648 = vunpack.c.l.b16 %v261
    %v1649 = vunpack.c.h.b16 %v261
    %v1650 = vunpack.c.l.b16 %v262
    %v1651 = vunpack.c.h.b16 %v262
    %v1652 = vunpack.c.l.b16 %v263
    %v1653 = vunpack.c.h.b16 %v263
    %v1654 = vunpack.c.l.b16 %v264
    %v1655 = vunpack.c.h.b16 %v264
    %v1656 = vunpack.c.l.b16 %v265
    %v1657 = vunpack.c.h.b16 %v265
    %v1658 = vunpack.c.l.b16 %v266
    %v1659 = vunpack.c.h.b16 %v266
    %v1660 = vunpack.c.l.b16 %v267
    %v1661 = vunpack.c.h.b16 %v267
    %v1662 = vunpack.c.l.b16 %v268
    %v1663 = vunpack.c.h.b16 %v268
    %v1664 = vunpack.c.l.b16 %v269
    %v1665 = vunpack.c.h.b16 %v269
    %v1666 = vunpack.c.l.b16 %v270
    %v1667 = vunpack.c.h.b16 %v270
    %v1668 = vunpack.c.l.b16 %v271
    %v1669 = vunpack.c.h.b16 %v271
    %v1670 = vunpack.c.l.b16 %v272
    %v1671 = vunpack.c.h.b16 %v272
    %v1672 = vunpack.c.l.b16 %v273
    %v1673 = vunpack.c.h.b16 %v273
    %v1674 = vunpack.c.l.b16 %v274
    %v1675 = vunpack.c.h.b16 %v274
    %v1676 = vunpack.c.l.b16 %v275
    %v1677 = vunpack.c.h.b16 %v275
    %v1678 = vunpack.c.l.b16 %v276
    %v1679 = vunpack.c.h.b16 %v276
    %v1680 = vunpack.c.l.b16 %v277
    %v1681 = vunpack.c.h.b16 %v277
    %v1682 = vunpack.c.l.b16 %v278
    %v1683 = vunpack.c.h.b16 %v278
    %v1684 = vunpack.c.l.b16 %v279
    %v1685 = vunpack.c.h.b16 %v279
    %v1686 = vunpack.c.l.b16 %v280
    %v1687 = vunpack.c.h.b16 %v280
    %v1688 = vunpack.c.l.b16 %v281
    %v1689 = vunpack.c.h.b16 %v281
    %v1690 = vunpack.c.l.b16 %v282
    %v1691 = vunpack.c.h.b16 %v282
    %v1692 = vunpack.c.l.b16 %v283
    %v1693 = vunpack.c.h.b16 %v283
    %v1694 = vunpack.c.l.b16 %v284
    %v1695 = vunpack.c.h.b16 %v284
    %v1696 = vunpack.c.l.b16 %v285
    %v1697 = vunpack.c.h.b16 %v285
    %v1698 = vunpack.c.l.b16 %v286
    %v1699 = vunpack.c.h.b16 %v286
    %v1700 = vunpack.c.l.b16 %v287
    %v1701 = vunpack.c.h.b16 %v287
    %v1702 = vunpack.c.l.b16 %v288
    %v1703 = vunpack.c.h.b16 %v288
    %v1704 = vunpack.c.l.b16 %v289
    %v1705 = vunpack.c.h.b16 %v289
    %v1706 = vunpack.c.l.b16 %v290
    %v1707 = vunpack.c.h.b16 %v290
    %v1708 = vunpack.c.l.b16 %v291
    %v1709 = vunpack.c.h.b16 %v291
    %v1710 = vunpack.c.l.b16 %v292
    %v1711 = vunpack.c.h.b16 %v292
    %v1712 = vunpack.c.l.b16 %v293
    %v1713 = vunpack.c.h.b16 %v293
    %v1714 = vunpack.c.l.b16 %v294
    %v1715 = vunpack.c.h.b16 %v294
    %v1716 = vunpack.c.l.b16 %v295
    %v1717 = vunpack.c.h.b16 %v295
    %v1718 = vunpack.c.l.b16 %v296
    %v1719 = vunpack.c.h.b16 %v296
    %v1720 = vunpack.c.l.b16 %v297
    %v1721 = vunpack.c.h.b16 %v297
    %v1722 = vunpack.c.l.b16 %v298
    %v1723 = vunpack.c.h.b16 %v298
    %v1724 = vunpack.c.l.b16 %v299
    %v1725 = vunpack.c.h.b16 %v299
    %v1726 = vunpack.c.l.b16 %v300
    %v1727 = vunpack.c.h.b16 %v300
    %v1728 = vunpack.c.l.b16 %v301
    %v1729 = vunpack.c.h.b16 %v301
    %v1730 = vunpack.c.l.b16 %v302
    %v1731 = vunpack.c.h.b16 %v302
    %v1732 = vunpack.c.l.b16 %v303
    %v1733 = vunpack.c.h.b16 %v303
    %v1734 = vunpack.c.l.b16 %v304
    %v1735 = vunpack.c.h.b16 %v304
    %v1736 = vunpack.c.l.b16 %v305
    %v1737 = vunpack.c.h.b16 %v305
    %v1738 = vunpack.c.l.b16 %v306
    %v1739 = vunpack.c.h.b16 %v306
    %v1740 = vunpack.c.l.b16 %v307
    %v1741 = vunpack.c.h.b16 %v307
    %v1742 = vunpack.c.l.b16 %v308
    %v1743 = vunpack.c.h.b16 %v308
    %v1744 = vunpack.c.l.b16 %v309
    %v1745 = vunpack.c.h.b16 %v309
    %v1746 = vunpack.c.l.b16 %v310
    %v1747 = vunpack.c.h.b16 %v310
    %v1748 = vunpack.c.l.b16 %v311
    %v1749 = vunpack.c.h.b16 %v311
    %v1750 = vunpack.c.l.b16 %v312
    %v1751 = vunpack.c.h.b16 %v312
    %v1752 = vunpack.c.l.b16 %v313
    %v1753 = vunpack.c.h.b16 %v313
    %v1754 = vunpack.c.l.b16 %v314
    %v1755 = vunpack.c.h.b16 %v314
    %v1756 = vunpack.c.l.b16 %v315
    %v1757 = vunpack.c.h.b16 %v315
    %v1758 = vunpack.c.l.b16 %v316
    %v1759 = vunpack.c.h.b16 %v316
    %v1760 = vunpack.c.l.b16 %v317
    %v1761 = vunpack.c.h.b16 %v317
    %v1762 = vunpack.c.l.b16 %v318
    %v1763 = vunpack.c.h.b16 %v318
    %v1764 = vunpack.c.l.b16 %v319
    %v1765 = vunpack.c.h.b16 %v319
    %v1766 = vunpack.c.l.b16 %v320
    %v1767 = vunpack.c.h.b16 %v320
    %v1768 = vunpack.c.l.b16 %v321
    %v1769 = vunpack.c.h.b16 %v321
    %v1770 = vunpack.c.l.b16 %v322
    %v1771 = vunpack.c.h.b16 %v322
    %v1772 = vunpack.c.l.b16 %v323
    %v1773 = vunpack.c.h.b16 %v323
    %v1774 = vunpack.c.l.b16 %v324
    %v1775 = vunpack.c.h.b16 %v324
    %v1776 = vunpack.c.l.b16 %v325
    %v1777 = vunpack.c.h.b16 %v325
    %v1778 = vunpack.c.l.b16 %v326
    %v1779 = vunpack.c.h.b16 %v326
    %v1780 = vunpack.c.l.b16 %v327
    %v1781 = vunpack.c.h.b16 %v327
    %v1782 = vunpack.c.l.b16 %v328
    %v1783 = vunpack.c.h.b16 %v328
    %v1784 = vunpack.c.l.b16 %v329
    %v1785 = vunpack.c.h.b16 %v329
    %v1786 = vunpack.c.l.b16 %v330
    %v1787 = vunpack.c.h.b16 %v330
    %v1788 = vunpack.c.l.b16 %v331
    %v1789 = vunpack.c.h.b16 %v331
    %v1790 = vunpack.c.l.b16 %v332
    %v1791 = vunpack.c.h.b16 %v332
    %v1792 = vunpack.c.l.b16 %v333
    %v1793 = vunpack.c.h.b16 %v333
    %v1794 = vunpack.c.l.b16 %v334
    %v1795 = vunpack.c.h.b16 %v334
    %v1796 = vunpack.c.l.b16 %v335
    %v1797 = vunpack.c.h.b16 %v335
    %v1798 = vunpack.c.l.b16 %v336
    %v1799 = vunpack.c.h.b16 %v336
    %v1800 = vunpack.c.l.b16 %v337
    %v1801 = vunpack.c.h.b16 %v337
    %v1802 = vunpack.c.l.b16 %v338
    %v1803 = vunpack.c.h.b16 %v338
    %v1804 = vunpack.c.l.b16 %v339
    %v1805 = vunpack.c.h.b16 %v339
    %v1806 = vunpack.c.l.b16 %v340
    %v1807 = vunpack.c.h.b16 %v340
    %v1808 = vunpack.c.l.b16 %v341
    %v1809 = vunpack.c.h.b16 %v341
    %v1810 = vunpack.c.l.b16 %v342
    %v1811 = vunpack.c.h.b16 %v342
    %v1812 = vunpack.c.l.b16 %v343
    %v1813 = vunpack.c.h.b16 %v343
    %v1814 = vunpack.c.l.b16 %v344
    %v1815 = vunpack.c.h.b16 %v344
    %v1816 = vunpack.c.l.b16 %v345
    %v1817 = vunpack.c.h.b16 %v345
    %v1818 = vunpack.c.l.b16 %v346
    %v1819 = vunpack.c.h.b16 %v346
    %v1820 = vunpack.c.l.b16 %v347
    %v1821 = vunpack.c.h.b16 %v347
    %v1822 = vunpack.c.l.b16 %v348
    %v1823 = vunpack.c.h.b16 %v348
    %v1824 = vunpack.c.l.b16 %v349
    %v1825 = vunpack.c.h.b16 %v349
    %v1826 = vunpack.c.l.b16 %v350
    %v1827 = vunpack.c.h.b16 %v350
    %v1828 = vunpack.c.l.b16 %v351
    %v1829 = vunpack.c.h.b16 %v351
    %v1830 = vunpack.c.l.b16 %v352
    %v1831 = vunpack.c.h.b16 %v352
    %v1832 = vunpack.c.l.b16 %v353
    %v1833 = vunpack.c.h.b16 %v353
    %v1834 = vunpack.c.l.b16 %v354
    %v1835 = vunpack.c.h.b16 %v354
    %v1836 = vunpack.c.l.b16 %v355
    %v1837 = vunpack.c.h.b16 %v355
    %v1838 = vunpack.c.l.b16 %v356
    %v1839 = vunpack.c.h.b16 %v356
    %v1840 = vunpack.c.l.b16 %v357
    %v1841 = vunpack.c.h.b16 %v357
    %v1842 = vunpack.c.l.b16 %v358
    %v1843 = vunpack.c.h.b16 %v358
    %v1844 = vunpack.c.l.b16 %v359
    %v1845 = vunpack.c.h.b16 %v359
    %v1846 = vunpack.c.l.b16 %v360
    %v1847 = vunpack.c.h.b16 %v360
    %v1848 = vunpack.c.l.b16 %v361
    %v1849 = vunpack.c.h.b16 %v361
    %v1850 = vunpack.c.l.b16 %v362
    %v1851 = vunpack.c.h.b16 %v362
    %v1852 = vunpack.c.l.b16 %v363
    %v1853 = vunpack.c.h.b16 %v363
    %v1854 = vunpack.c.l.b16 %v364
    %v1855 = vunpack.c.h.b16 %v364
    %v1856 = vunpack.c.l.b16 %v365
    %v1857 = vunpack.c.h.b16 %v365
    %v1858 = vunpack.c.l.b16 %v366
    %v1859 = vunpack.c.h.b16 %v366
    %v1860 = vunpack.c.l.b16 %v367
    %v1861 = vunpack.c.h.b16 %v367
    %v1862 = vunpack.c.l.b16 %v368
    %v1863 = vunpack.c.h.b16 %v368
    %v1864 = vunpack.c.l.b16 %v369
    %v1865 = vunpack.c.h.b16 %v369
    %v1866 = vunpack.c.l.b16 %v370
    %v1867 = vunpack.c.h.b16 %v370
    %v1868 = vunpack.c.l.b16 %v371
    %v1869 = vunpack.c.h.b16 %v371
    %v1870 = vunpack.c.l.b16 %v372
    %v1871 = vunpack.c.h.b16 %v372
    %v1872 = vunpack.c.l.b16 %v373
    %v1873 = vunpack.c.h.b16 %v373
    %v1874 = vunpack.c.l.b16 %v374
    %v1875 = vunpack.c.h.b16 %v374
    %v1876 = vunpack.c.l.b16 %v375
    %v1877 = vunpack.c.h.b16 %v375
    %v1878 = vunpack.c.l.b16 %v376
    %v1879 = vunpack.c.h.b16 %v376
    %v1880 = vunpack.c.l.b16 %v377
    %v1881 = vunpack.c.h.b16 %v377
    %v1882 = vunpack.c.l.b16 %v378
    %v1883 = vunpack.c.h.b16 %v378
    %v1884 = vunpack.c.l.b16 %v379
    %v1885 = vunpack.c.h.b16 %v379
    %v1886 = vunpack.c.l.b16 %v380
    %v1887 = vunpack.c.h.b16 %v380
    %v1888 = vunpack.c.l.b16 %v381
    %v1889 = vunpack.c.h.b16 %v381
    %v1890 = vunpack.c.l.b16 %v382
    %v1891 = vunpack.c.h.b16 %v382
    %v1892 = vunpack.c.l.b16 %v383
    %v1893 = vunpack.c.h.b16 %v383
    %v1894 = vunpack.c.l.b16 %v384
    %v1895 = vunpack.c.h.b16 %v384
    %v1896 = vunpack.c.l.b16 %v385
    %v1897 = vunpack.c.h.b16 %v385
    %v1898 = vunpack.c.l.b16 %v386
    %v1899 = vunpack.c.h.b16 %v386
    %v1900 = vunpack.c.l.b16 %v387
    %v1901 = vunpack.c.h.b16 %v387
    %v1902 = vunpack.c.l.b16 %v388
    %v1903 = vunpack.c.h.b16 %v388
    %v1904 = vunpack.c.l.b16 %v389
    %v1905 = vunpack.c.h.b16 %v389
    %v1906 = vunpack.c.l.b16 %v390
    %v1907 = vunpack.c.h.b16 %v390
    %v1908 = vunpack.c.l.b16 %v391
    %v1909 = vunpack.c.h.b16 %v391
    %v1910 = vunpack.c.l.b16 %v392
    %v1911 = vunpack.c.h.b16 %v392
    %v1912 = vunpack.c.l.b16 %v393
    %v1913 = vunpack.c.h.b16 %v393
    %v1914 = vunpack.c.l.b16 %v394
    %v1915 = vunpack.c.h.b16 %v394
    %v1916 = vunpack.c.l.b16 %v395
    %v1917 = vunpack.c.h.b16 %v395
    %v1918 = vunpack.c.l.b16 %v396
    %v1919 = vunpack.c.h.b16 %v396
    %v1920 = vunpack.c.l.b16 %v397
    %v1921 = vunpack.c.h.b16 %v397
    %v1922 = vunpack.c.l.b16 %v398
    %v1923 = vunpack.c.h.b16 %v398
    %v1924 = vunpack.c.l.b16 %v399
    %v1925 = vunpack.c.h.b16 %v399
    %v1926 = vunpack.c.l.b16 %v400
    %v1927 = vunpack.c.h.b16 %v400
    %v1928 = vunpack.c.l.b16 %v401
    %v1929 = vunpack.c.h.b16 %v401
    %v1930 = vunpack.c.l.b16 %v402
    %v1931 = vunpack.c.h.b16 %v402
    %v1932 = vunpack.c.l.b16 %v403
    %v1933 = vunpack.c.h.b16 %v403
    %v1934 = vunpack.c.l.b16 %v404
    %v1935 = vunpack.c.h.b16 %v404
    %v1936 = vunpack.c.l.b16 %v405
    %v1937 = vunpack.c.h.b16 %v405
    %v1938 = vunpack.c.l.b16 %v406
    %v1939 = vunpack.c.h.b16 %v406
    %v1940 = vunpack.c.l.b16 %v407
    %v1941 = vunpack.c.h.b16 %v407
    %v1942 = vunpack.c.l.b16 %v408
    %v1943 = vunpack.c.h.b16 %v408
    %v1944 = vunpack.c.l.b16 %v409
    %v1945 = vunpack.c.h.b16 %v409
    %v1946 = vunpack.c.l.b16 %v410
    %v1947 = vunpack.c.h.b16 %v410
    %v1948 = vunpack.c.l.b16 %v411
    %v1949 = vunpack.c.h.b16 %v411
    %v1950 = vunpack.c.l.b16 %v412
    %v1951 = vunpack.c.h.b16 %v412
    %v1952 = vunpack.c.l.b16 %v413
    %v1953 = vunpack.c.h.b16 %v413
    %v1954 = vunpack.c.l.b16 %v414
    %v1955 = vunpack.c.h.b16 %v414
    %v1956 = vunpack.c.l.b16 %v415
    %v1957 = vunpack.c.h.b16 %v415
    %v1958 = vunpack.c.l.b16 %v416
    %v1959 = vunpack.c.h.b16 %v416
    %v1960 = vunpack.c.l.b16 %v417
    %v1961 = vunpack.c.h.b16 %v417
    %v1962 = vunpack.c.l.b16 %v418
    %v1963 = vunpack.c.h.b16 %v418
    %v1964 = vunpack.c.l.b16 %v419
    %v1965 = vunpack.c.h.b16 %v419
    %v1966 = vunpack.c.l.b16 %v420
    %v1967 = vunpack.c.h.b16 %v420
    %v1968 = vunpack.c.l.b16 %v421
    %v1969 = vunpack.c.h.b16 %v421
    %v1970 = vunpack.c.l.b16 %v422
    %v1971 = vunpack.c.h.b16 %v422
    %v1972 = vunpack.c.l.b16 %v423
    %v1973 = vunpack.c.h.b16 %v423
    %v1974 = vunpack.c.l.b16 %v424
    %v1975 = vunpack.c.h.b16 %v424
    %v1976 = vunpack.c.l.b16 %v425
    %v1977 = vunpack.c.h.b16 %v425
    %v1978 = vunpack.c.l.b16 %v426
    %v1979 = vunpack.c.h.b16 %v426
    %v1980 = vunpack.c.l.b16 %v427
    %v1981 = vunpack.c.h.b16 %v427
    %v1982 = vunpack.c.l.b16 %v428
    %v1983 = vunpack.c.h.b16 %v428
    %v1984 = vunpack.c.l.b16 %v429
    %v1985 = vunpack.c.h.b16 %v429
    %v1986 = vunpack.c.l.b16 %v430
    %v1987 = vunpack.c.h.b16 %v430
    %v1988 = vunpack.c.l.b16 %v431
    %v1989 = vunpack.c.h.b16 %v431
    %v1990 = vunpack.c.l.b16 %v432
    %v1991 = vunpack.c.h.b16 %v432
    %v1992 = vunpack.c.l.b16 %v433
    %v1993 = vunpack.c.h.b16 %v433
    %v1994 = vunpack.c.l.b16 %v434
    %v1995 = vunpack.c.h.b16 %v434
    %v1996 = vunpack.c.l.b16 %v435
    %v1997 = vunpack.c.h.b16 %v435
    %v1998 = vunpack.c.l.b16 %v436
    %v1999 = vunpack.c.h.b16 %v436
    %v2000 = vunpack.c.l.b16 %v437
    %v2001 = vunpack.c.h.b16 %v437
    %v2002 = vunpack.c.l.b16 %v438
    %v2003 = vunpack.c.h.b16 %v438
    %v2004 = vunpack.c.l.b16 %v439
    %v2005 = vunpack.c.h.b16 %v439
    %v2006 = vunpack.c.l.b16 %v440
    %v2007 = vunpack.c.h.b16 %v440
    %v2008 = vunpack.c.l.b16 %v441
    %v2009 = vunpack.c.h.b16 %v441
    %v2010 = vunpack.c.l.b16 %v442
    %v2011 = vunpack.c.h.b16 %v442
    %v2012 = vunpack.c.l.b16 %v443
    %v2013 = vunpack.c.h.b16 %v443
    %v2014 = vunpack.c.l.b16 %v444
    %v2015 = vunpack.c.h.b16 %v444
    %v2016 = vunpack.c.l.b16 %v445
    %v2017 = vunpack.c.h.b16 %v445
    %v2018 = vunpack.c.l.b16 %v446
    %v2019 = vunpack.c.h.b16 %v446
    %v2020 = vunpack.c.l.b16 %v447
    %v2021 = vunpack.c.h.b16 %v447
    %v2022 = vunpack.c.l.b16 %v448
    %v2023 = vunpack.c.h.b16 %v448
    %v2024 = vunpack.c.l.b16 %v449
    %v2025 = vunpack.c.h.b16 %v449
    %v2026 = vunpack.c.l.b16 %v450
    %v2027 = vunpack.c.h.b16 %v450
    %v2028 = vunpack.c.l.b16 %v451
    %v2029 = vunpack.c.h.b16 %v451
    %v2030 = vunpack.c.l.b16 %v452
    %v2031 = vunpack.c.h.b16 %v452
    %v2032 = vunpack.c.l.b16 %v453
    %v2033 = vunpack.c.h.b16 %v453
    %v2034 = vunpack.c.l.b16 %v454
    %v2035 = vunpack.c.h.b16 %v454
    %v2036 = vunpack.c.l.b16 %v455
    %v2037 = vunpack.c.h.b16 %v455
    %v2038 = vunpack.c.l.b16 %v456
    %v2039 = vunpack.c.h.b16 %v456
    %v2040 = vunpack.c.l.b16 %v457
    %v2041 = vunpack.c.h.b16 %v457
    %v2042 = vunpack.c.l.b16 %v458
    %v2043 = vunpack.c.h.b16 %v458
    %v2044 = vunpack.c.l.b16 %v459
    %v2045 = vunpack.c.h.b16 %v459
    %v2046 = vunpack.c.l.b16 %v460
    %v2047 = vunpack.c.h.b16 %v460
    %v2048 = vunpack.c.l.b16 %v461
    %v2049 = vunpack.c.h.b16 %v461
    %v2050 = vunpack.c.l.b16 %v462
    %v2051 = vunpack.c.h.b16 %v462
    %v2052 = vunpack.c.l.b16 %v463
    %v2053 = vunpack.c.h.b16 %v463
    %v2054 = vunpack.c.l.b16 %v464
    %v2055 = vunpack.c.h.b16 %v464
    %v2056 = vunpack.c.l.b16 %v465
    %v2057 = vunpack.c.h.b16 %v465
    %v2058 = vunpack.c.l.b16 %v466
    %v2059 = vunpack.c.h.b16 %v466
    %v2060 = vunpack.c.l.b16 %v467
    %v2061 = vunpack.c.h.b16 %v467
    %v2062 = vunpack.c.l.b16 %v468
    %v2063 = vunpack.c.h.b16 %v468
    %v2064 = vunpack.c.l.b16 %v469
    %v2065 = vunpack.c.h.b16 %v469
    %v2066 = vunpack.c.l.b16 %v470
    %v2067 = vunpack.c.h.b16 %v470
    %v2068 = vunpack.c.l.b16 %v471
    %v2069 = vunpack.c.h.b16 %v471
    %v2070 = vunpack.c.l.b16 %v472
    %v2071 = vunpack.c.h.b16 %v472
    %v2072 = vunpack.c.l.b16 %v473
    %v2073 = vunpack.c.h.b16 %v473
    %v2074 = vunpack.c.l.b16 %v474
    %v2075 = vunpack.c.h.b16 %v474
    %v2076 = vunpack.c.l.b16 %v475
    %v2077 = vunpack.c.h.b16 %v475
    %v2078 = vunpack.c.l.b16 %v476
    %v2079 = vunpack.c.h.b16 %v476
    %v2080 = vunpack.c.l.b16 %v477
    %v2081 = vunpack.c.h.b16 %v477
    %v2082 = vunpack.c.l.b16 %v478
    %v2083 = vunpack.c.h.b16 %v478
    %v2084 = vunpack.c.l.b16 %v479
    %v2085 = vunpack.c.h.b16 %v479
    %v2086 = vunpack.c.l.b16 %v480
    %v2087 = vunpack.c.h.b16 %v480
    %v2088 = vunpack.c.l.b16 %v481
    %v2089 = vunpack.c.h.b16 %v481
    %v2090 = vunpack.c.l.b16 %v482
    %v2091 = vunpack.c.h.b16 %v482
    %v2092 = vunpack.c.l.b16 %v483
    %v2093 = vunpack.c.h.b16 %v483
    %v2094 = vunpack.c.l.b16 %v484
    %v2095 = vunpack.c.h.b16 %v484
    %v2096 = vunpack.c.l.b16 %v485
    %v2097 = vunpack.c.h.b16 %v485
    %v2098 = vunpack.c.l.b16 %v486
    %v2099 = vunpack.c.h.b16 %v486
    %v2100 = vunpack.c.l.b16 %v487
    %v2101 = vunpack.c.h.b16 %v487
    %v2102 = vunpack.c.l.b16 %v488
    %v2103 = vunpack.c.h.b16 %v488
    %v2104 = vunpack.c.l.b16 %v489
    %v2105 = vunpack.c.h.b16 %v489
    %v2106 = vunpack.c.l.b16 %v490
    %v2107 = vunpack.c.h.b16 %v490
    %v2108 = vunpack.c.l.b16 %v491
    %v2109 = vunpack.c.h.b16 %v491
    %v2110 = vunpack.c.l.b16 %v492
    %v2111 = vunpack.c.h.b16 %v492
    %v2112 = vunpack.c.l.b16 %v493
    %v2113 = vunpack.c.h.b16 %v493
    %v2114 = vunpack.c.l.b16 %v494
    %v2115 = vunpack.c.h.b16 %v494
    %v2116 = vunpack.c.l.b16 %v495
    %v2117 = vunpack.c.h.b16 %v495
    %v2118 = vpack.c.b16 %v1530, %v1334
    %v2119 = vpack.c.b16 %v1531, %v1335
    %v2120 = vpack.c.b16 %v1532, %v1336
    %v2121 = vpack.c.b16 %v1533, %v1337
    %v2122 = vpack.c.b16 %v1534, %v1338
    %v2123 = vpack.c.b16 %v1535, %v1339
    %v2124 = vpack.c.b16 %v1536, %v1340
    %v2125 = vpack.c.b16 %v1537, %v1341
    %v2126 = vpack.c.b16 %v1538, %v1342
    %v2127 = vpack.c.b16 %v1539, %v1343
    %v2128 = vpack.c.b16 %v1540, %v1344
    %v2129 = vpack.c.b16 %v1541, %v1345
    %v2130 = vpack.c.b16 %v1542, %v1346
    %v2131 = vpack.c.b16 %v1543, %v1347
    %v2132 = vpack.c.b16 %v1544, %v1348
    %v2133 = vpack.c.b16 %v1545, %v1349
    %v2134 = vpack.c.b16 %v1546, %v1350
    %v2135 = vpack.c.b16 %v1547, %v1351
    %v2136 = vpack.c.b16 %v1548, %v1352
    %v2137 = vpack.c.b16 %v1549, %v1353
    %v2138 = vpack.c.b16 %v1550, %v1354
    %v2139 = vpack.c.b16 %v1551, %v1355
    %v2140 = vpack.c.b16 %v1552, %v1356
    %v2141 = vpack.c.b16 %v1553, %v1357
    %v2142 = vpack.c.b16 %v1554, %v1358
    %v2143 = vpack.c.b16 %v1555, %v1359
    %v2144 = vpack.c.b16 %v1556, %v1360
    %v2145 = vpack.c.b16 %v1557, %v1361
    %v2146 = vpack.c.b16 %v1558, %v1362
    %v2147 = vpack.c.b16 %v1559, %v1363
    %v2148 = vpack.c.b16 %v1560, %v1364
    %v2149 = vpack.c.b16 %v1561, %v1365
    %v2150 = vpack.c.b16 %v1562, %v1366
    %v2151 = vpack.c.b16 %v1563, %v1367
    %v2152 = vpack.c.b16 %v1564, %v1368
    %v2153 = vpack.c.b16 %v1565, %v1369
    %v2154 = vpack.c.b16 %v1566, %v1370
    %v2155 = vpack.c.b16 %v1567, %v1371
    %v2156 = vpack.c.b16 %v1568, %v1372
    %v2157 = vpack.c.b16 %v1569, %v1373
    %v2158 = vpack.c.b16 %v1570, %v1374
    %v2159 = vpack.c.b16 %v1571, %v1375
    %v2160 = vpack.c.b16 %v1572, %v1376
    %v2161 = vpack.c.b16 %v1573, %v1377
    %v2162 = vpack.c.b16 %v1574, %v1378
    %v2163 = vpack.c.b16 %v1575, %v1379
    %v2164 = vpack.c.b16 %v1576, %v1380
    %v2165 = vpack.c.b16 %v1577, %v1381
    %v2166 = vpack.c.b16 %v1578, %v1382
    %v2167 = vpack.c.b16 %v1579, %v1383
    %v2168 = vpack.c.b16 %v1580, %v1384
    %v2169 = vpack.c.b16 %v1581, %v1385
    %v2170 = vpack.c.b16 %v1582, %v1386
    %v2171 = vpack.c.b16 %v1583, %v1387
    %v2172 = vpack.c.b16 %v1584, %v1388
    %v2173 = vpack.c.b16 %v1585, %v1389
    %v2174 = vpack.c.b16 %v1586, %v1390
    %v2175 = vpack.c.b16 %v1587, %v1391
    %v2176 = vpack.c.b16 %v1588, %v1392
    %v2177 = vpack.c.b16 %v1589, %v1393
    %v2178 = vpack.c.b16 %v1590, %v1394
    %v2179 = vpack.c.b16 %v1591, %v1395
    %v2180 = vpack.c.b16 %v1592, %v1396
    %v2181 = vpack.c.b16 %v1593, %v1397
    %v2182 = vpack.c.b16 %v1594, %v1398
    %v2183 = vpack.c.b16 %v1595, %v1399
    %v2184 = vpack.c.b16 %v1596, %v1400
    %v2185 = vpack.c.b16 %v1597, %v1401
    %v2186 = vpack.c.b16 %v1598, %v1402
    %v2187 = vpack.c.b16 %v1599, %v1403
    %v2188 = vpack.c.b16 %v1600, %v1404
    %v2189 = vpack.c.b16 %v1601, %v1405
    %v2190 = vpack.c.b16 %v1602, %v1406
    %v2191 = vpack.c.b16 %v1603, %v1407
    %v2192 = vpack.c.b16 %v1604, %v1408
    %v2193 = vpack.c.b16 %v1605, %v1409
    %v2194 = vpack.c.b16 %v1606, %v1410
    %v2195 = vpack.c.b16 %v1607, %v1411
    %v2196 = vpack.c.b16 %v1608, %v1412
    %v2197 = vpack.c.b16 %v1609, %v1413
    %v2198 = vpack.c.b16 %v1610, %v1414
    %v2199 = vpack.c.b16 %v1611, %v1415
    %v2200 = vpack.c.b16 %v1612, %v1416
    %v2201 = vpack.c.b16 %v1613, %v1417
    %v2202 = vpack.c.b16 %v1614, %v1418
    %v2203 = vpack.c.b16 %v1615, %v1419
    %v2204 = vpack.c.b16 %v1616, %v1420
    %v2205 = vpack.c.b16 %v1617, %v1421
    %v2206 = vpack.c.b16 %v1618, %v1422
    %v2207 = vpack.c.b16 %v1619, %v1423
    %v2208 = vpack.c.b16 %v1620, %v1424
    %v2209 = vpack.c.b16 %v1621, %v1425
    %v2210 = vpack.c.b16 %v1622, %v1426
    %v2211 = vpack.c.b16 %v1623, %v1427
    %v2212 = vpack.c.b16 %v1624, %v1428
    %v2213 = vpack.c.b16 %v1625, %v1429
    %v2214 = vpack.c.b16 %v1626, %v1430
    %v2215 = vpack.c.b16 %v1627, %v1431
    %v2216 = vpack.c.b16 %v1628, %v1432
    %v2217 = vpack.c.b16 %v1629, %v1433
    %v2218 = vpack.c.b16 %v1630, %v1434
    %v2219 = vpack.c.b16 %v1631, %v1435
    %v2220 = vpack.c.b16 %v1632, %v1436
    %v2221 = vpack.c.b16 %v1633, %v1437
    %v2222 = vpack.c.b16 %v1634, %v1438
    %v2223 = vpack.c.b16 %v1635, %v1439
    %v2224 = vpack.c.b16 %v1636, %v1440
    %v2225 = vpack.c.b16 %v1637, %v1441
    %v2226 = vpack.c.b16 %v1638, %v1442
    %v2227 = vpack.c.b16 %v1639, %v1443
    %v2228 = vpack.c.b16 %v1640, %v1444
    %v2229 = vpack.c.b16 %v1641, %v1445
    %v2230 = vpack.c.b16 %v1642, %v1446
    %v2231 = vpack.c.b16 %v1643, %v1447
    %v2232 = vpack.c.b16 %v1644, %v1448
    %v2233 = vpack.c.b16 %v1645, %v1449
    %v2234 = vpack.c.b16 %v1646, %v1450
    %v2235 = vpack.c.b16 %v1647, %v1451
    %v2236 = vpack.c.b16 %v1648, %v1452
    %v2237 = vpack.c.b16 %v1649, %v1453
    %v2238 = vpack.c.b16 %v1650, %v1454
    %v2239 = vpack.c.b16 %v1651, %v1455
    %v2240 = vpack.c.b16 %v1652, %v1456
    %v2241 = vpack.c.b16 %v1653, %v1457
    %v2242 = vpack.c.b16 %v1654, %v1458
    %v2243 = vpack.c.b16 %v1655, %v1459
    %v2244 = vpack.c.b16 %v1656, %v1460
    %v2245 = vpack.c.b16 %v1657, %v1461
    %v2246 = vpack.c.b16 %v1658, %v1462
    %v2247 = vpack.c.b16 %v1659, %v1463
    %v2248 = vpack.c.b16 %v1660, %v1464
    %v2249 = vpack.c.b16 %v1661, %v1465
    %v2250 = vpack.c.b16 %v1662, %v1466
    %v2251 = vpack.c.b16 %v1663, %v1467
    %v2252 = vpack.c.b16 %v1664, %v1468
    %v2253 = vpack.c.b16 %v1665, %v1469
    %v2254 = vpack.c.b16 %v1666, %v1470
    %v2255 = vpack.c.b16 %v1667, %v1471
    %v2256 = vpack.c.b16 %v1668, %v1472
    %v2257 = vpack.c.b16 %v1669, %v1473
    %v2258 = vpack.c.b16 %v1670, %v1474
    %v2259 = vpack.c.b16 %v1671, %v1475
    %v2260 = vpack.c.b16 %v1672, %v1476
    %v2261 = vpack.c.b16 %v1673, %v1477
    %v2262 = vpack.c.b16 %v1674, %v1478
    %v2263 = vpack.c.b16 %v1675, %v1479
    %v2264 = vpack.c.b16 %v1676, %v1480
    %v2265 = vpack.c.b16 %v1677, %v1481
    %v2266 = vpack.c.b16 %v1678, %v1482
    %v2267 = vpack.c.b16 %v1679, %v1483
    %v2268 = vpack.c.b16 %v1680, %v1484
    %v2269 = vpack.c.b16 %v1681, %v1485
    %v2270 = vpack.c.b16 %v1682, %v1486
    %v2271 = vpack.c.b16 %v1683, %v1487
    %v2272 = vpack.c.b16 %v1684, %v1488
    %v2273 = vpack.c.b16 %v1685, %v1489
    %v2274 = vpack.c.b16 %v1686, %v1490
    %v2275 = vpack.c.b16 %v1687, %v1491
    %v2276 = vpack.c.b16 %v1688, %v1492
    %v2277 = vpack.c.b16 %v1689, %v1493
    %v2278 = vpack.c.b16 %v1690, %v1494
    %v2279 = vpack.c.b16 %v1691, %v1495
    %v2280 = vpack.c.b16 %v1692, %v1496
    %v2281 = vpack.c.b16 %v1693, %v1497
    %v2282 = vpack.c.b16 %v1694, %v1498
    %v2283 = vpack.c.b16 %v1695, %v1499
    %v2284 = vpack.c.b16 %v1696, %v1500
    %v2285 = vpack.c.b16 %v1697, %v1501
    %v2286 = vpack.c.b16 %v1698, %v1502
    %v2287 = vpack.c.b16 %v1699, %v1503
    %v2288 = vpack.c.b16 %v1700, %v1504
    %v2289 = vpack.c.b16 %v1701, %v1505
    %v2290 = vpack.c.b16 %v1702, %v1506
    %v2291 = vpack.c.b16 %v1703, %v1507
    %v2292 = vpack.c.b16 %v1704, %v1508
    %v2293 = vpack.c.b16 %v1705, %v1509
    %v2294 = vpack.c.b16 %v1706, %v1510
    %v2295 = vpack.c.b16 %v1707, %v1511
    %v2296 = vpack.c.b16 %v1708, %v1512
    %v2297 = vpack.c.b16 %v1709, %v1513
    %v2298 = vpack.c.b16 %v1710, %v1514
    %v2299 = vpack.c.b16 %v1711, %v1515
    %v2300 = vpack.c.b16 %v1712, %v1516
    %v2301 = vpack.c.b16 %v1713, %v1517
    %v2302 = vpack.c.b16 %v1714, %v1518
    %v2303 = vpack.c.b16 %v1715, %v1519
    %v2304 = vpack.c.b16 %v1716, %v1520
    %v2305 = vpack.c.b16 %v1717, %v1521
    %v2306 = vpack.c.b16 %v1718, %v1522
    %v2307 = vpack.c.b16 %v1719, %v1523
    %v2308 = vpack.c.b16 %v1720, %v1524
    %v2309 = vpack.c.b16 %v1721, %v1525
    %v2310 = vpack.c.b16 %v1722, %v1526
    %v2311 = vpack.c.b16 %v1723, %v1527
    %v2312 = vpack.c.b16 %v1724, %v1528
    %v2313 = vpack.c.b16 %v1725, %v1529
    %v2314 = vpack.c.b16 %v1922, %v1726
    %v2315 = vpack.c.b16 %v1923, %v1727
    %v2316 = vpack.c.b16 %v1924, %v1728
    %v2317 = vpack.c.b16 %v1925, %v1729
    %v2318 = vpack.c.b16 %v1926, %v1730
    %v2319 = vpack.c.b16 %v1927, %v1731
    %v2320 = vpack.c.b16 %v1928, %v1732
    %v2321 = vpack.c.b16 %v1929, %v1733
    %v2322 = vpack.c.b16 %v1930, %v1734
    %v2323 = vpack.c.b16 %v1931, %v1735
    %v2324 = vpack.c.b16 %v1932, %v1736
    %v2325 = vpack.c.b16 %v1933, %v1737
    %v2326 = vpack.c.b16 %v1934, %v1738
    %v2327 = vpack.c.b16 %v1935, %v1739
    %v2328 = vpack.c.b16 %v1936, %v1740
    %v2329 = vpack.c.b16 %v1937, %v1741
    %v2330 = vpack.c.b16 %v1938, %v1742
    %v2331 = vpack.c.b16 %v1939, %v1743
    %v2332 = vpack.c.b16 %v1940, %v1744
    %v2333 = vpack.c.b16 %v1941, %v1745
    %v2334 = vpack.c.b16 %v1942, %v1746
    %v2335 = vpack.c.b16 %v1943, %v1747
    %v2336 = vpack.c.b16 %v1944, %v1748
    %v2337 = vpack.c.b16 %v1945, %v1749
    %v2338 = vpack.c.b16 %v1946, %v1750
    %v2339 = vpack.c.b16 %v1947, %v1751
    %v2340 = vpack.c.b16 %v1948, %v1752
    %v2341 = vpack.c.b16 %v1949, %v1753
    %v2342 = vpack.c.b16 %v1950, %v1754
    %v2343 = vpack.c.b16 %v1951, %v1755
    %v2344 = vpack.c.b16 %v1952, %v1756
    %v2345 = vpack.c.b16 %v1953, %v1757
    %v2346 = vpack.c.b16 %v1954, %v1758
    %v2347 = vpack.c.b16 %v1955, %v1759
    %v2348 = vpack.c.b16 %v1956, %v1760
    %v2349 = vpack.c.b16 %v1957, %v1761
    %v2350 = vpack.c.b16 %v1958, %v1762
    %v2351 = vpack.c.b16 %v1959, %v1763
    %v2352 = vpack.c.b16 %v1960, %v1764
    %v2353 = vpack.c.b16 %v1961, %v1765
    %v2354 = vpack.c.b16 %v1962, %v1766
    %v2355 = vpack.c.b16 %v1963, %v1767
    %v2356 = vpack.c.b16 %v1964, %v1768
    %v2357 = vpack.c.b16 %v1965, %v1769
    %v2358 = vpack.c.b16 %v1966, %v1770
    %v2359 = vpack.c.b16 %v1967, %v1771
    %v2360 = vpack.c.b16 %v1968, %v1772
    %v2361 = vpack.c.b16 %v1969, %v1773
    %v2362 = vpack.c.b16 %v1970, %v1774
    %v2363 = vpack.c.b16 %v1971, %v1775
    %v2364 = vpack.c.b16 %v1972, %v1776
    %v2365 = vpack.c.b16 %v1973, %v1777
    %v2366 = vpack.c.b16 %v1974, %v1778
    %v2367 = vpack.c.b16 %v1975, %v1779
    %v2368 = vpack.c.b16 %v1976, %v1780
    %v2369 = vpack.c.b16 %v1977, %v1781
    %v2370 = vpack.c.b16 %v1978, %v1782
    %v2371 = vpack.c.b16 %v1979, %v1783
    %v2372 = vpack.c.b16 %v1980, %v1784
    %v2373 = vpack.c.b16 %v1981, %v1785
    %v2374 = vpack.c.b16 %v1982, %v1786
    %v2375 = vpack.c.b16 %v1983, %v1787
    %v2376 = vpack.c.b16 %v1984, %v1788
    %v2377 = vpack.c.b16 %v1985, %v1789
    %v2378 = vpack.c.b16 %v1986, %v1790
    %v2379 = vpack.c.b16 %v1987, %v1791
    %v2380 = vpack.c.b16 %v1988, %v1792
    %v2381 = vpack.c.b16 %v1989, %v1793
    %v2382 = vpack.c.b16 %v1990, %v1794
    %v2383 = vpack.c.b16 %v1991, %v1795
    %v2384 = vpack.c.b16 %v1992, %v1796
    %v2385 = vpack.c.b16 %v1993, %v1797
    %v2386 = vpack.c.b16 %v1994, %v1798
    %v2387 = vpack.c.b16 %v1995, %v1799
    %v2388 = vpack.c.b16 %v1996, %v1800
    %v2389 = vpack.c.b16 %v1997, %v1801
    %v2390 = vpack.c.b16 %v1998, %v1802
    %v2391 = vpack.c.b16 %v1999, %v1803
    %v2392 = vpack.c.b16 %v2000, %v1804
    %v2393 = vpack.c.b16 %v2001, %v1805
    %v2394 = vpack.c.b16 %v2002, %v1806
    %v2395 = vpack.c.b16 %v2003, %v1807
    %v2396 = vpack.c.b16 %v2004, %v1808
    %v2397 = vpack.c.b16 %v2005, %v1809
    %v2398 = vpack.c.b16 %v2006, %v1810
    %v2399 = vpack.c.b16 %v2007, %v1811
    %v2400 = vpack.c.b16 %v2008, %v1812
    %v2401 = vpack.c.b16 %v2009, %v1813
    %v2402 = vpack.c.b16 %v2010, %v1814
    %v2403 = vpack.c.b16 %v2011, %v1815
    %v2404 = vpack.c.b16 %v2012, %v1816
    %v2405 = vpack.c.b16 %v2013, %v1817
    %v2406 = vpack.c.b16 %v2014, %v1818
    %v2407 = vpack.c.b16 %v2015, %v1819
    %v2408 = vpack.c.b16 %v2016, %v1820
    %v2409 = vpack.c.b16 %v2017, %v1821
    %v2410 = vpack.c.b16 %v2018, %v1822
    %v2411 = vpack.c.b16 %v2019, %v1823
    %v2412 = vpack.c.b16 %v2020, %v1824
    %v2413 = vpack.c.b16 %v2021, %v1825
    %v2414 = vpack.c.b16 %v2022, %v1826
    %v2415 = vpack.c.b16 %v2023, %v1827
    %v2416 = vpack.c.b16 %v2024, %v1828
    %v2417 = vpack.c.b16 %v2025, %v1829
    %v2418 = vpack.c.b16 %v2026, %v1830
    %v2419 = vpack.c.b16 %v2027, %v1831
    %v2420 = vpack.c.b16 %v2028, %v1832
    %v2421 = vpack.c.b16 %v2029, %v1833
    %v2422 = vpack.c.b16 %v2030, %v1834
    %v2423 = vpack.c.b16 %v2031, %v1835
    %v2424 = vpack.c.b16 %v2032, %v1836
    %v2425 = vpack.c.b16 %v2033, %v1837
    %v2426 = vpack.c.b16 %v2034, %v1838
    %v2427 = vpack.c.b16 %v2035, %v1839
    %v2428 = vpack.c.b16 %v2036, %v1840
    %v2429 = vpack.c.b16 %v2037, %v1841
    %v2430 = vpack.c.b16 %v2038, %v1842
    %v2431 = vpack.c.b16 %v2039, %v1843
    %v2432 = vpack.c.b16 %v2040, %v1844
    %v2433 = vpack.c.b16 %v2041, %v1845
    %v2434 = vpack.c.b16 %v2042, %v1846
    %v2435 = vpack.c.b16 %v2043, %v1847
    %v2436 = vpack.c.b16 %v2044, %v1848
    %v2437 = vpack.c.b16 %v2045, %v1849
    %v2438 = vpack.c.b16 %v2046, %v1850
    %v2439 = vpack.c.b16 %v2047, %v1851
    %v2440 = vpack.c.b16 %v2048, %v1852
    %v2441 = vpack.c.b16 %v2049, %v1853
    %v2442 = vpack.c.b16 %v2050, %v1854
    %v2443 = vpack.c.b16 %v2051, %v1855
    %v2444 = vpack.c.b16 %v2052, %v1856
    %v2445 = vpack.c.b16 %v2053, %v1857
    %v2446 = vpack.c.b16 %v2054, %v1858
    %v2447 = vpack.c.b16 %v2055, %v1859
    %v2448 = vpack.c.b16 %v2056, %v1860
    %v2449 = vpack.c.b16 %v2057, %v1861
    %v2450 = vpack.c.b16 %v2058, %v1862
    %v2451 = vpack.c.b16 %v2059, %v1863
    %v2452 = vpack.c.b16 %v2060, %v1864
    %v2453 = vpack.c.b16 %v2061, %v1865
    %v2454 = vpack.c.b16 %v2062, %v1866
    %v2455 = vpack.c.b16 %v2063, %v1867
    %v2456 = vpack.c.b16 %v2064, %v1868
    %v2457 = vpack.c.b16 %v2065, %v1869
    %v2458 = vpack.c.b16 %v2066, %v1870
    %v2459 = vpack.c.b16 %v2067, %v1871
    %v2460 = vpack.c.b16 %v2068, %v1872
    %v2461 = vpack.c.b16 %v2069, %v1873
    %v2462 = vpack.c.b16 %v2070, %v1874
    %v2463 = vpack.c.b16 %v2071, %v1875
    %v2464 = vpack.c.b16 %v2072, %v1876
    %v2465 = vpack.c.b16 %v2073, %v1877
    %v2466 = vpack.c.b16 %v2074, %v1878
    %v2467 = vpack.c.b16 %v2075, %v1879
    %v2468 = vpack.c.b16 %v2076, %v1880
    %v2469 = vpack.c.b16 %v2077, %v1881
    %v2470 = vpack.c.b16 %v2078, %v1882
    %v2471 = vpack.c.b16 %v2079, %v1883
    %v2472 = vpack.c.b16 %v2080, %v1884
    %v2473 = vpack.c.b16 %v2081, %v1885
    %v2474 = vpack.c.b16 %v2082, %v1886
    %v2475 = vpack.c.b16 %v2083, %v1887
    %v2476 = vpack.c.b16 %v2084, %v1888
    %v2477 = vpack.c.b16 %v2085, %v1889
    %v2478 = vpack.c.b16 %v2086, %v1890
    %v2479 = vpack.c.b16 %v2087, %v1891
    %v2480 = vpack.c.b16 %v2088, %v1892
    %v2481 = vpack.c.b16 %v2089, %v1893
    %v2482 = vpack.c.b16 %v2090, %v1894
    %v2483 = vpack.c.b16 %v2091, %v1895
    %v2484 = vpack.c.b16 %v2092, %v1896
    %v2485 = vpack.c.b16 %v2093, %v1897
    %v2486 = vpack.c.b16 %v2094, %v1898
    %v2487 = vpack.c.b16 %v2095, %v1899
    %v2488 = vpack.c.b16 %v2096, %v1900
    %v2489 = vpack.c.b16 %v2097, %v1901
    %v2490 = vpack.c.b16 %v2098, %v1902
    %v2491 = vpack.c.b16 %v2099, %v1903
    %v2492 = vpack.c.b16 %v2100, %v1904
    %v2493 = vpack.c.b16 %v2101, %v1905
    %v2494 = vpack.c.b16 %v2102, %v1906
    %v2495 = vpack.c.b16 %v2103, %v1907
    %v2496 = vpack.c.b16 %v2104, %v1908
    %v2497 = vpack.c.b16 %v2105, %v1909
    %v2498 = vpack.c.b16 %v2106, %v1910
    %v2499 = vpack.c.b16 %v2107, %v1911
    %v2500 = vpack.c.b16 %v2108, %v1912
    %v2501 = vpack.c.b16 %v2109, %v1913
    %v2502 = vpack.c.b16 %v2110, %v1914
    %v2503 = vpack.c.b16 %v2111, %v1915
    %v2504 = vpack.c.b16 %v2112, %v1916
    %v2505 = vpack.c.b16 %v2113, %v1917
    %v2506 = vpack.c.b16 %v2114, %v1918
    %v2507 = vpack.c.b16 %v2115, %v1919
    %v2508 = vpack.c.b16 %v2116, %v1920
    %v2509 = vpack.c.b16 %v2117, %v1921
    %2902 = vmatpush.bf16.xpose.msra.mxu0 0
    %2903 = vmatpush.bf16.xpose.msra.mxu0 0
    %2904 = vmatpush.bf16.xpose.msra.mxu0 0
    %2905 = vmatpush.bf16.xpose.msra.mxu0 0
    %2906 = vmatpush.bf16.xpose.msra.mxu0 0
    %2907 = vmatpush.bf16.xpose.msra.mxu0 0
    %2908 = vmatpush.bf16.xpose.msra.mxu0 %v2314
    %2909 = vmatpush.bf16.xpose.msra.mxu0 %v2118
    %2910 = vmatmul.bf16.gmra.mxu0 %v502
    %v2911 = vpop.f32.mrf.mxu0
    %v2912 = vadd.f32 %v498, %v2911
    %v2913 = vpop.f32.mrf.mxu0
    %2914 = vdwg.mxu0
    %2915 = vmatpush.bf16.xpose.msra.mxu0 0
    %2916 = vmatpush.bf16.xpose.msra.mxu0 0
    %2917 = vmatpush.bf16.xpose.msra.mxu0 0
    %2918 = vmatpush.bf16.xpose.msra.mxu0 0
    %2919 = vmatpush.bf16.xpose.msra.mxu0 0
    %2920 = vmatpush.bf16.xpose.msra.mxu0 0
    %2921 = vmatpush.bf16.xpose.msra.mxu0 %v2315
    %2922 = vmatpush.bf16.xpose.msra.mxu0 %v2119
    %2923 = vmatmul.bf16.gmra.mxu0 %v503
    %v2924 = vpop.f32.mrf.mxu0
    %v2925 = vadd.f32 %v2912, %v2924
    %v2926 = vpop.f32.mrf.mxu0
    %2927 = vdwg.mxu0
    %2928 = vmatpush.bf16.xpose.msra.mxu0 0
    %2929 = vmatpush.bf16.xpose.msra.mxu0 0
    %2930 = vmatpush.bf16.xpose.msra.mxu0 0
    %2931 = vmatpush.bf16.xpose.msra.mxu0 0
    %2932 = vmatpush.bf16.xpose.msra.mxu0 0
    %2933 = vmatpush.bf16.xpose.msra.mxu0 0
    %2934 = vmatpush.bf16.xpose.msra.mxu0 %v2316
    %2935 = vmatpush.bf16.xpose.msra.mxu0 %v2120
    %2936 = vmatmul.bf16.gmra.mxu0 %v504
    %v2937 = vpop.f32.mrf.mxu0
    %v2938 = vadd.f32 %v2925, %v2937
    %v2939 = vpop.f32.mrf.mxu0
    %2940 = vdwg.mxu0
    %2941 = vmatpush.bf16.xpose.msra.mxu0 0
    %2942 = vmatpush.bf16.xpose.msra.mxu0 0
    %2943 = vmatpush.bf16.xpose.msra.mxu0 0
    %2944 = vmatpush.bf16.xpose.msra.mxu0 0
    %2945 = vmatpush.bf16.xpose.msra.mxu0 0
    %2946 = vmatpush.bf16.xpose.msra.mxu0 0
    %2947 = vmatpush.bf16.xpose.msra.mxu0 %v2317
    %2948 = vmatpush.bf16.xpose.msra.mxu0 %v2121
    %2949 = vmatmul.bf16.gmra.mxu0 %v505
    %v2950 = vpop.f32.mrf.mxu0
    %v2951 = vadd.f32 %v2938, %v2950
    %v2952 = vpop.f32.mrf.mxu0
    %2953 = vdwg.mxu0
    %2954 = vmatpush.bf16.xpose.msra.mxu0 0
    %2955 = vmatpush.bf16.xpose.msra.mxu0 0
    %2956 = vmatpush.bf16.xpose.msra.mxu0 0
    %2957 = vmatpush.bf16.xpose.msra.mxu0 0
    %2958 = vmatpush.bf16.xpose.msra.mxu0 0
    %2959 = vmatpush.bf16.xpose.msra.mxu0 0
    %2960 = vmatpush.bf16.xpose.msra.mxu0 %v2318
    %2961 = vmatpush.bf16.xpose.msra.mxu0 %v2122
    %2962 = vmatmul.bf16.gmra.mxu0 %v506
    %v2963 = vpop.f32.mrf.mxu0
    %v2964 = vadd.f32 %v2951, %v2963
    %v2965 = vpop.f32.mrf.mxu0
    %2966 = vdwg.mxu0
    %2967 = vmatpush.bf16.xpose.msra.mxu0 0
    %2968 = vmatpush.bf16.xpose.msra.mxu0 0
    %2969 = vmatpush.bf16.xpose.msra.mxu0 0
    %2970 = vmatpush.bf16.xpose.msra.mxu0 0
    %2971 = vmatpush.bf16.xpose.msra.mxu0 0
    %2972 = vmatpush.bf16.xpose.msra.mxu0 0
    %2973 = vmatpush.bf16.xpose.msra.mxu0 %v2319
    %2974 = vmatpush.bf16.xpose.msra.mxu0 %v2123
    %2975 = vmatmul.bf16.gmra.mxu0 %v507
    %v2976 = vpop.f32.mrf.mxu0
    %v2977 = vadd.f32 %v2964, %v2976
    %v2978 = vpop.f32.mrf.mxu0
    %2979 = vdwg.mxu0
    %2980 = vmatpush.bf16.xpose.msra.mxu0 0
    %2981 = vmatpush.bf16.xpose.msra.mxu0 0
    %2982 = vmatpush.bf16.xpose.msra.mxu0 0
    %2983 = vmatpush.bf16.xpose.msra.mxu0 0
    %2984 = vmatpush.bf16.xpose.msra.mxu0 0
    %2985 = vmatpush.bf16.xpose.msra.mxu0 0
    %2986 = vmatpush.bf16.xpose.msra.mxu0 %v2320
    %2987 = vmatpush.bf16.xpose.msra.mxu0 %v2124
    %2988 = vmatmul.bf16.gmra.mxu0 %v508
    %v2989 = vpop.f32.mrf.mxu0
    %v2990 = vadd.f32 %v2977, %v2989
    %v2991 = vpop.f32.mrf.mxu0
    %2992 = vdwg.mxu0
    %2993 = vmatpush.bf16.xpose.msra.mxu0 0
    %2994 = vmatpush.bf16.xpose.msra.mxu0 0
    %2995 = vmatpush.bf16.xpose.msra.mxu0 0
    %2996 = vmatpush.bf16.xpose.msra.mxu0 0
    %2997 = vmatpush.bf16.xpose.msra.mxu0 0
    %2998 = vmatpush.bf16.xpose.msra.mxu0 0
    %2999 = vmatpush.bf16.xpose.msra.mxu0 %v2321
    %3000 = vmatpush.bf16.xpose.msra.mxu0 %v2125
    %3001 = vmatmul.bf16.gmra.mxu0 %v509
    %v3002 = vpop.f32.mrf.mxu0
    %v3003 = vadd.f32 %v2990, %v3002
    %v3004 = vpop.f32.mrf.mxu0
    %3005 = vdwg.mxu0
    %3006 = vmatpush.bf16.xpose.msra.mxu0 0
    %3007 = vmatpush.bf16.xpose.msra.mxu0 0
    %3008 = vmatpush.bf16.xpose.msra.mxu0 0
    %3009 = vmatpush.bf16.xpose.msra.mxu0 0
    %3010 = vmatpush.bf16.xpose.msra.mxu0 0
    %3011 = vmatpush.bf16.xpose.msra.mxu0 0
    %3012 = vmatpush.bf16.xpose.msra.mxu0 %v2322
    %3013 = vmatpush.bf16.xpose.msra.mxu0 %v2126
    %3014 = vmatmul.bf16.gmra.mxu0 %v512
    %v3015 = vpop.f32.mrf.mxu0
    %v3016 = vadd.f32 %v3003, %v3015
    %v3017 = vpop.f32.mrf.mxu0
    %3018 = vdwg.mxu0
    %3019 = vmatpush.bf16.xpose.msra.mxu0 0
    %3020 = vmatpush.bf16.xpose.msra.mxu0 0
    %3021 = vmatpush.bf16.xpose.msra.mxu0 0
    %3022 = vmatpush.bf16.xpose.msra.mxu0 0
    %3023 = vmatpush.bf16.xpose.msra.mxu0 0
    %3024 = vmatpush.bf16.xpose.msra.mxu0 0
    %3025 = vmatpush.bf16.xpose.msra.mxu0 %v2323
    %3026 = vmatpush.bf16.xpose.msra.mxu0 %v2127
    %3027 = vmatmul.bf16.gmra.mxu0 %v513
    %v3028 = vpop.f32.mrf.mxu0
    %v3029 = vadd.f32 %v3016, %v3028
    %v3030 = vpop.f32.mrf.mxu0
    %3031 = vdwg.mxu0
    %3032 = vmatpush.bf16.xpose.msra.mxu0 0
    %3033 = vmatpush.bf16.xpose.msra.mxu0 0
    %3034 = vmatpush.bf16.xpose.msra.mxu0 0
    %3035 = vmatpush.bf16.xpose.msra.mxu0 0
    %3036 = vmatpush.bf16.xpose.msra.mxu0 0
    %3037 = vmatpush.bf16.xpose.msra.mxu0 0
    %3038 = vmatpush.bf16.xpose.msra.mxu0 %v2324
    %3039 = vmatpush.bf16.xpose.msra.mxu0 %v2128
    %3040 = vmatmul.bf16.gmra.mxu0 %v514
    %v3041 = vpop.f32.mrf.mxu0
    %v3042 = vadd.f32 %v3029, %v3041
    %v3043 = vpop.f32.mrf.mxu0
    %3044 = vdwg.mxu0
    %3045 = vmatpush.bf16.xpose.msra.mxu0 0
    %3046 = vmatpush.bf16.xpose.msra.mxu0 0
    %3047 = vmatpush.bf16.xpose.msra.mxu0 0
    %3048 = vmatpush.bf16.xpose.msra.mxu0 0
    %3049 = vmatpush.bf16.xpose.msra.mxu0 0
    %3050 = vmatpush.bf16.xpose.msra.mxu0 0
    %3051 = vmatpush.bf16.xpose.msra.mxu0 %v2325
    %3052 = vmatpush.bf16.xpose.msra.mxu0 %v2129
    %3053 = vmatmul.bf16.gmra.mxu0 %v515
    %v3054 = vpop.f32.mrf.mxu0
    %v3055 = vadd.f32 %v3042, %v3054
    %v3056 = vpop.f32.mrf.mxu0
    %3057 = vdwg.mxu0
    %3058 = vmatpush.bf16.xpose.msra.mxu0 0
    %3059 = vmatpush.bf16.xpose.msra.mxu0 0
    %3060 = vmatpush.bf16.xpose.msra.mxu0 0
    %3061 = vmatpush.bf16.xpose.msra.mxu0 0
    %3062 = vmatpush.bf16.xpose.msra.mxu0 0
    %3063 = vmatpush.bf16.xpose.msra.mxu0 0
    %3064 = vmatpush.bf16.xpose.msra.mxu0 %v2326
    %3065 = vmatpush.bf16.xpose.msra.mxu0 %v2130
    %3066 = vmatmul.bf16.gmra.mxu0 %v516
    %v3067 = vpop.f32.mrf.mxu0
    %v3068 = vadd.f32 %v3055, %v3067
    %v3069 = vpop.f32.mrf.mxu0
    %3070 = vdwg.mxu0
    %3071 = vmatpush.bf16.xpose.msra.mxu0 0
    %3072 = vmatpush.bf16.xpose.msra.mxu0 0
    %3073 = vmatpush.bf16.xpose.msra.mxu0 0
    %3074 = vmatpush.bf16.xpose.msra.mxu0 0
    %3075 = vmatpush.bf16.xpose.msra.mxu0 0
    %3076 = vmatpush.bf16.xpose.msra.mxu0 0
    %3077 = vmatpush.bf16.xpose.msra.mxu0 %v2327
    %3078 = vmatpush.bf16.xpose.msra.mxu0 %v2131
    %3079 = vmatmul.bf16.gmra.mxu0 %v517
    %v3080 = vpop.f32.mrf.mxu0
    %v3081 = vadd.f32 %v3068, %v3080
    %v3082 = vpop.f32.mrf.mxu0
    %3083 = vdwg.mxu0
    %3084 = vmatpush.bf16.xpose.msra.mxu0 0
    %3085 = vmatpush.bf16.xpose.msra.mxu0 0
    %3086 = vmatpush.bf16.xpose.msra.mxu0 0
    %3087 = vmatpush.bf16.xpose.msra.mxu0 0
    %3088 = vmatpush.bf16.xpose.msra.mxu0 0
    %3089 = vmatpush.bf16.xpose.msra.mxu0 0
    %3090 = vmatpush.bf16.xpose.msra.mxu0 %v2328
    %3091 = vmatpush.bf16.xpose.msra.mxu0 %v2132
    %3092 = vmatmul.bf16.gmra.mxu0 %v518
    %v3093 = vpop.f32.mrf.mxu0
    %v3094 = vadd.f32 %v3081, %v3093
    %v3095 = vpop.f32.mrf.mxu0
    %3096 = vdwg.mxu0
    %3097 = vmatpush.bf16.xpose.msra.mxu0 0
    %3098 = vmatpush.bf16.xpose.msra.mxu0 0
    %3099 = vmatpush.bf16.xpose.msra.mxu0 0
    %3100 = vmatpush.bf16.xpose.msra.mxu0 0
    %3101 = vmatpush.bf16.xpose.msra.mxu0 0
    %3102 = vmatpush.bf16.xpose.msra.mxu0 0
    %3103 = vmatpush.bf16.xpose.msra.mxu0 %v2329
    %3104 = vmatpush.bf16.xpose.msra.mxu0 %v2133
    %3105 = vmatmul.bf16.gmra.mxu0 %v519
    %v3106 = vpop.f32.mrf.mxu0
    %v3107 = vadd.f32 %v3094, %v3106
    %v3108 = vpop.f32.mrf.mxu0
    %3109 = vdwg.mxu0
    %3110 = vmatpush.bf16.xpose.msra.mxu0 0
    %3111 = vmatpush.bf16.xpose.msra.mxu0 0
    %3112 = vmatpush.bf16.xpose.msra.mxu0 0
    %3113 = vmatpush.bf16.xpose.msra.mxu0 0
    %3114 = vmatpush.bf16.xpose.msra.mxu0 0
    %3115 = vmatpush.bf16.xpose.msra.mxu0 0
    %3116 = vmatpush.bf16.xpose.msra.mxu0 %v2330
    %3117 = vmatpush.bf16.xpose.msra.mxu0 %v2134
    %3118 = vmatmul.bf16.gmra.mxu0 %v522
    %v3119 = vpop.f32.mrf.mxu0
    %v3120 = vadd.f32 %v3107, %v3119
    %v3121 = vpop.f32.mrf.mxu0
    %3122 = vdwg.mxu0
    %3123 = vmatpush.bf16.xpose.msra.mxu0 0
    %3124 = vmatpush.bf16.xpose.msra.mxu0 0
    %3125 = vmatpush.bf16.xpose.msra.mxu0 0
    %3126 = vmatpush.bf16.xpose.msra.mxu0 0
    %3127 = vmatpush.bf16.xpose.msra.mxu0 0
    %3128 = vmatpush.bf16.xpose.msra.mxu0 0
    %3129 = vmatpush.bf16.xpose.msra.mxu0 %v2331
    %3130 = vmatpush.bf16.xpose.msra.mxu0 %v2135
    %3131 = vmatmul.bf16.gmra.mxu0 %v523
    %v3132 = vpop.f32.mrf.mxu0
    %v3133 = vadd.f32 %v3120, %v3132
    %v3134 = vpop.f32.mrf.mxu0
    %3135 = vdwg.mxu0
    %3136 = vmatpush.bf16.xpose.msra.mxu0 0
    %3137 = vmatpush.bf16.xpose.msra.mxu0 0
    %3138 = vmatpush.bf16.xpose.msra.mxu0 0
    %3139 = vmatpush.bf16.xpose.msra.mxu0 0
    %3140 = vmatpush.bf16.xpose.msra.mxu0 0
    %3141 = vmatpush.bf16.xpose.msra.mxu0 0
    %3142 = vmatpush.bf16.xpose.msra.mxu0 %v2332
    %3143 = vmatpush.bf16.xpose.msra.mxu0 %v2136
    %3144 = vmatmul.bf16.gmra.mxu0 %v524
    %v3145 = vpop.f32.mrf.mxu0
    %v3146 = vadd.f32 %v3133, %v3145
    %v3147 = vpop.f32.mrf.mxu0
    %3148 = vdwg.mxu0
    %3149 = vmatpush.bf16.xpose.msra.mxu0 0
    %3150 = vmatpush.bf16.xpose.msra.mxu0 0
    %3151 = vmatpush.bf16.xpose.msra.mxu0 0
    %3152 = vmatpush.bf16.xpose.msra.mxu0 0
    %3153 = vmatpush.bf16.xpose.msra.mxu0 0
    %3154 = vmatpush.bf16.xpose.msra.mxu0 0
    %3155 = vmatpush.bf16.xpose.msra.mxu0 %v2333
    %3156 = vmatpush.bf16.xpose.msra.mxu0 %v2137
    %3157 = vmatmul.bf16.gmra.mxu0 %v525
    %v3158 = vpop.f32.mrf.mxu0
    %v3159 = vadd.f32 %v3146, %v3158
    %v3160 = vpop.f32.mrf.mxu0
    %3161 = vdwg.mxu0
    %3162 = vmatpush.bf16.xpose.msra.mxu0 0
    %3163 = vmatpush.bf16.xpose.msra.mxu0 0
    %3164 = vmatpush.bf16.xpose.msra.mxu0 0
    %3165 = vmatpush.bf16.xpose.msra.mxu0 0
    %3166 = vmatpush.bf16.xpose.msra.mxu0 0
    %3167 = vmatpush.bf16.xpose.msra.mxu0 0
    %3168 = vmatpush.bf16.xpose.msra.mxu0 %v2334
    %3169 = vmatpush.bf16.xpose.msra.mxu0 %v2138
    %3170 = vmatmul.bf16.gmra.mxu0 %v526
    %v3171 = vpop.f32.mrf.mxu0
    %v3172 = vadd.f32 %v3159, %v3171
    %v3173 = vpop.f32.mrf.mxu0
    %3174 = vdwg.mxu0
    %3175 = vmatpush.bf16.xpose.msra.mxu0 0
    %3176 = vmatpush.bf16.xpose.msra.mxu0 0
    %3177 = vmatpush.bf16.xpose.msra.mxu0 0
    %3178 = vmatpush.bf16.xpose.msra.mxu0 0
    %3179 = vmatpush.bf16.xpose.msra.mxu0 0
    %3180 = vmatpush.bf16.xpose.msra.mxu0 0
    %3181 = vmatpush.bf16.xpose.msra.mxu0 %v2335
    %3182 = vmatpush.bf16.xpose.msra.mxu0 %v2139
    %3183 = vmatmul.bf16.gmra.mxu0 %v527
    %v3184 = vpop.f32.mrf.mxu0
    %v3185 = vadd.f32 %v3172, %v3184
    %v3186 = vpop.f32.mrf.mxu0
    %3187 = vdwg.mxu0
    %3188 = vmatpush.bf16.xpose.msra.mxu0 0
    %3189 = vmatpush.bf16.xpose.msra.mxu0 0
    %3190 = vmatpush.bf16.xpose.msra.mxu0 0
    %3191 = vmatpush.bf16.xpose.msra.mxu0 0
    %3192 = vmatpush.bf16.xpose.msra.mxu0 0
    %3193 = vmatpush.bf16.xpose.msra.mxu0 0
    %3194 = vmatpush.bf16.xpose.msra.mxu0 %v2336
    %3195 = vmatpush.bf16.xpose.msra.mxu0 %v2140
    %3196 = vmatmul.bf16.gmra.mxu0 %v528
    %v3197 = vpop.f32.mrf.mxu0
    %v3198 = vadd.f32 %v3185, %v3197
    %v3199 = vpop.f32.mrf.mxu0
    %3200 = vdwg.mxu0
    %3201 = vmatpush.bf16.xpose.msra.mxu0 0
    %3202 = vmatpush.bf16.xpose.msra.mxu0 0
    %3203 = vmatpush.bf16.xpose.msra.mxu0 0
    %3204 = vmatpush.bf16.xpose.msra.mxu0 0
    %3205 = vmatpush.bf16.xpose.msra.mxu0 0
    %3206 = vmatpush.bf16.xpose.msra.mxu0 0
    %3207 = vmatpush.bf16.xpose.msra.mxu0 %v2337
    %3208 = vmatpush.bf16.xpose.msra.mxu0 %v2141
    %3209 = vmatmul.bf16.gmra.mxu0 %v529
    %v3210 = vpop.f32.mrf.mxu0
    %v3211 = vadd.f32 %v3198, %v3210
    %v3212 = vpop.f32.mrf.mxu0
    %3213 = vdwg.mxu0
    %3214 = vmatpush.bf16.xpose.msra.mxu0 0
    %3215 = vmatpush.bf16.xpose.msra.mxu0 0
    %3216 = vmatpush.bf16.xpose.msra.mxu0 0
    %3217 = vmatpush.bf16.xpose.msra.mxu0 0
    %3218 = vmatpush.bf16.xpose.msra.mxu0 0
    %3219 = vmatpush.bf16.xpose.msra.mxu0 0
    %3220 = vmatpush.bf16.xpose.msra.mxu0 %v2338
    %3221 = vmatpush.bf16.xpose.msra.mxu0 %v2142
    %3222 = vmatmul.bf16.gmra.mxu0 %v532
    %v3223 = vpop.f32.mrf.mxu0
    %v3224 = vadd.f32 %v3211, %v3223
    %v3225 = vpop.f32.mrf.mxu0
    %3226 = vdwg.mxu0
    %3227 = vmatpush.bf16.xpose.msra.mxu0 0
    %3228 = vmatpush.bf16.xpose.msra.mxu0 0
    %3229 = vmatpush.bf16.xpose.msra.mxu0 0
    %3230 = vmatpush.bf16.xpose.msra.mxu0 0
    %3231 = vmatpush.bf16.xpose.msra.mxu0 0
    %3232 = vmatpush.bf16.xpose.msra.mxu0 0
    %3233 = vmatpush.bf16.xpose.msra.mxu0 %v2339
    %3234 = vmatpush.bf16.xpose.msra.mxu0 %v2143
    %3235 = vmatmul.bf16.gmra.mxu0 %v533
    %v3236 = vpop.f32.mrf.mxu0
    %v3237 = vadd.f32 %v3224, %v3236
    %v3238 = vpop.f32.mrf.mxu0
    %3239 = vdwg.mxu0
    %3240 = vmatpush.bf16.xpose.msra.mxu0 0
    %3241 = vmatpush.bf16.xpose.msra.mxu0 0
    %3242 = vmatpush.bf16.xpose.msra.mxu0 0
    %3243 = vmatpush.bf16.xpose.msra.mxu0 0
    %3244 = vmatpush.bf16.xpose.msra.mxu0 0
    %3245 = vmatpush.bf16.xpose.msra.mxu0 0
    %3246 = vmatpush.bf16.xpose.msra.mxu0 %v2340
    %3247 = vmatpush.bf16.xpose.msra.mxu0 %v2144
    %3248 = vmatmul.bf16.gmra.mxu0 %v534
    %v3249 = vpop.f32.mrf.mxu0
    %v3250 = vadd.f32 %v3237, %v3249
    %v3251 = vpop.f32.mrf.mxu0
    %3252 = vdwg.mxu0
    %3253 = vmatpush.bf16.xpose.msra.mxu0 0
    %3254 = vmatpush.bf16.xpose.msra.mxu0 0
    %3255 = vmatpush.bf16.xpose.msra.mxu0 0
    %3256 = vmatpush.bf16.xpose.msra.mxu0 0
    %3257 = vmatpush.bf16.xpose.msra.mxu0 0
    %3258 = vmatpush.bf16.xpose.msra.mxu0 0
    %3259 = vmatpush.bf16.xpose.msra.mxu0 %v2341
    %3260 = vmatpush.bf16.xpose.msra.mxu0 %v2145
    %3261 = vmatmul.bf16.gmra.mxu0 %v535
    %v3262 = vpop.f32.mrf.mxu0
    %v3263 = vadd.f32 %v3250, %v3262
    %v3264 = vpop.f32.mrf.mxu0
    %3265 = vdwg.mxu0
    %3266 = vmatpush.bf16.xpose.msra.mxu0 0
    %3267 = vmatpush.bf16.xpose.msra.mxu0 0
    %3268 = vmatpush.bf16.xpose.msra.mxu0 0
    %3269 = vmatpush.bf16.xpose.msra.mxu0 0
    %3270 = vmatpush.bf16.xpose.msra.mxu0 0
    %3271 = vmatpush.bf16.xpose.msra.mxu0 0
    %3272 = vmatpush.bf16.xpose.msra.mxu0 %v2342
    %3273 = vmatpush.bf16.xpose.msra.mxu0 %v2146
    %3274 = vmatmul.bf16.gmra.mxu0 %v536
    %v3275 = vpop.f32.mrf.mxu0
    %v3276 = vadd.f32 %v3263, %v3275
    %v3277 = vpop.f32.mrf.mxu0
    %3278 = vdwg.mxu0
    %3279 = vmatpush.bf16.xpose.msra.mxu0 0
    %3280 = vmatpush.bf16.xpose.msra.mxu0 0
    %3281 = vmatpush.bf16.xpose.msra.mxu0 0
    %3282 = vmatpush.bf16.xpose.msra.mxu0 0
    %3283 = vmatpush.bf16.xpose.msra.mxu0 0
    %3284 = vmatpush.bf16.xpose.msra.mxu0 0
    %3285 = vmatpush.bf16.xpose.msra.mxu0 %v2343
    %3286 = vmatpush.bf16.xpose.msra.mxu0 %v2147
    %3287 = vmatmul.bf16.gmra.mxu0 %v537
    %v3288 = vpop.f32.mrf.mxu0
    %v3289 = vadd.f32 %v3276, %v3288
    %v3290 = vpop.f32.mrf.mxu0
    %3291 = vdwg.mxu0
    %3292 = vmatpush.bf16.xpose.msra.mxu0 0
    %3293 = vmatpush.bf16.xpose.msra.mxu0 0
    %3294 = vmatpush.bf16.xpose.msra.mxu0 0
    %3295 = vmatpush.bf16.xpose.msra.mxu0 0
    %3296 = vmatpush.bf16.xpose.msra.mxu0 0
    %3297 = vmatpush.bf16.xpose.msra.mxu0 0
    %3298 = vmatpush.bf16.xpose.msra.mxu0 %v2344
    %3299 = vmatpush.bf16.xpose.msra.mxu0 %v2148
    %3300 = vmatmul.bf16.gmra.mxu0 %v538
    %v3301 = vpop.f32.mrf.mxu0
    %v3302 = vadd.f32 %v3289, %v3301
    %v3303 = vpop.f32.mrf.mxu0
    %3304 = vdwg.mxu0
    %3305 = vmatpush.bf16.xpose.msra.mxu0 0
    %3306 = vmatpush.bf16.xpose.msra.mxu0 0
    %3307 = vmatpush.bf16.xpose.msra.mxu0 0
    %3308 = vmatpush.bf16.xpose.msra.mxu0 0
    %3309 = vmatpush.bf16.xpose.msra.mxu0 0
    %3310 = vmatpush.bf16.xpose.msra.mxu0 0
    %3311 = vmatpush.bf16.xpose.msra.mxu0 %v2345
    %3312 = vmatpush.bf16.xpose.msra.mxu0 %v2149
    %3313 = vmatmul.bf16.gmra.mxu0 %v539
    %v3314 = vpop.f32.mrf.mxu0
    %v3315 = vadd.f32 %v3302, %v3314
    %v3316 = vpop.f32.mrf.mxu0
    %3317 = vdwg.mxu0
    %3318 = vmatpush.bf16.xpose.msra.mxu0 0
    %3319 = vmatpush.bf16.xpose.msra.mxu0 0
    %3320 = vmatpush.bf16.xpose.msra.mxu0 0
    %3321 = vmatpush.bf16.xpose.msra.mxu0 0
    %3322 = vmatpush.bf16.xpose.msra.mxu0 0
    %3323 = vmatpush.bf16.xpose.msra.mxu0 0
    %3324 = vmatpush.bf16.xpose.msra.mxu0 %v2346
    %3325 = vmatpush.bf16.xpose.msra.mxu0 %v2150
    %3326 = vmatmul.bf16.gmra.mxu0 %v542
    %v3327 = vpop.f32.mrf.mxu0
    %v3328 = vadd.f32 %v3315, %v3327
    %v3329 = vpop.f32.mrf.mxu0
    %3330 = vdwg.mxu0
    %3331 = vmatpush.bf16.xpose.msra.mxu0 0
    %3332 = vmatpush.bf16.xpose.msra.mxu0 0
    %3333 = vmatpush.bf16.xpose.msra.mxu0 0
    %3334 = vmatpush.bf16.xpose.msra.mxu0 0
    %3335 = vmatpush.bf16.xpose.msra.mxu0 0
    %3336 = vmatpush.bf16.xpose.msra.mxu0 0
    %3337 = vmatpush.bf16.xpose.msra.mxu0 %v2347
    %3338 = vmatpush.bf16.xpose.msra.mxu0 %v2151
    %3339 = vmatmul.bf16.gmra.mxu0 %v543
    %v3340 = vpop.f32.mrf.mxu0
    %v3341 = vadd.f32 %v3328, %v3340
    %v3342 = vpop.f32.mrf.mxu0
    %3343 = vdwg.mxu0
    %3344 = vmatpush.bf16.xpose.msra.mxu0 0
    %3345 = vmatpush.bf16.xpose.msra.mxu0 0
    %3346 = vmatpush.bf16.xpose.msra.mxu0 0
    %3347 = vmatpush.bf16.xpose.msra.mxu0 0
    %3348 = vmatpush.bf16.xpose.msra.mxu0 0
    %3349 = vmatpush.bf16.xpose.msra.mxu0 0
    %3350 = vmatpush.bf16.xpose.msra.mxu0 %v2348
    %3351 = vmatpush.bf16.xpose.msra.mxu0 %v2152
    %3352 = vmatmul.bf16.gmra.mxu0 %v544
    %v3353 = vpop.f32.mrf.mxu0
    %v3354 = vadd.f32 %v3341, %v3353
    %v3355 = vpop.f32.mrf.mxu0
    %3356 = vdwg.mxu0
    %3357 = vmatpush.bf16.xpose.msra.mxu0 0
    %3358 = vmatpush.bf16.xpose.msra.mxu0 0
    %3359 = vmatpush.bf16.xpose.msra.mxu0 0
    %3360 = vmatpush.bf16.xpose.msra.mxu0 0
    %3361 = vmatpush.bf16.xpose.msra.mxu0 0
    %3362 = vmatpush.bf16.xpose.msra.mxu0 0
    %3363 = vmatpush.bf16.xpose.msra.mxu0 %v2349
    %3364 = vmatpush.bf16.xpose.msra.mxu0 %v2153
    %3365 = vmatmul.bf16.gmra.mxu0 %v545
    %v3366 = vpop.f32.mrf.mxu0
    %v3367 = vadd.f32 %v3354, %v3366
    %v3368 = vpop.f32.mrf.mxu0
    %3369 = vdwg.mxu0
    %3370 = vmatpush.bf16.xpose.msra.mxu0 0
    %3371 = vmatpush.bf16.xpose.msra.mxu0 0
    %3372 = vmatpush.bf16.xpose.msra.mxu0 0
    %3373 = vmatpush.bf16.xpose.msra.mxu0 0
    %3374 = vmatpush.bf16.xpose.msra.mxu0 0
    %3375 = vmatpush.bf16.xpose.msra.mxu0 0
    %3376 = vmatpush.bf16.xpose.msra.mxu0 %v2350
    %3377 = vmatpush.bf16.xpose.msra.mxu0 %v2154
    %3378 = vmatmul.bf16.gmra.mxu0 %v546
    %v3379 = vpop.f32.mrf.mxu0
    %v3380 = vadd.f32 %v3367, %v3379
    %v3381 = vpop.f32.mrf.mxu0
    %3382 = vdwg.mxu0
    %3383 = vmatpush.bf16.xpose.msra.mxu0 0
    %3384 = vmatpush.bf16.xpose.msra.mxu0 0
    %3385 = vmatpush.bf16.xpose.msra.mxu0 0
    %3386 = vmatpush.bf16.xpose.msra.mxu0 0
    %3387 = vmatpush.bf16.xpose.msra.mxu0 0
    %3388 = vmatpush.bf16.xpose.msra.mxu0 0
    %3389 = vmatpush.bf16.xpose.msra.mxu0 %v2351
    %3390 = vmatpush.bf16.xpose.msra.mxu0 %v2155
    %3391 = vmatmul.bf16.gmra.mxu0 %v547
    %v3392 = vpop.f32.mrf.mxu0
    %v3393 = vadd.f32 %v3380, %v3392
    %v3394 = vpop.f32.mrf.mxu0
    %3395 = vdwg.mxu0
    %3396 = vmatpush.bf16.xpose.msra.mxu0 0
    %3397 = vmatpush.bf16.xpose.msra.mxu0 0
    %3398 = vmatpush.bf16.xpose.msra.mxu0 0
    %3399 = vmatpush.bf16.xpose.msra.mxu0 0
    %3400 = vmatpush.bf16.xpose.msra.mxu0 0
    %3401 = vmatpush.bf16.xpose.msra.mxu0 0
    %3402 = vmatpush.bf16.xpose.msra.mxu0 %v2352
    %3403 = vmatpush.bf16.xpose.msra.mxu0 %v2156
    %3404 = vmatmul.bf16.gmra.mxu0 %v548
    %v3405 = vpop.f32.mrf.mxu0
    %v3406 = vadd.f32 %v3393, %v3405
    %v3407 = vpop.f32.mrf.mxu0
    %3408 = vdwg.mxu0
    %3409 = vmatpush.bf16.xpose.msra.mxu0 0
    %3410 = vmatpush.bf16.xpose.msra.mxu0 0
    %3411 = vmatpush.bf16.xpose.msra.mxu0 0
    %3412 = vmatpush.bf16.xpose.msra.mxu0 0
    %3413 = vmatpush.bf16.xpose.msra.mxu0 0
    %3414 = vmatpush.bf16.xpose.msra.mxu0 0
    %3415 = vmatpush.bf16.xpose.msra.mxu0 %v2353
    %3416 = vmatpush.bf16.xpose.msra.mxu0 %v2157
    %3417 = vmatmul.bf16.gmra.mxu0 %v549
    %v3418 = vpop.f32.mrf.mxu0
    %v3419 = vadd.f32 %v3406, %v3418
    %v3420 = vpop.f32.mrf.mxu0
    %3421 = vdwg.mxu0
    %3422 = vmatpush.bf16.xpose.msra.mxu0 0
    %3423 = vmatpush.bf16.xpose.msra.mxu0 0
    %3424 = vmatpush.bf16.xpose.msra.mxu0 0
    %3425 = vmatpush.bf16.xpose.msra.mxu0 0
    %3426 = vmatpush.bf16.xpose.msra.mxu0 0
    %3427 = vmatpush.bf16.xpose.msra.mxu0 0
    %3428 = vmatpush.bf16.xpose.msra.mxu0 %v2354
    %3429 = vmatpush.bf16.xpose.msra.mxu0 %v2158
    %3430 = vmatmul.bf16.gmra.mxu0 %v552
    %v3431 = vpop.f32.mrf.mxu0
    %v3432 = vadd.f32 %v3419, %v3431
    %v3433 = vpop.f32.mrf.mxu0
    %3434 = vdwg.mxu0
    %3435 = vmatpush.bf16.xpose.msra.mxu0 0
    %3436 = vmatpush.bf16.xpose.msra.mxu0 0
    %3437 = vmatpush.bf16.xpose.msra.mxu0 0
    %3438 = vmatpush.bf16.xpose.msra.mxu0 0
    %3439 = vmatpush.bf16.xpose.msra.mxu0 0
    %3440 = vmatpush.bf16.xpose.msra.mxu0 0
    %3441 = vmatpush.bf16.xpose.msra.mxu0 %v2355
    %3442 = vmatpush.bf16.xpose.msra.mxu0 %v2159
    %3443 = vmatmul.bf16.gmra.mxu0 %v553
    %v3444 = vpop.f32.mrf.mxu0
    %v3445 = vadd.f32 %v3432, %v3444
    %v3446 = vpop.f32.mrf.mxu0
    %3447 = vdwg.mxu0
    %3448 = vmatpush.bf16.xpose.msra.mxu0 0
    %3449 = vmatpush.bf16.xpose.msra.mxu0 0
    %3450 = vmatpush.bf16.xpose.msra.mxu0 0
    %3451 = vmatpush.bf16.xpose.msra.mxu0 0
    %3452 = vmatpush.bf16.xpose.msra.mxu0 0
    %3453 = vmatpush.bf16.xpose.msra.mxu0 0
    %3454 = vmatpush.bf16.xpose.msra.mxu0 %v2356
    %3455 = vmatpush.bf16.xpose.msra.mxu0 %v2160
    %3456 = vmatmul.bf16.gmra.mxu0 %v554
    %v3457 = vpop.f32.mrf.mxu0
    %v3458 = vadd.f32 %v3445, %v3457
    %v3459 = vpop.f32.mrf.mxu0
    %3460 = vdwg.mxu0
    %3461 = vmatpush.bf16.xpose.msra.mxu0 0
    %3462 = vmatpush.bf16.xpose.msra.mxu0 0
    %3463 = vmatpush.bf16.xpose.msra.mxu0 0
    %3464 = vmatpush.bf16.xpose.msra.mxu0 0
    %3465 = vmatpush.bf16.xpose.msra.mxu0 0
    %3466 = vmatpush.bf16.xpose.msra.mxu0 0
    %3467 = vmatpush.bf16.xpose.msra.mxu0 %v2357
    %3468 = vmatpush.bf16.xpose.msra.mxu0 %v2161
    %3469 = vmatmul.bf16.gmra.mxu0 %v555
    %v3470 = vpop.f32.mrf.mxu0
    %v3471 = vadd.f32 %v3458, %v3470
    %v3472 = vpop.f32.mrf.mxu0
    %3473 = vdwg.mxu0
    %3474 = vmatpush.bf16.xpose.msra.mxu0 0
    %3475 = vmatpush.bf16.xpose.msra.mxu0 0
    %3476 = vmatpush.bf16.xpose.msra.mxu0 0
    %3477 = vmatpush.bf16.xpose.msra.mxu0 0
    %3478 = vmatpush.bf16.xpose.msra.mxu0 0
    %3479 = vmatpush.bf16.xpose.msra.mxu0 0
    %3480 = vmatpush.bf16.xpose.msra.mxu0 %v2358
    %3481 = vmatpush.bf16.xpose.msra.mxu0 %v2162
    %3482 = vmatmul.bf16.gmra.mxu0 %v556
    %v3483 = vpop.f32.mrf.mxu0
    %v3484 = vadd.f32 %v3471, %v3483
    %v3485 = vpop.f32.mrf.mxu0
    %3486 = vdwg.mxu0
    %3487 = vmatpush.bf16.xpose.msra.mxu0 0
    %3488 = vmatpush.bf16.xpose.msra.mxu0 0
    %3489 = vmatpush.bf16.xpose.msra.mxu0 0
    %3490 = vmatpush.bf16.xpose.msra.mxu0 0
    %3491 = vmatpush.bf16.xpose.msra.mxu0 0
    %3492 = vmatpush.bf16.xpose.msra.mxu0 0
    %3493 = vmatpush.bf16.xpose.msra.mxu0 %v2359
    %3494 = vmatpush.bf16.xpose.msra.mxu0 %v2163
    %3495 = vmatmul.bf16.gmra.mxu0 %v557
    %v3496 = vpop.f32.mrf.mxu0
    %v3497 = vadd.f32 %v3484, %v3496
    %v3498 = vpop.f32.mrf.mxu0
    %3499 = vdwg.mxu0
    %3500 = vmatpush.bf16.xpose.msra.mxu0 0
    %3501 = vmatpush.bf16.xpose.msra.mxu0 0
    %3502 = vmatpush.bf16.xpose.msra.mxu0 0
    %3503 = vmatpush.bf16.xpose.msra.mxu0 0
    %3504 = vmatpush.bf16.xpose.msra.mxu0 0
    %3505 = vmatpush.bf16.xpose.msra.mxu0 0
    %3506 = vmatpush.bf16.xpose.msra.mxu0 %v2360
    %3507 = vmatpush.bf16.xpose.msra.mxu0 %v2164
    %3508 = vmatmul.bf16.gmra.mxu0 %v558
    %v3509 = vpop.f32.mrf.mxu0
    %v3510 = vadd.f32 %v3497, %v3509
    %v3511 = vpop.f32.mrf.mxu0
    %3512 = vdwg.mxu0
    %3513 = vmatpush.bf16.xpose.msra.mxu0 0
    %3514 = vmatpush.bf16.xpose.msra.mxu0 0
    %3515 = vmatpush.bf16.xpose.msra.mxu0 0
    %3516 = vmatpush.bf16.xpose.msra.mxu0 0
    %3517 = vmatpush.bf16.xpose.msra.mxu0 0
    %3518 = vmatpush.bf16.xpose.msra.mxu0 0
    %3519 = vmatpush.bf16.xpose.msra.mxu0 %v2361
    %3520 = vmatpush.bf16.xpose.msra.mxu0 %v2165
    %3521 = vmatmul.bf16.gmra.mxu0 %v559
    %v3522 = vpop.f32.mrf.mxu0
    %v3523 = vadd.f32 %v3510, %v3522
    %v3524 = vpop.f32.mrf.mxu0
    %3525 = vdwg.mxu0
    %3526 = vmatpush.bf16.xpose.msra.mxu0 0
    %3527 = vmatpush.bf16.xpose.msra.mxu0 0
    %3528 = vmatpush.bf16.xpose.msra.mxu0 0
    %3529 = vmatpush.bf16.xpose.msra.mxu0 0
    %3530 = vmatpush.bf16.xpose.msra.mxu0 0
    %3531 = vmatpush.bf16.xpose.msra.mxu0 0
    %3532 = vmatpush.bf16.xpose.msra.mxu0 %v2362
    %3533 = vmatpush.bf16.xpose.msra.mxu0 %v2166
    %3534 = vmatmul.bf16.gmra.mxu0 %v562
    %v3535 = vpop.f32.mrf.mxu0
    %v3536 = vadd.f32 %v3523, %v3535
    %v3537 = vpop.f32.mrf.mxu0
    %3538 = vdwg.mxu0
    %3539 = vmatpush.bf16.xpose.msra.mxu0 0
    %3540 = vmatpush.bf16.xpose.msra.mxu0 0
    %3541 = vmatpush.bf16.xpose.msra.mxu0 0
    %3542 = vmatpush.bf16.xpose.msra.mxu0 0
    %3543 = vmatpush.bf16.xpose.msra.mxu0 0
    %3544 = vmatpush.bf16.xpose.msra.mxu0 0
    %3545 = vmatpush.bf16.xpose.msra.mxu0 %v2363
    %3546 = vmatpush.bf16.xpose.msra.mxu0 %v2167
    %3547 = vmatmul.bf16.gmra.mxu0 %v563
    %v3548 = vpop.f32.mrf.mxu0
    %v3549 = vadd.f32 %v3536, %v3548
    %v3550 = vpop.f32.mrf.mxu0
    %3551 = vdwg.mxu0
    %3552 = vmatpush.bf16.xpose.msra.mxu0 0
    %3553 = vmatpush.bf16.xpose.msra.mxu0 0
    %3554 = vmatpush.bf16.xpose.msra.mxu0 0
    %3555 = vmatpush.bf16.xpose.msra.mxu0 0
    %3556 = vmatpush.bf16.xpose.msra.mxu0 0
    %3557 = vmatpush.bf16.xpose.msra.mxu0 0
    %3558 = vmatpush.bf16.xpose.msra.mxu0 %v2364
    %3559 = vmatpush.bf16.xpose.msra.mxu0 %v2168
    %3560 = vmatmul.bf16.gmra.mxu0 %v564
    %v3561 = vpop.f32.mrf.mxu0
    %v3562 = vadd.f32 %v3549, %v3561
    %v3563 = vpop.f32.mrf.mxu0
    %3564 = vdwg.mxu0
    %3565 = vmatpush.bf16.xpose.msra.mxu0 0
    %3566 = vmatpush.bf16.xpose.msra.mxu0 0
    %3567 = vmatpush.bf16.xpose.msra.mxu0 0
    %3568 = vmatpush.bf16.xpose.msra.mxu0 0
    %3569 = vmatpush.bf16.xpose.msra.mxu0 0
    %3570 = vmatpush.bf16.xpose.msra.mxu0 0
    %3571 = vmatpush.bf16.xpose.msra.mxu0 %v2365
    %3572 = vmatpush.bf16.xpose.msra.mxu0 %v2169
    %3573 = vmatmul.bf16.gmra.mxu0 %v565
    %v3574 = vpop.f32.mrf.mxu0
    %v3575 = vadd.f32 %v3562, %v3574
    %v3576 = vpop.f32.mrf.mxu0
    %3577 = vdwg.mxu0
    %3578 = vmatpush.bf16.xpose.msra.mxu0 0
    %3579 = vmatpush.bf16.xpose.msra.mxu0 0
    %3580 = vmatpush.bf16.xpose.msra.mxu0 0
    %3581 = vmatpush.bf16.xpose.msra.mxu0 0
    %3582 = vmatpush.bf16.xpose.msra.mxu0 0
    %3583 = vmatpush.bf16.xpose.msra.mxu0 0
    %3584 = vmatpush.bf16.xpose.msra.mxu0 %v2366
    %3585 = vmatpush.bf16.xpose.msra.mxu0 %v2170
    %3586 = vmatmul.bf16.gmra.mxu0 %v566
    %v3587 = vpop.f32.mrf.mxu0
    %v3588 = vadd.f32 %v3575, %v3587
    %v3589 = vpop.f32.mrf.mxu0
    %3590 = vdwg.mxu0
    %3591 = vmatpush.bf16.xpose.msra.mxu0 0
    %3592 = vmatpush.bf16.xpose.msra.mxu0 0
    %3593 = vmatpush.bf16.xpose.msra.mxu0 0
    %3594 = vmatpush.bf16.xpose.msra.mxu0 0
    %3595 = vmatpush.bf16.xpose.msra.mxu0 0
    %3596 = vmatpush.bf16.xpose.msra.mxu0 0
    %3597 = vmatpush.bf16.xpose.msra.mxu0 %v2367
    %3598 = vmatpush.bf16.xpose.msra.mxu0 %v2171
    %3599 = vmatmul.bf16.gmra.mxu0 %v567
    %v3600 = vpop.f32.mrf.mxu0
    %v3601 = vadd.f32 %v3588, %v3600
    %v3602 = vpop.f32.mrf.mxu0
    %3603 = vdwg.mxu0
    %3604 = vmatpush.bf16.xpose.msra.mxu0 0
    %3605 = vmatpush.bf16.xpose.msra.mxu0 0
    %3606 = vmatpush.bf16.xpose.msra.mxu0 0
    %3607 = vmatpush.bf16.xpose.msra.mxu0 0
    %3608 = vmatpush.bf16.xpose.msra.mxu0 0
    %3609 = vmatpush.bf16.xpose.msra.mxu0 0
    %3610 = vmatpush.bf16.xpose.msra.mxu0 %v2368
    %3611 = vmatpush.bf16.xpose.msra.mxu0 %v2172
    %3612 = vmatmul.bf16.gmra.mxu0 %v568
    %v3613 = vpop.f32.mrf.mxu0
    %v3614 = vadd.f32 %v3601, %v3613
    %v3615 = vpop.f32.mrf.mxu0
    %3616 = vdwg.mxu0
    %3617 = vmatpush.bf16.xpose.msra.mxu0 0
    %3618 = vmatpush.bf16.xpose.msra.mxu0 0
    %3619 = vmatpush.bf16.xpose.msra.mxu0 0
    %3620 = vmatpush.bf16.xpose.msra.mxu0 0
    %3621 = vmatpush.bf16.xpose.msra.mxu0 0
    %3622 = vmatpush.bf16.xpose.msra.mxu0 0
    %3623 = vmatpush.bf16.xpose.msra.mxu0 %v2369
    %3624 = vmatpush.bf16.xpose.msra.mxu0 %v2173
    %3625 = vmatmul.bf16.gmra.mxu0 %v569
    %v3626 = vpop.f32.mrf.mxu0
    %v3627 = vadd.f32 %v3614, %v3626
    %v3628 = vpop.f32.mrf.mxu0
    %3629 = vdwg.mxu0
    %3630 = vmatpush.bf16.xpose.msra.mxu0 0
    %3631 = vmatpush.bf16.xpose.msra.mxu0 0
    %3632 = vmatpush.bf16.xpose.msra.mxu0 0
    %3633 = vmatpush.bf16.xpose.msra.mxu0 0
    %3634 = vmatpush.bf16.xpose.msra.mxu0 0
    %3635 = vmatpush.bf16.xpose.msra.mxu0 0
    %3636 = vmatpush.bf16.xpose.msra.mxu0 %v2370
    %3637 = vmatpush.bf16.xpose.msra.mxu0 %v2174
    %3638 = vmatmul.bf16.gmra.mxu0 %v572
    %v3639 = vpop.f32.mrf.mxu0
    %v3640 = vadd.f32 %v3627, %v3639
    %v3641 = vpop.f32.mrf.mxu0
    %3642 = vdwg.mxu0
    %3643 = vmatpush.bf16.xpose.msra.mxu0 0
    %3644 = vmatpush.bf16.xpose.msra.mxu0 0
    %3645 = vmatpush.bf16.xpose.msra.mxu0 0
    %3646 = vmatpush.bf16.xpose.msra.mxu0 0
    %3647 = vmatpush.bf16.xpose.msra.mxu0 0
    %3648 = vmatpush.bf16.xpose.msra.mxu0 0
    %3649 = vmatpush.bf16.xpose.msra.mxu0 %v2371
    %3650 = vmatpush.bf16.xpose.msra.mxu0 %v2175
    %3651 = vmatmul.bf16.gmra.mxu0 %v573
    %v3652 = vpop.f32.mrf.mxu0
    %v3653 = vadd.f32 %v3640, %v3652
    %v3654 = vpop.f32.mrf.mxu0
    %3655 = vdwg.mxu0
    %3656 = vmatpush.bf16.xpose.msra.mxu0 0
    %3657 = vmatpush.bf16.xpose.msra.mxu0 0
    %3658 = vmatpush.bf16.xpose.msra.mxu0 0
    %3659 = vmatpush.bf16.xpose.msra.mxu0 0
    %3660 = vmatpush.bf16.xpose.msra.mxu0 0
    %3661 = vmatpush.bf16.xpose.msra.mxu0 0
    %3662 = vmatpush.bf16.xpose.msra.mxu0 %v2372
    %3663 = vmatpush.bf16.xpose.msra.mxu0 %v2176
    %3664 = vmatmul.bf16.gmra.mxu0 %v574
    %v3665 = vpop.f32.mrf.mxu0
    %v3666 = vadd.f32 %v3653, %v3665
    %v3667 = vpop.f32.mrf.mxu0
    %3668 = vdwg.mxu0
    %3669 = vmatpush.bf16.xpose.msra.mxu0 0
    %3670 = vmatpush.bf16.xpose.msra.mxu0 0
    %3671 = vmatpush.bf16.xpose.msra.mxu0 0
    %3672 = vmatpush.bf16.xpose.msra.mxu0 0
    %3673 = vmatpush.bf16.xpose.msra.mxu0 0
    %3674 = vmatpush.bf16.xpose.msra.mxu0 0
    %3675 = vmatpush.bf16.xpose.msra.mxu0 %v2373
    %3676 = vmatpush.bf16.xpose.msra.mxu0 %v2177
    %3677 = vmatmul.bf16.gmra.mxu0 %v575
    %v3678 = vpop.f32.mrf.mxu0
    %v3679 = vadd.f32 %v3666, %v3678
    %v3680 = vpop.f32.mrf.mxu0
    %3681 = vdwg.mxu0
    %3682 = vmatpush.bf16.xpose.msra.mxu0 0
    %3683 = vmatpush.bf16.xpose.msra.mxu0 0
    %3684 = vmatpush.bf16.xpose.msra.mxu0 0
    %3685 = vmatpush.bf16.xpose.msra.mxu0 0
    %3686 = vmatpush.bf16.xpose.msra.mxu0 0
    %3687 = vmatpush.bf16.xpose.msra.mxu0 0
    %3688 = vmatpush.bf16.xpose.msra.mxu0 %v2374
    %3689 = vmatpush.bf16.xpose.msra.mxu0 %v2178
    %3690 = vmatmul.bf16.gmra.mxu0 %v576
    %v3691 = vpop.f32.mrf.mxu0
    %v3692 = vadd.f32 %v3679, %v3691
    %v3693 = vpop.f32.mrf.mxu0
    %3694 = vdwg.mxu0
    %3695 = vmatpush.bf16.xpose.msra.mxu0 0
    %3696 = vmatpush.bf16.xpose.msra.mxu0 0
    %3697 = vmatpush.bf16.xpose.msra.mxu0 0
    %3698 = vmatpush.bf16.xpose.msra.mxu0 0
    %3699 = vmatpush.bf16.xpose.msra.mxu0 0
    %3700 = vmatpush.bf16.xpose.msra.mxu0 0
    %3701 = vmatpush.bf16.xpose.msra.mxu0 %v2375
    %3702 = vmatpush.bf16.xpose.msra.mxu0 %v2179
    %3703 = vmatmul.bf16.gmra.mxu0 %v577
    %v3704 = vpop.f32.mrf.mxu0
    %v3705 = vadd.f32 %v3692, %v3704
    %v3706 = vpop.f32.mrf.mxu0
    %3707 = vdwg.mxu0
    %3708 = vmatpush.bf16.xpose.msra.mxu0 0
    %3709 = vmatpush.bf16.xpose.msra.mxu0 0
    %3710 = vmatpush.bf16.xpose.msra.mxu0 0
    %3711 = vmatpush.bf16.xpose.msra.mxu0 0
    %3712 = vmatpush.bf16.xpose.msra.mxu0 0
    %3713 = vmatpush.bf16.xpose.msra.mxu0 0
    %3714 = vmatpush.bf16.xpose.msra.mxu0 %v2376
    %3715 = vmatpush.bf16.xpose.msra.mxu0 %v2180
    %3716 = vmatmul.bf16.gmra.mxu0 %v578
    %v3717 = vpop.f32.mrf.mxu0
    %v3718 = vadd.f32 %v3705, %v3717
    %v3719 = vpop.f32.mrf.mxu0
    %3720 = vdwg.mxu0
    %3721 = vmatpush.bf16.xpose.msra.mxu0 0
    %3722 = vmatpush.bf16.xpose.msra.mxu0 0
    %3723 = vmatpush.bf16.xpose.msra.mxu0 0
    %3724 = vmatpush.bf16.xpose.msra.mxu0 0
    %3725 = vmatpush.bf16.xpose.msra.mxu0 0
    %3726 = vmatpush.bf16.xpose.msra.mxu0 0
    %3727 = vmatpush.bf16.xpose.msra.mxu0 %v2377
    %3728 = vmatpush.bf16.xpose.msra.mxu0 %v2181
    %3729 = vmatmul.bf16.gmra.mxu0 %v579
    %v3730 = vpop.f32.mrf.mxu0
    %v3731 = vadd.f32 %v3718, %v3730
    %v3732 = vpop.f32.mrf.mxu0
    %3733 = vdwg.mxu0
    %3734 = vmatpush.bf16.xpose.msra.mxu0 0
    %3735 = vmatpush.bf16.xpose.msra.mxu0 0
    %3736 = vmatpush.bf16.xpose.msra.mxu0 0
    %3737 = vmatpush.bf16.xpose.msra.mxu0 0
    %3738 = vmatpush.bf16.xpose.msra.mxu0 0
    %3739 = vmatpush.bf16.xpose.msra.mxu0 0
    %3740 = vmatpush.bf16.xpose.msra.mxu0 %v2378
    %3741 = vmatpush.bf16.xpose.msra.mxu0 %v2182
    %3742 = vmatmul.bf16.gmra.mxu0 %v582
    %v3743 = vpop.f32.mrf.mxu0
    %v3744 = vadd.f32 %v3731, %v3743
    %v3745 = vpop.f32.mrf.mxu0
    %3746 = vdwg.mxu0
    %3747 = vmatpush.bf16.xpose.msra.mxu0 0
    %3748 = vmatpush.bf16.xpose.msra.mxu0 0
    %3749 = vmatpush.bf16.xpose.msra.mxu0 0
    %3750 = vmatpush.bf16.xpose.msra.mxu0 0
    %3751 = vmatpush.bf16.xpose.msra.mxu0 0
    %3752 = vmatpush.bf16.xpose.msra.mxu0 0
    %3753 = vmatpush.bf16.xpose.msra.mxu0 %v2379
    %3754 = vmatpush.bf16.xpose.msra.mxu0 %v2183
    %3755 = vmatmul.bf16.gmra.mxu0 %v583
    %v3756 = vpop.f32.mrf.mxu0
    %v3757 = vadd.f32 %v3744, %v3756
    %v3758 = vpop.f32.mrf.mxu0
    %3759 = vdwg.mxu0
    %3760 = vmatpush.bf16.xpose.msra.mxu0 0
    %3761 = vmatpush.bf16.xpose.msra.mxu0 0
    %3762 = vmatpush.bf16.xpose.msra.mxu0 0
    %3763 = vmatpush.bf16.xpose.msra.mxu0 0
    %3764 = vmatpush.bf16.xpose.msra.mxu0 0
    %3765 = vmatpush.bf16.xpose.msra.mxu0 0
    %3766 = vmatpush.bf16.xpose.msra.mxu0 %v2380
    %3767 = vmatpush.bf16.xpose.msra.mxu0 %v2184
    %3768 = vmatmul.bf16.gmra.mxu0 %v584
    %v3769 = vpop.f32.mrf.mxu0
    %v3770 = vadd.f32 %v3757, %v3769
    %v3771 = vpop.f32.mrf.mxu0
    %3772 = vdwg.mxu0
    %3773 = vmatpush.bf16.xpose.msra.mxu0 0
    %3774 = vmatpush.bf16.xpose.msra.mxu0 0
    %3775 = vmatpush.bf16.xpose.msra.mxu0 0
    %3776 = vmatpush.bf16.xpose.msra.mxu0 0
    %3777 = vmatpush.bf16.xpose.msra.mxu0 0
    %3778 = vmatpush.bf16.xpose.msra.mxu0 0
    %3779 = vmatpush.bf16.xpose.msra.mxu0 %v2381
    %3780 = vmatpush.bf16.xpose.msra.mxu0 %v2185
    %3781 = vmatmul.bf16.gmra.mxu0 %v585
    %v3782 = vpop.f32.mrf.mxu0
    %v3783 = vadd.f32 %v3770, %v3782
    %v3784 = vpop.f32.mrf.mxu0
    %3785 = vdwg.mxu0
    %3786 = vmatpush.bf16.xpose.msra.mxu0 0
    %3787 = vmatpush.bf16.xpose.msra.mxu0 0
    %3788 = vmatpush.bf16.xpose.msra.mxu0 0
    %3789 = vmatpush.bf16.xpose.msra.mxu0 0
    %3790 = vmatpush.bf16.xpose.msra.mxu0 0
    %3791 = vmatpush.bf16.xpose.msra.mxu0 0
    %3792 = vmatpush.bf16.xpose.msra.mxu0 %v2382
    %3793 = vmatpush.bf16.xpose.msra.mxu0 %v2186
    %3794 = vmatmul.bf16.gmra.mxu0 %v586
    %v3795 = vpop.f32.mrf.mxu0
    %v3796 = vadd.f32 %v3783, %v3795
    %v3797 = vpop.f32.mrf.mxu0
    %3798 = vdwg.mxu0
    %3799 = vmatpush.bf16.xpose.msra.mxu0 0
    %3800 = vmatpush.bf16.xpose.msra.mxu0 0
    %3801 = vmatpush.bf16.xpose.msra.mxu0 0
    %3802 = vmatpush.bf16.xpose.msra.mxu0 0
    %3803 = vmatpush.bf16.xpose.msra.mxu0 0
    %3804 = vmatpush.bf16.xpose.msra.mxu0 0
    %3805 = vmatpush.bf16.xpose.msra.mxu0 %v2383
    %3806 = vmatpush.bf16.xpose.msra.mxu0 %v2187
    %3807 = vmatmul.bf16.gmra.mxu0 %v587
    %v3808 = vpop.f32.mrf.mxu0
    %v3809 = vadd.f32 %v3796, %v3808
    %v3810 = vpop.f32.mrf.mxu0
    %3811 = vdwg.mxu0
    %3812 = vmatpush.bf16.xpose.msra.mxu0 0
    %3813 = vmatpush.bf16.xpose.msra.mxu0 0
    %3814 = vmatpush.bf16.xpose.msra.mxu0 0
    %3815 = vmatpush.bf16.xpose.msra.mxu0 0
    %3816 = vmatpush.bf16.xpose.msra.mxu0 0
    %3817 = vmatpush.bf16.xpose.msra.mxu0 0
    %3818 = vmatpush.bf16.xpose.msra.mxu0 %v2384
    %3819 = vmatpush.bf16.xpose.msra.mxu0 %v2188
    %3820 = vmatmul.bf16.gmra.mxu0 %v588
    %v3821 = vpop.f32.mrf.mxu0
    %v3822 = vadd.f32 %v3809, %v3821
    %v3823 = vpop.f32.mrf.mxu0
    %3824 = vdwg.mxu0
    %3825 = vmatpush.bf16.xpose.msra.mxu0 0
    %3826 = vmatpush.bf16.xpose.msra.mxu0 0
    %3827 = vmatpush.bf16.xpose.msra.mxu0 0
    %3828 = vmatpush.bf16.xpose.msra.mxu0 0
    %3829 = vmatpush.bf16.xpose.msra.mxu0 0
    %3830 = vmatpush.bf16.xpose.msra.mxu0 0
    %3831 = vmatpush.bf16.xpose.msra.mxu0 %v2385
    %3832 = vmatpush.bf16.xpose.msra.mxu0 %v2189
    %3833 = vmatmul.bf16.gmra.mxu0 %v589
    %v3834 = vpop.f32.mrf.mxu0
    %v3835 = vadd.f32 %v3822, %v3834
    %v3836 = vpop.f32.mrf.mxu0
    %3837 = vdwg.mxu0
    %3838 = vmatpush.bf16.xpose.msra.mxu0 0
    %3839 = vmatpush.bf16.xpose.msra.mxu0 0
    %3840 = vmatpush.bf16.xpose.msra.mxu0 0
    %3841 = vmatpush.bf16.xpose.msra.mxu0 0
    %3842 = vmatpush.bf16.xpose.msra.mxu0 0
    %3843 = vmatpush.bf16.xpose.msra.mxu0 0
    %3844 = vmatpush.bf16.xpose.msra.mxu0 %v2386
    %3845 = vmatpush.bf16.xpose.msra.mxu0 %v2190
    %3846 = vmatmul.bf16.gmra.mxu0 %v592
    %v3847 = vpop.f32.mrf.mxu0
    %v3848 = vadd.f32 %v3835, %v3847
    %v3849 = vpop.f32.mrf.mxu0
    %3850 = vdwg.mxu0
    %3851 = vmatpush.bf16.xpose.msra.mxu0 0
    %3852 = vmatpush.bf16.xpose.msra.mxu0 0
    %3853 = vmatpush.bf16.xpose.msra.mxu0 0
    %3854 = vmatpush.bf16.xpose.msra.mxu0 0
    %3855 = vmatpush.bf16.xpose.msra.mxu0 0
    %3856 = vmatpush.bf16.xpose.msra.mxu0 0
    %3857 = vmatpush.bf16.xpose.msra.mxu0 %v2387
    %3858 = vmatpush.bf16.xpose.msra.mxu0 %v2191
    %3859 = vmatmul.bf16.gmra.mxu0 %v593
    %v3860 = vpop.f32.mrf.mxu0
    %v3861 = vadd.f32 %v3848, %v3860
    %v3862 = vpop.f32.mrf.mxu0
    %3863 = vdwg.mxu0
    %3864 = vmatpush.bf16.xpose.msra.mxu0 0
    %3865 = vmatpush.bf16.xpose.msra.mxu0 0
    %3866 = vmatpush.bf16.xpose.msra.mxu0 0
    %3867 = vmatpush.bf16.xpose.msra.mxu0 0
    %3868 = vmatpush.bf16.xpose.msra.mxu0 0
    %3869 = vmatpush.bf16.xpose.msra.mxu0 0
    %3870 = vmatpush.bf16.xpose.msra.mxu0 %v2388
    %3871 = vmatpush.bf16.xpose.msra.mxu0 %v2192
    %3872 = vmatmul.bf16.gmra.mxu0 %v594
    %v3873 = vpop.f32.mrf.mxu0
    %v3874 = vadd.f32 %v3861, %v3873
    %v3875 = vpop.f32.mrf.mxu0
    %3876 = vdwg.mxu0
    %3877 = vmatpush.bf16.xpose.msra.mxu0 0
    %3878 = vmatpush.bf16.xpose.msra.mxu0 0
    %3879 = vmatpush.bf16.xpose.msra.mxu0 0
    %3880 = vmatpush.bf16.xpose.msra.mxu0 0
    %3881 = vmatpush.bf16.xpose.msra.mxu0 0
    %3882 = vmatpush.bf16.xpose.msra.mxu0 0
    %3883 = vmatpush.bf16.xpose.msra.mxu0 %v2389
    %3884 = vmatpush.bf16.xpose.msra.mxu0 %v2193
    %3885 = vmatmul.bf16.gmra.mxu0 %v595
    %v3886 = vpop.f32.mrf.mxu0
    %v3887 = vadd.f32 %v3874, %v3886
    %v3888 = vpop.f32.mrf.mxu0
    %3889 = vdwg.mxu0
    %3890 = vmatpush.bf16.xpose.msra.mxu0 0
    %3891 = vmatpush.bf16.xpose.msra.mxu0 0
    %3892 = vmatpush.bf16.xpose.msra.mxu0 0
    %3893 = vmatpush.bf16.xpose.msra.mxu0 0
    %3894 = vmatpush.bf16.xpose.msra.mxu0 0
    %3895 = vmatpush.bf16.xpose.msra.mxu0 0
    %3896 = vmatpush.bf16.xpose.msra.mxu0 %v2390
    %3897 = vmatpush.bf16.xpose.msra.mxu0 %v2194
    %3898 = vmatmul.bf16.gmra.mxu0 %v596
    %v3899 = vpop.f32.mrf.mxu0
    %v3900 = vadd.f32 %v3887, %v3899
    %v3901 = vpop.f32.mrf.mxu0
    %3902 = vdwg.mxu0
    %3903 = vmatpush.bf16.xpose.msra.mxu0 0
    %3904 = vmatpush.bf16.xpose.msra.mxu0 0
    %3905 = vmatpush.bf16.xpose.msra.mxu0 0
    %3906 = vmatpush.bf16.xpose.msra.mxu0 0
    %3907 = vmatpush.bf16.xpose.msra.mxu0 0
    %3908 = vmatpush.bf16.xpose.msra.mxu0 0
    %3909 = vmatpush.bf16.xpose.msra.mxu0 %v2391
    %3910 = vmatpush.bf16.xpose.msra.mxu0 %v2195
    %3911 = vmatmul.bf16.gmra.mxu0 %v597
    %v3912 = vpop.f32.mrf.mxu0
    %v3913 = vadd.f32 %v3900, %v3912
    %v3914 = vpop.f32.mrf.mxu0
    %3915 = vdwg.mxu0
    %3916 = vmatpush.bf16.xpose.msra.mxu0 0
    %3917 = vmatpush.bf16.xpose.msra.mxu0 0
    %3918 = vmatpush.bf16.xpose.msra.mxu0 0
    %3919 = vmatpush.bf16.xpose.msra.mxu0 0
    %3920 = vmatpush.bf16.xpose.msra.mxu0 0
    %3921 = vmatpush.bf16.xpose.msra.mxu0 0
    %3922 = vmatpush.bf16.xpose.msra.mxu0 %v2392
    %3923 = vmatpush.bf16.xpose.msra.mxu0 %v2196
    %3924 = vmatmul.bf16.gmra.mxu0 %v598
    %v3925 = vpop.f32.mrf.mxu0
    %v3926 = vadd.f32 %v3913, %v3925
    %v3927 = vpop.f32.mrf.mxu0
    %3928 = vdwg.mxu0
    %3929 = vmatpush.bf16.xpose.msra.mxu0 0
    %3930 = vmatpush.bf16.xpose.msra.mxu0 0
    %3931 = vmatpush.bf16.xpose.msra.mxu0 0
    %3932 = vmatpush.bf16.xpose.msra.mxu0 0
    %3933 = vmatpush.bf16.xpose.msra.mxu0 0
    %3934 = vmatpush.bf16.xpose.msra.mxu0 0
    %3935 = vmatpush.bf16.xpose.msra.mxu0 %v2393
    %3936 = vmatpush.bf16.xpose.msra.mxu0 %v2197
    %3937 = vmatmul.bf16.gmra.mxu0 %v599
    %v3938 = vpop.f32.mrf.mxu0
    %v3939 = vadd.f32 %v3926, %v3938
    %v3940 = vpop.f32.mrf.mxu0
    %3941 = vdwg.mxu0
    %3942 = vmatpush.bf16.xpose.msra.mxu0 0
    %3943 = vmatpush.bf16.xpose.msra.mxu0 0
    %3944 = vmatpush.bf16.xpose.msra.mxu0 0
    %3945 = vmatpush.bf16.xpose.msra.mxu0 0
    %3946 = vmatpush.bf16.xpose.msra.mxu0 0
    %3947 = vmatpush.bf16.xpose.msra.mxu0 0
    %3948 = vmatpush.bf16.xpose.msra.mxu0 %v2394
    %3949 = vmatpush.bf16.xpose.msra.mxu0 %v2198
    %3950 = vmatmul.bf16.gmra.mxu0 %v602
    %v3951 = vpop.f32.mrf.mxu0
    %v3952 = vadd.f32 %v3939, %v3951
    %v3953 = vpop.f32.mrf.mxu0
    %3954 = vdwg.mxu0
    %3955 = vmatpush.bf16.xpose.msra.mxu0 0
    %3956 = vmatpush.bf16.xpose.msra.mxu0 0
    %3957 = vmatpush.bf16.xpose.msra.mxu0 0
    %3958 = vmatpush.bf16.xpose.msra.mxu0 0
    %3959 = vmatpush.bf16.xpose.msra.mxu0 0
    %3960 = vmatpush.bf16.xpose.msra.mxu0 0
    %3961 = vmatpush.bf16.xpose.msra.mxu0 %v2395
    %3962 = vmatpush.bf16.xpose.msra.mxu0 %v2199
    %3963 = vmatmul.bf16.gmra.mxu0 %v603
    %v3964 = vpop.f32.mrf.mxu0
    %v3965 = vadd.f32 %v3952, %v3964
    %v3966 = vpop.f32.mrf.mxu0
    %3967 = vdwg.mxu0
    %3968 = vmatpush.bf16.xpose.msra.mxu0 0
    %3969 = vmatpush.bf16.xpose.msra.mxu0 0
    %3970 = vmatpush.bf16.xpose.msra.mxu0 0
    %3971 = vmatpush.bf16.xpose.msra.mxu0 0
    %3972 = vmatpush.bf16.xpose.msra.mxu0 0
    %3973 = vmatpush.bf16.xpose.msra.mxu0 0
    %3974 = vmatpush.bf16.xpose.msra.mxu0 %v2396
    %3975 = vmatpush.bf16.xpose.msra.mxu0 %v2200
    %3976 = vmatmul.bf16.gmra.mxu0 %v604
    %v3977 = vpop.f32.mrf.mxu0
    %v3978 = vadd.f32 %v3965, %v3977
    %v3979 = vpop.f32.mrf.mxu0
    %3980 = vdwg.mxu0
    %3981 = vmatpush.bf16.xpose.msra.mxu0 0
    %3982 = vmatpush.bf16.xpose.msra.mxu0 0
    %3983 = vmatpush.bf16.xpose.msra.mxu0 0
    %3984 = vmatpush.bf16.xpose.msra.mxu0 0
    %3985 = vmatpush.bf16.xpose.msra.mxu0 0
    %3986 = vmatpush.bf16.xpose.msra.mxu0 0
    %3987 = vmatpush.bf16.xpose.msra.mxu0 %v2397
    %3988 = vmatpush.bf16.xpose.msra.mxu0 %v2201
    %3989 = vmatmul.bf16.gmra.mxu0 %v605
    %v3990 = vpop.f32.mrf.mxu0
    %v3991 = vadd.f32 %v3978, %v3990
    %v3992 = vpop.f32.mrf.mxu0
    %3993 = vdwg.mxu0
    %3994 = vmatpush.bf16.xpose.msra.mxu0 0
    %3995 = vmatpush.bf16.xpose.msra.mxu0 0
    %3996 = vmatpush.bf16.xpose.msra.mxu0 0
    %3997 = vmatpush.bf16.xpose.msra.mxu0 0
    %3998 = vmatpush.bf16.xpose.msra.mxu0 0
    %3999 = vmatpush.bf16.xpose.msra.mxu0 0
    %4000 = vmatpush.bf16.xpose.msra.mxu0 %v2398
    %4001 = vmatpush.bf16.xpose.msra.mxu0 %v2202
    %4002 = vmatmul.bf16.gmra.mxu0 %v606
    %v4003 = vpop.f32.mrf.mxu0
    %v4004 = vadd.f32 %v3991, %v4003
    %v4005 = vpop.f32.mrf.mxu0
    %4006 = vdwg.mxu0
    %4007 = vmatpush.bf16.xpose.msra.mxu0 0
    %4008 = vmatpush.bf16.xpose.msra.mxu0 0
    %4009 = vmatpush.bf16.xpose.msra.mxu0 0
    %4010 = vmatpush.bf16.xpose.msra.mxu0 0
    %4011 = vmatpush.bf16.xpose.msra.mxu0 0
    %4012 = vmatpush.bf16.xpose.msra.mxu0 0
    %4013 = vmatpush.bf16.xpose.msra.mxu0 %v2399
    %4014 = vmatpush.bf16.xpose.msra.mxu0 %v2203
    %4015 = vmatmul.bf16.gmra.mxu0 %v607
    %v4016 = vpop.f32.mrf.mxu0
    %v4017 = vadd.f32 %v4004, %v4016
    %v4018 = vpop.f32.mrf.mxu0
    %4019 = vdwg.mxu0
    %4020 = vmatpush.bf16.xpose.msra.mxu0 0
    %4021 = vmatpush.bf16.xpose.msra.mxu0 0
    %4022 = vmatpush.bf16.xpose.msra.mxu0 0
    %4023 = vmatpush.bf16.xpose.msra.mxu0 0
    %4024 = vmatpush.bf16.xpose.msra.mxu0 0
    %4025 = vmatpush.bf16.xpose.msra.mxu0 0
    %4026 = vmatpush.bf16.xpose.msra.mxu0 %v2400
    %4027 = vmatpush.bf16.xpose.msra.mxu0 %v2204
    %4028 = vmatmul.bf16.gmra.mxu0 %v608
    %v4029 = vpop.f32.mrf.mxu0
    %v4030 = vadd.f32 %v4017, %v4029
    %v4031 = vpop.f32.mrf.mxu0
    %4032 = vdwg.mxu0
    %4033 = vmatpush.bf16.xpose.msra.mxu0 0
    %4034 = vmatpush.bf16.xpose.msra.mxu0 0
    %4035 = vmatpush.bf16.xpose.msra.mxu0 0
    %4036 = vmatpush.bf16.xpose.msra.mxu0 0
    %4037 = vmatpush.bf16.xpose.msra.mxu0 0
    %4038 = vmatpush.bf16.xpose.msra.mxu0 0
    %4039 = vmatpush.bf16.xpose.msra.mxu0 %v2401
    %4040 = vmatpush.bf16.xpose.msra.mxu0 %v2205
    %4041 = vmatmul.bf16.gmra.mxu0 %v609
    %v4042 = vpop.f32.mrf.mxu0
    %v4043 = vadd.f32 %v4030, %v4042
    %v4044 = vpop.f32.mrf.mxu0
    %4045 = vdwg.mxu0
    %4046 = vmatpush.bf16.xpose.msra.mxu0 0
    %4047 = vmatpush.bf16.xpose.msra.mxu0 0
    %4048 = vmatpush.bf16.xpose.msra.mxu0 0
    %4049 = vmatpush.bf16.xpose.msra.mxu0 0
    %4050 = vmatpush.bf16.xpose.msra.mxu0 0
    %4051 = vmatpush.bf16.xpose.msra.mxu0 0
    %4052 = vmatpush.bf16.xpose.msra.mxu0 %v2402
    %4053 = vmatpush.bf16.xpose.msra.mxu0 %v2206
    %4054 = vmatmul.bf16.gmra.mxu0 %v612
    %v4055 = vpop.f32.mrf.mxu0
    %v4056 = vadd.f32 %v4043, %v4055
    %v4057 = vpop.f32.mrf.mxu0
    %4058 = vdwg.mxu0
    %4059 = vmatpush.bf16.xpose.msra.mxu0 0
    %4060 = vmatpush.bf16.xpose.msra.mxu0 0
    %4061 = vmatpush.bf16.xpose.msra.mxu0 0
    %4062 = vmatpush.bf16.xpose.msra.mxu0 0
    %4063 = vmatpush.bf16.xpose.msra.mxu0 0
    %4064 = vmatpush.bf16.xpose.msra.mxu0 0
    %4065 = vmatpush.bf16.xpose.msra.mxu0 %v2403
    %4066 = vmatpush.bf16.xpose.msra.mxu0 %v2207
    %4067 = vmatmul.bf16.gmra.mxu0 %v613
    %v4068 = vpop.f32.mrf.mxu0
    %v4069 = vadd.f32 %v4056, %v4068
    %v4070 = vpop.f32.mrf.mxu0
    %4071 = vdwg.mxu0
    %4072 = vmatpush.bf16.xpose.msra.mxu0 0
    %4073 = vmatpush.bf16.xpose.msra.mxu0 0
    %4074 = vmatpush.bf16.xpose.msra.mxu0 0
    %4075 = vmatpush.bf16.xpose.msra.mxu0 0
    %4076 = vmatpush.bf16.xpose.msra.mxu0 0
    %4077 = vmatpush.bf16.xpose.msra.mxu0 0
    %4078 = vmatpush.bf16.xpose.msra.mxu0 %v2404
    %4079 = vmatpush.bf16.xpose.msra.mxu0 %v2208
    %4080 = vmatmul.bf16.gmra.mxu0 %v614
    %v4081 = vpop.f32.mrf.mxu0
    %v4082 = vadd.f32 %v4069, %v4081
    %v4083 = vpop.f32.mrf.mxu0
    %4084 = vdwg.mxu0
    %4085 = vmatpush.bf16.xpose.msra.mxu0 0
    %4086 = vmatpush.bf16.xpose.msra.mxu0 0
    %4087 = vmatpush.bf16.xpose.msra.mxu0 0
    %4088 = vmatpush.bf16.xpose.msra.mxu0 0
    %4089 = vmatpush.bf16.xpose.msra.mxu0 0
    %4090 = vmatpush.bf16.xpose.msra.mxu0 0
    %4091 = vmatpush.bf16.xpose.msra.mxu0 %v2405
    %4092 = vmatpush.bf16.xpose.msra.mxu0 %v2209
    %4093 = vmatmul.bf16.gmra.mxu0 %v615
    %v4094 = vpop.f32.mrf.mxu0
    %v4095 = vadd.f32 %v4082, %v4094
    %v4096 = vpop.f32.mrf.mxu0
    %4097 = vdwg.mxu0
    %4098 = vmatpush.bf16.xpose.msra.mxu0 0
    %4099 = vmatpush.bf16.xpose.msra.mxu0 0
    %4100 = vmatpush.bf16.xpose.msra.mxu0 0
    %4101 = vmatpush.bf16.xpose.msra.mxu0 0
    %4102 = vmatpush.bf16.xpose.msra.mxu0 0
    %4103 = vmatpush.bf16.xpose.msra.mxu0 0
    %4104 = vmatpush.bf16.xpose.msra.mxu0 %v2406
    %4105 = vmatpush.bf16.xpose.msra.mxu0 %v2210
    %4106 = vmatmul.bf16.gmra.mxu0 %v616
    %v4107 = vpop.f32.mrf.mxu0
    %v4108 = vadd.f32 %v4095, %v4107
    %v4109 = vpop.f32.mrf.mxu0
    %4110 = vdwg.mxu0
    %4111 = vmatpush.bf16.xpose.msra.mxu0 0
    %4112 = vmatpush.bf16.xpose.msra.mxu0 0
    %4113 = vmatpush.bf16.xpose.msra.mxu0 0
    %4114 = vmatpush.bf16.xpose.msra.mxu0 0
    %4115 = vmatpush.bf16.xpose.msra.mxu0 0
    %4116 = vmatpush.bf16.xpose.msra.mxu0 0
    %4117 = vmatpush.bf16.xpose.msra.mxu0 %v2407
    %4118 = vmatpush.bf16.xpose.msra.mxu0 %v2211
    %4119 = vmatmul.bf16.gmra.mxu0 %v617
    %v4120 = vpop.f32.mrf.mxu0
    %v4121 = vadd.f32 %v4108, %v4120
    %v4122 = vpop.f32.mrf.mxu0
    %4123 = vdwg.mxu0
    %4124 = vmatpush.bf16.xpose.msra.mxu0 0
    %4125 = vmatpush.bf16.xpose.msra.mxu0 0
    %4126 = vmatpush.bf16.xpose.msra.mxu0 0
    %4127 = vmatpush.bf16.xpose.msra.mxu0 0
    %4128 = vmatpush.bf16.xpose.msra.mxu0 0
    %4129 = vmatpush.bf16.xpose.msra.mxu0 0
    %4130 = vmatpush.bf16.xpose.msra.mxu0 %v2408
    %4131 = vmatpush.bf16.xpose.msra.mxu0 %v2212
    %4132 = vmatmul.bf16.gmra.mxu0 %v618
    %v4133 = vpop.f32.mrf.mxu0
    %v4134 = vadd.f32 %v4121, %v4133
    %v4135 = vpop.f32.mrf.mxu0
    %4136 = vdwg.mxu0
    %4137 = vmatpush.bf16.xpose.msra.mxu0 0
    %4138 = vmatpush.bf16.xpose.msra.mxu0 0
    %4139 = vmatpush.bf16.xpose.msra.mxu0 0
    %4140 = vmatpush.bf16.xpose.msra.mxu0 0
    %4141 = vmatpush.bf16.xpose.msra.mxu0 0
    %4142 = vmatpush.bf16.xpose.msra.mxu0 0
    %4143 = vmatpush.bf16.xpose.msra.mxu0 %v2409
    %4144 = vmatpush.bf16.xpose.msra.mxu0 %v2213
    %4145 = vmatmul.bf16.gmra.mxu0 %v619
    %v4146 = vpop.f32.mrf.mxu0
    %v4147 = vadd.f32 %v4134, %v4146
    %v4148 = vpop.f32.mrf.mxu0
    %4149 = vdwg.mxu0
    %4150 = vmatpush.bf16.xpose.msra.mxu0 0
    %4151 = vmatpush.bf16.xpose.msra.mxu0 0
    %4152 = vmatpush.bf16.xpose.msra.mxu0 0
    %4153 = vmatpush.bf16.xpose.msra.mxu0 0
    %4154 = vmatpush.bf16.xpose.msra.mxu0 0
    %4155 = vmatpush.bf16.xpose.msra.mxu0 0
    %4156 = vmatpush.bf16.xpose.msra.mxu0 %v2410
    %4157 = vmatpush.bf16.xpose.msra.mxu0 %v2214
    %4158 = vmatmul.bf16.gmra.mxu0 %v622
    %v4159 = vpop.f32.mrf.mxu0
    %v4160 = vadd.f32 %v4147, %v4159
    %v4161 = vpop.f32.mrf.mxu0
    %4162 = vdwg.mxu0
    %4163 = vmatpush.bf16.xpose.msra.mxu0 0
    %4164 = vmatpush.bf16.xpose.msra.mxu0 0
    %4165 = vmatpush.bf16.xpose.msra.mxu0 0
    %4166 = vmatpush.bf16.xpose.msra.mxu0 0
    %4167 = vmatpush.bf16.xpose.msra.mxu0 0
    %4168 = vmatpush.bf16.xpose.msra.mxu0 0
    %4169 = vmatpush.bf16.xpose.msra.mxu0 %v2411
    %4170 = vmatpush.bf16.xpose.msra.mxu0 %v2215
    %4171 = vmatmul.bf16.gmra.mxu0 %v623
    %v4172 = vpop.f32.mrf.mxu0
    %v4173 = vadd.f32 %v4160, %v4172
    %v4174 = vpop.f32.mrf.mxu0
    %4175 = vdwg.mxu0
    %4176 = vmatpush.bf16.xpose.msra.mxu0 0
    %4177 = vmatpush.bf16.xpose.msra.mxu0 0
    %4178 = vmatpush.bf16.xpose.msra.mxu0 0
    %4179 = vmatpush.bf16.xpose.msra.mxu0 0
    %4180 = vmatpush.bf16.xpose.msra.mxu0 0
    %4181 = vmatpush.bf16.xpose.msra.mxu0 0
    %4182 = vmatpush.bf16.xpose.msra.mxu0 %v2412
    %4183 = vmatpush.bf16.xpose.msra.mxu0 %v2216
    %4184 = vmatmul.bf16.gmra.mxu0 %v624
    %v4185 = vpop.f32.mrf.mxu0
    %v4186 = vadd.f32 %v4173, %v4185
    %v4187 = vpop.f32.mrf.mxu0
    %4188 = vdwg.mxu0
    %4189 = vmatpush.bf16.xpose.msra.mxu0 0
    %4190 = vmatpush.bf16.xpose.msra.mxu0 0
    %4191 = vmatpush.bf16.xpose.msra.mxu0 0
    %4192 = vmatpush.bf16.xpose.msra.mxu0 0
    %4193 = vmatpush.bf16.xpose.msra.mxu0 0
    %4194 = vmatpush.bf16.xpose.msra.mxu0 0
    %4195 = vmatpush.bf16.xpose.msra.mxu0 %v2413
    %4196 = vmatpush.bf16.xpose.msra.mxu0 %v2217
    %4197 = vmatmul.bf16.gmra.mxu0 %v625
    %v4198 = vpop.f32.mrf.mxu0
    %v4199 = vadd.f32 %v4186, %v4198
    %v4200 = vpop.f32.mrf.mxu0
    %4201 = vdwg.mxu0
    %4202 = vmatpush.bf16.xpose.msra.mxu0 0
    %4203 = vmatpush.bf16.xpose.msra.mxu0 0
    %4204 = vmatpush.bf16.xpose.msra.mxu0 0
    %4205 = vmatpush.bf16.xpose.msra.mxu0 0
    %4206 = vmatpush.bf16.xpose.msra.mxu0 0
    %4207 = vmatpush.bf16.xpose.msra.mxu0 0
    %4208 = vmatpush.bf16.xpose.msra.mxu0 %v2414
    %4209 = vmatpush.bf16.xpose.msra.mxu0 %v2218
    %4210 = vmatmul.bf16.gmra.mxu0 %v626
    %v4211 = vpop.f32.mrf.mxu0
    %v4212 = vadd.f32 %v4199, %v4211
    %v4213 = vpop.f32.mrf.mxu0
    %4214 = vdwg.mxu0
    %4215 = vmatpush.bf16.xpose.msra.mxu0 0
    %4216 = vmatpush.bf16.xpose.msra.mxu0 0
    %4217 = vmatpush.bf16.xpose.msra.mxu0 0
    %4218 = vmatpush.bf16.xpose.msra.mxu0 0
    %4219 = vmatpush.bf16.xpose.msra.mxu0 0
    %4220 = vmatpush.bf16.xpose.msra.mxu0 0
    %4221 = vmatpush.bf16.xpose.msra.mxu0 %v2415
    %4222 = vmatpush.bf16.xpose.msra.mxu0 %v2219
    %4223 = vmatmul.bf16.gmra.mxu0 %v627
    %v4224 = vpop.f32.mrf.mxu0
    %v4225 = vadd.f32 %v4212, %v4224
    %v4226 = vpop.f32.mrf.mxu0
    %4227 = vdwg.mxu0
    %4228 = vmatpush.bf16.xpose.msra.mxu0 0
    %4229 = vmatpush.bf16.xpose.msra.mxu0 0
    %4230 = vmatpush.bf16.xpose.msra.mxu0 0
    %4231 = vmatpush.bf16.xpose.msra.mxu0 0
    %4232 = vmatpush.bf16.xpose.msra.mxu0 0
    %4233 = vmatpush.bf16.xpose.msra.mxu0 0
    %4234 = vmatpush.bf16.xpose.msra.mxu0 %v2416
    %4235 = vmatpush.bf16.xpose.msra.mxu0 %v2220
    %4236 = vmatmul.bf16.gmra.mxu0 %v628
    %v4237 = vpop.f32.mrf.mxu0
    %v4238 = vadd.f32 %v4225, %v4237
    %v4239 = vpop.f32.mrf.mxu0
    %4240 = vdwg.mxu0
    %4241 = vmatpush.bf16.xpose.msra.mxu0 0
    %4242 = vmatpush.bf16.xpose.msra.mxu0 0
    %4243 = vmatpush.bf16.xpose.msra.mxu0 0
    %4244 = vmatpush.bf16.xpose.msra.mxu0 0
    %4245 = vmatpush.bf16.xpose.msra.mxu0 0
    %4246 = vmatpush.bf16.xpose.msra.mxu0 0
    %4247 = vmatpush.bf16.xpose.msra.mxu0 %v2417
    %4248 = vmatpush.bf16.xpose.msra.mxu0 %v2221
    %4249 = vmatmul.bf16.gmra.mxu0 %v629
    %v4250 = vpop.f32.mrf.mxu0
    %v4251 = vadd.f32 %v4238, %v4250
    %v4252 = vpop.f32.mrf.mxu0
    %4253 = vdwg.mxu0
    %4254 = vmatpush.bf16.xpose.msra.mxu0 0
    %4255 = vmatpush.bf16.xpose.msra.mxu0 0
    %4256 = vmatpush.bf16.xpose.msra.mxu0 0
    %4257 = vmatpush.bf16.xpose.msra.mxu0 0
    %4258 = vmatpush.bf16.xpose.msra.mxu0 0
    %4259 = vmatpush.bf16.xpose.msra.mxu0 0
    %4260 = vmatpush.bf16.xpose.msra.mxu0 %v2418
    %4261 = vmatpush.bf16.xpose.msra.mxu0 %v2222
    %4262 = vmatmul.bf16.gmra.mxu0 %v632
    %v4263 = vpop.f32.mrf.mxu0
    %v4264 = vadd.f32 %v4251, %v4263
    %v4265 = vpop.f32.mrf.mxu0
    %4266 = vdwg.mxu0
    %4267 = vmatpush.bf16.xpose.msra.mxu0 0
    %4268 = vmatpush.bf16.xpose.msra.mxu0 0
    %4269 = vmatpush.bf16.xpose.msra.mxu0 0
    %4270 = vmatpush.bf16.xpose.msra.mxu0 0
    %4271 = vmatpush.bf16.xpose.msra.mxu0 0
    %4272 = vmatpush.bf16.xpose.msra.mxu0 0
    %4273 = vmatpush.bf16.xpose.msra.mxu0 %v2419
    %4274 = vmatpush.bf16.xpose.msra.mxu0 %v2223
    %4275 = vmatmul.bf16.gmra.mxu0 %v633
    %v4276 = vpop.f32.mrf.mxu0
    %v4277 = vadd.f32 %v4264, %v4276
    %v4278 = vpop.f32.mrf.mxu0
    %4279 = vdwg.mxu0
    %4280 = vmatpush.bf16.xpose.msra.mxu0 0
    %4281 = vmatpush.bf16.xpose.msra.mxu0 0
    %4282 = vmatpush.bf16.xpose.msra.mxu0 0
    %4283 = vmatpush.bf16.xpose.msra.mxu0 0
    %4284 = vmatpush.bf16.xpose.msra.mxu0 0
    %4285 = vmatpush.bf16.xpose.msra.mxu0 0
    %4286 = vmatpush.bf16.xpose.msra.mxu0 %v2420
    %4287 = vmatpush.bf16.xpose.msra.mxu0 %v2224
    %4288 = vmatmul.bf16.gmra.mxu0 %v634
    %v4289 = vpop.f32.mrf.mxu0
    %v4290 = vadd.f32 %v4277, %v4289
    %v4291 = vpop.f32.mrf.mxu0
    %4292 = vdwg.mxu0
    %4293 = vmatpush.bf16.xpose.msra.mxu0 0
    %4294 = vmatpush.bf16.xpose.msra.mxu0 0
    %4295 = vmatpush.bf16.xpose.msra.mxu0 0
    %4296 = vmatpush.bf16.xpose.msra.mxu0 0
    %4297 = vmatpush.bf16.xpose.msra.mxu0 0
    %4298 = vmatpush.bf16.xpose.msra.mxu0 0
    %4299 = vmatpush.bf16.xpose.msra.mxu0 %v2421
    %4300 = vmatpush.bf16.xpose.msra.mxu0 %v2225
    %4301 = vmatmul.bf16.gmra.mxu0 %v635
    %v4302 = vpop.f32.mrf.mxu0
    %v4303 = vadd.f32 %v4290, %v4302
    %v4304 = vpop.f32.mrf.mxu0
    %4305 = vdwg.mxu0
    %4306 = vmatpush.bf16.xpose.msra.mxu0 0
    %4307 = vmatpush.bf16.xpose.msra.mxu0 0
    %4308 = vmatpush.bf16.xpose.msra.mxu0 0
    %4309 = vmatpush.bf16.xpose.msra.mxu0 0
    %4310 = vmatpush.bf16.xpose.msra.mxu0 0
    %4311 = vmatpush.bf16.xpose.msra.mxu0 0
    %4312 = vmatpush.bf16.xpose.msra.mxu0 %v2422
    %4313 = vmatpush.bf16.xpose.msra.mxu0 %v2226
    %4314 = vmatmul.bf16.gmra.mxu0 %v636
    %v4315 = vpop.f32.mrf.mxu0
    %v4316 = vadd.f32 %v4303, %v4315
    %v4317 = vpop.f32.mrf.mxu0
    %4318 = vdwg.mxu0
    %4319 = vmatpush.bf16.xpose.msra.mxu0 0
    %4320 = vmatpush.bf16.xpose.msra.mxu0 0
    %4321 = vmatpush.bf16.xpose.msra.mxu0 0
    %4322 = vmatpush.bf16.xpose.msra.mxu0 0
    %4323 = vmatpush.bf16.xpose.msra.mxu0 0
    %4324 = vmatpush.bf16.xpose.msra.mxu0 0
    %4325 = vmatpush.bf16.xpose.msra.mxu0 %v2423
    %4326 = vmatpush.bf16.xpose.msra.mxu0 %v2227
    %4327 = vmatmul.bf16.gmra.mxu0 %v637
    %v4328 = vpop.f32.mrf.mxu0
    %v4329 = vadd.f32 %v4316, %v4328
    %v4330 = vpop.f32.mrf.mxu0
    %4331 = vdwg.mxu0
    %4332 = vmatpush.bf16.xpose.msra.mxu0 0
    %4333 = vmatpush.bf16.xpose.msra.mxu0 0
    %4334 = vmatpush.bf16.xpose.msra.mxu0 0
    %4335 = vmatpush.bf16.xpose.msra.mxu0 0
    %4336 = vmatpush.bf16.xpose.msra.mxu0 0
    %4337 = vmatpush.bf16.xpose.msra.mxu0 0
    %4338 = vmatpush.bf16.xpose.msra.mxu0 %v2424
    %4339 = vmatpush.bf16.xpose.msra.mxu0 %v2228
    %4340 = vmatmul.bf16.gmra.mxu0 %v638
    %v4341 = vpop.f32.mrf.mxu0
    %v4342 = vadd.f32 %v4329, %v4341
    %v4343 = vpop.f32.mrf.mxu0
    %4344 = vdwg.mxu0
    %4345 = vmatpush.bf16.xpose.msra.mxu0 0
    %4346 = vmatpush.bf16.xpose.msra.mxu0 0
    %4347 = vmatpush.bf16.xpose.msra.mxu0 0
    %4348 = vmatpush.bf16.xpose.msra.mxu0 0
    %4349 = vmatpush.bf16.xpose.msra.mxu0 0
    %4350 = vmatpush.bf16.xpose.msra.mxu0 0
    %4351 = vmatpush.bf16.xpose.msra.mxu0 %v2425
    %4352 = vmatpush.bf16.xpose.msra.mxu0 %v2229
    %4353 = vmatmul.bf16.gmra.mxu0 %v639
    %v4354 = vpop.f32.mrf.mxu0
    %v4355 = vadd.f32 %v4342, %v4354
    %v4356 = vpop.f32.mrf.mxu0
    %4357 = vdwg.mxu0
    %4358 = vmatpush.bf16.xpose.msra.mxu0 0
    %4359 = vmatpush.bf16.xpose.msra.mxu0 0
    %4360 = vmatpush.bf16.xpose.msra.mxu0 0
    %4361 = vmatpush.bf16.xpose.msra.mxu0 0
    %4362 = vmatpush.bf16.xpose.msra.mxu0 0
    %4363 = vmatpush.bf16.xpose.msra.mxu0 0
    %4364 = vmatpush.bf16.xpose.msra.mxu0 %v2426
    %4365 = vmatpush.bf16.xpose.msra.mxu0 %v2230
    %4366 = vmatmul.bf16.gmra.mxu0 %v642
    %v4367 = vpop.f32.mrf.mxu0
    %v4368 = vadd.f32 %v4355, %v4367
    %v4369 = vpop.f32.mrf.mxu0
    %4370 = vdwg.mxu0
    %4371 = vmatpush.bf16.xpose.msra.mxu0 0
    %4372 = vmatpush.bf16.xpose.msra.mxu0 0
    %4373 = vmatpush.bf16.xpose.msra.mxu0 0
    %4374 = vmatpush.bf16.xpose.msra.mxu0 0
    %4375 = vmatpush.bf16.xpose.msra.mxu0 0
    %4376 = vmatpush.bf16.xpose.msra.mxu0 0
    %4377 = vmatpush.bf16.xpose.msra.mxu0 %v2427
    %4378 = vmatpush.bf16.xpose.msra.mxu0 %v2231
    %4379 = vmatmul.bf16.gmra.mxu0 %v643
    %v4380 = vpop.f32.mrf.mxu0
    %v4381 = vadd.f32 %v4368, %v4380
    %v4382 = vpop.f32.mrf.mxu0
    %4383 = vdwg.mxu0
    %4384 = vmatpush.bf16.xpose.msra.mxu0 0
    %4385 = vmatpush.bf16.xpose.msra.mxu0 0
    %4386 = vmatpush.bf16.xpose.msra.mxu0 0
    %4387 = vmatpush.bf16.xpose.msra.mxu0 0
    %4388 = vmatpush.bf16.xpose.msra.mxu0 0
    %4389 = vmatpush.bf16.xpose.msra.mxu0 0
    %4390 = vmatpush.bf16.xpose.msra.mxu0 %v2428
    %4391 = vmatpush.bf16.xpose.msra.mxu0 %v2232
    %4392 = vmatmul.bf16.gmra.mxu0 %v644
    %v4393 = vpop.f32.mrf.mxu0
    %v4394 = vadd.f32 %v4381, %v4393
    %v4395 = vpop.f32.mrf.mxu0
    %4396 = vdwg.mxu0
    %4397 = vmatpush.bf16.xpose.msra.mxu0 0
    %4398 = vmatpush.bf16.xpose.msra.mxu0 0
    %4399 = vmatpush.bf16.xpose.msra.mxu0 0
    %4400 = vmatpush.bf16.xpose.msra.mxu0 0
    %4401 = vmatpush.bf16.xpose.msra.mxu0 0
    %4402 = vmatpush.bf16.xpose.msra.mxu0 0
    %4403 = vmatpush.bf16.xpose.msra.mxu0 %v2429
    %4404 = vmatpush.bf16.xpose.msra.mxu0 %v2233
    %4405 = vmatmul.bf16.gmra.mxu0 %v645
    %v4406 = vpop.f32.mrf.mxu0
    %v4407 = vadd.f32 %v4394, %v4406
    %v4408 = vpop.f32.mrf.mxu0
    %4409 = vdwg.mxu0
    %4410 = vmatpush.bf16.xpose.msra.mxu0 0
    %4411 = vmatpush.bf16.xpose.msra.mxu0 0
    %4412 = vmatpush.bf16.xpose.msra.mxu0 0
    %4413 = vmatpush.bf16.xpose.msra.mxu0 0
    %4414 = vmatpush.bf16.xpose.msra.mxu0 0
    %4415 = vmatpush.bf16.xpose.msra.mxu0 0
    %4416 = vmatpush.bf16.xpose.msra.mxu0 %v2430
    %4417 = vmatpush.bf16.xpose.msra.mxu0 %v2234
    %4418 = vmatmul.bf16.gmra.mxu0 %v646
    %v4419 = vpop.f32.mrf.mxu0
    %v4420 = vadd.f32 %v4407, %v4419
    %v4421 = vpop.f32.mrf.mxu0
    %4422 = vdwg.mxu0
    %4423 = vmatpush.bf16.xpose.msra.mxu0 0
    %4424 = vmatpush.bf16.xpose.msra.mxu0 0
    %4425 = vmatpush.bf16.xpose.msra.mxu0 0
    %4426 = vmatpush.bf16.xpose.msra.mxu0 0
    %4427 = vmatpush.bf16.xpose.msra.mxu0 0
    %4428 = vmatpush.bf16.xpose.msra.mxu0 0
    %4429 = vmatpush.bf16.xpose.msra.mxu0 %v2431
    %4430 = vmatpush.bf16.xpose.msra.mxu0 %v2235
    %4431 = vmatmul.bf16.gmra.mxu0 %v647
    %v4432 = vpop.f32.mrf.mxu0
    %v4433 = vadd.f32 %v4420, %v4432
    %v4434 = vpop.f32.mrf.mxu0
    %4435 = vdwg.mxu0
    %4436 = vmatpush.bf16.xpose.msra.mxu0 0
    %4437 = vmatpush.bf16.xpose.msra.mxu0 0
    %4438 = vmatpush.bf16.xpose.msra.mxu0 0
    %4439 = vmatpush.bf16.xpose.msra.mxu0 0
    %4440 = vmatpush.bf16.xpose.msra.mxu0 0
    %4441 = vmatpush.bf16.xpose.msra.mxu0 0
    %4442 = vmatpush.bf16.xpose.msra.mxu0 %v2432
    %4443 = vmatpush.bf16.xpose.msra.mxu0 %v2236
    %4444 = vmatmul.bf16.gmra.mxu0 %v648
    %v4445 = vpop.f32.mrf.mxu0
    %v4446 = vadd.f32 %v4433, %v4445
    %v4447 = vpop.f32.mrf.mxu0
    %4448 = vdwg.mxu0
    %4449 = vmatpush.bf16.xpose.msra.mxu0 0
    %4450 = vmatpush.bf16.xpose.msra.mxu0 0
    %4451 = vmatpush.bf16.xpose.msra.mxu0 0
    %4452 = vmatpush.bf16.xpose.msra.mxu0 0
    %4453 = vmatpush.bf16.xpose.msra.mxu0 0
    %4454 = vmatpush.bf16.xpose.msra.mxu0 0
    %4455 = vmatpush.bf16.xpose.msra.mxu0 %v2433
    %4456 = vmatpush.bf16.xpose.msra.mxu0 %v2237
    %4457 = vmatmul.bf16.gmra.mxu0 %v649
    %v4458 = vpop.f32.mrf.mxu0
    %v4459 = vadd.f32 %v4446, %v4458
    %v4460 = vpop.f32.mrf.mxu0
    %4461 = vdwg.mxu0
    %4462 = vmatpush.bf16.xpose.msra.mxu0 0
    %4463 = vmatpush.bf16.xpose.msra.mxu0 0
    %4464 = vmatpush.bf16.xpose.msra.mxu0 0
    %4465 = vmatpush.bf16.xpose.msra.mxu0 0
    %4466 = vmatpush.bf16.xpose.msra.mxu0 0
    %4467 = vmatpush.bf16.xpose.msra.mxu0 0
    %4468 = vmatpush.bf16.xpose.msra.mxu0 %v2434
    %4469 = vmatpush.bf16.xpose.msra.mxu0 %v2238
    %4470 = vmatmul.bf16.gmra.mxu0 %v652
    %v4471 = vpop.f32.mrf.mxu0
    %v4472 = vadd.f32 %v4459, %v4471
    %v4473 = vpop.f32.mrf.mxu0
    %4474 = vdwg.mxu0
    %4475 = vmatpush.bf16.xpose.msra.mxu0 0
    %4476 = vmatpush.bf16.xpose.msra.mxu0 0
    %4477 = vmatpush.bf16.xpose.msra.mxu0 0
    %4478 = vmatpush.bf16.xpose.msra.mxu0 0
    %4479 = vmatpush.bf16.xpose.msra.mxu0 0
    %4480 = vmatpush.bf16.xpose.msra.mxu0 0
    %4481 = vmatpush.bf16.xpose.msra.mxu0 %v2435
    %4482 = vmatpush.bf16.xpose.msra.mxu0 %v2239
    %4483 = vmatmul.bf16.gmra.mxu0 %v653
    %v4484 = vpop.f32.mrf.mxu0
    %v4485 = vadd.f32 %v4472, %v4484
    %v4486 = vpop.f32.mrf.mxu0
    %4487 = vdwg.mxu0
    %4488 = vmatpush.bf16.xpose.msra.mxu0 0
    %4489 = vmatpush.bf16.xpose.msra.mxu0 0
    %4490 = vmatpush.bf16.xpose.msra.mxu0 0
    %4491 = vmatpush.bf16.xpose.msra.mxu0 0
    %4492 = vmatpush.bf16.xpose.msra.mxu0 0
    %4493 = vmatpush.bf16.xpose.msra.mxu0 0
    %4494 = vmatpush.bf16.xpose.msra.mxu0 %v2436
    %4495 = vmatpush.bf16.xpose.msra.mxu0 %v2240
    %4496 = vmatmul.bf16.gmra.mxu0 %v654
    %v4497 = vpop.f32.mrf.mxu0
    %v4498 = vadd.f32 %v4485, %v4497
    %v4499 = vpop.f32.mrf.mxu0
    %4500 = vdwg.mxu0
    %4501 = vmatpush.bf16.xpose.msra.mxu0 0
    %4502 = vmatpush.bf16.xpose.msra.mxu0 0
    %4503 = vmatpush.bf16.xpose.msra.mxu0 0
    %4504 = vmatpush.bf16.xpose.msra.mxu0 0
    %4505 = vmatpush.bf16.xpose.msra.mxu0 0
    %4506 = vmatpush.bf16.xpose.msra.mxu0 0
    %4507 = vmatpush.bf16.xpose.msra.mxu0 %v2437
    %4508 = vmatpush.bf16.xpose.msra.mxu0 %v2241
    %4509 = vmatmul.bf16.gmra.mxu0 %v655
    %v4510 = vpop.f32.mrf.mxu0
    %v4511 = vadd.f32 %v4498, %v4510
    %v4512 = vpop.f32.mrf.mxu0
    %4513 = vdwg.mxu0
    %4514 = vmatpush.bf16.xpose.msra.mxu0 0
    %4515 = vmatpush.bf16.xpose.msra.mxu0 0
    %4516 = vmatpush.bf16.xpose.msra.mxu0 0
    %4517 = vmatpush.bf16.xpose.msra.mxu0 0
    %4518 = vmatpush.bf16.xpose.msra.mxu0 0
    %4519 = vmatpush.bf16.xpose.msra.mxu0 0
    %4520 = vmatpush.bf16.xpose.msra.mxu0 %v2438
    %4521 = vmatpush.bf16.xpose.msra.mxu0 %v2242
    %4522 = vmatmul.bf16.gmra.mxu0 %v656
    %v4523 = vpop.f32.mrf.mxu0
    %v4524 = vadd.f32 %v4511, %v4523
    %v4525 = vpop.f32.mrf.mxu0
    %4526 = vdwg.mxu0
    %4527 = vmatpush.bf16.xpose.msra.mxu0 0
    %4528 = vmatpush.bf16.xpose.msra.mxu0 0
    %4529 = vmatpush.bf16.xpose.msra.mxu0 0
    %4530 = vmatpush.bf16.xpose.msra.mxu0 0
    %4531 = vmatpush.bf16.xpose.msra.mxu0 0
    %4532 = vmatpush.bf16.xpose.msra.mxu0 0
    %4533 = vmatpush.bf16.xpose.msra.mxu0 %v2439
    %4534 = vmatpush.bf16.xpose.msra.mxu0 %v2243
    %4535 = vmatmul.bf16.gmra.mxu0 %v657
    %v4536 = vpop.f32.mrf.mxu0
    %v4537 = vadd.f32 %v4524, %v4536
    %v4538 = vpop.f32.mrf.mxu0
    %4539 = vdwg.mxu0
    %4540 = vmatpush.bf16.xpose.msra.mxu0 0
    %4541 = vmatpush.bf16.xpose.msra.mxu0 0
    %4542 = vmatpush.bf16.xpose.msra.mxu0 0
    %4543 = vmatpush.bf16.xpose.msra.mxu0 0
    %4544 = vmatpush.bf16.xpose.msra.mxu0 0
    %4545 = vmatpush.bf16.xpose.msra.mxu0 0
    %4546 = vmatpush.bf16.xpose.msra.mxu0 %v2440
    %4547 = vmatpush.bf16.xpose.msra.mxu0 %v2244
    %4548 = vmatmul.bf16.gmra.mxu0 %v658
    %v4549 = vpop.f32.mrf.mxu0
    %v4550 = vadd.f32 %v4537, %v4549
    %v4551 = vpop.f32.mrf.mxu0
    %4552 = vdwg.mxu0
    %4553 = vmatpush.bf16.xpose.msra.mxu0 0
    %4554 = vmatpush.bf16.xpose.msra.mxu0 0
    %4555 = vmatpush.bf16.xpose.msra.mxu0 0
    %4556 = vmatpush.bf16.xpose.msra.mxu0 0
    %4557 = vmatpush.bf16.xpose.msra.mxu0 0
    %4558 = vmatpush.bf16.xpose.msra.mxu0 0
    %4559 = vmatpush.bf16.xpose.msra.mxu0 %v2441
    %4560 = vmatpush.bf16.xpose.msra.mxu0 %v2245
    %4561 = vmatmul.bf16.gmra.mxu0 %v659
    %v4562 = vpop.f32.mrf.mxu0
    %v4563 = vadd.f32 %v4550, %v4562
    %v4564 = vpop.f32.mrf.mxu0
    %4565 = vdwg.mxu0
    %4566 = vmatpush.bf16.xpose.msra.mxu0 0
    %4567 = vmatpush.bf16.xpose.msra.mxu0 0
    %4568 = vmatpush.bf16.xpose.msra.mxu0 0
    %4569 = vmatpush.bf16.xpose.msra.mxu0 0
    %4570 = vmatpush.bf16.xpose.msra.mxu0 0
    %4571 = vmatpush.bf16.xpose.msra.mxu0 0
    %4572 = vmatpush.bf16.xpose.msra.mxu0 %v2442
    %4573 = vmatpush.bf16.xpose.msra.mxu0 %v2246
    %4574 = vmatmul.bf16.gmra.mxu0 %v662
    %v4575 = vpop.f32.mrf.mxu0
    %v4576 = vadd.f32 %v4563, %v4575
    %v4577 = vpop.f32.mrf.mxu0
    %4578 = vdwg.mxu0
    %4579 = vmatpush.bf16.xpose.msra.mxu0 0
    %4580 = vmatpush.bf16.xpose.msra.mxu0 0
    %4581 = vmatpush.bf16.xpose.msra.mxu0 0
    %4582 = vmatpush.bf16.xpose.msra.mxu0 0
    %4583 = vmatpush.bf16.xpose.msra.mxu0 0
    %4584 = vmatpush.bf16.xpose.msra.mxu0 0
    %4585 = vmatpush.bf16.xpose.msra.mxu0 %v2443
    %4586 = vmatpush.bf16.xpose.msra.mxu0 %v2247
    %4587 = vmatmul.bf16.gmra.mxu0 %v663
    %v4588 = vpop.f32.mrf.mxu0
    %v4589 = vadd.f32 %v4576, %v4588
    %v4590 = vpop.f32.mrf.mxu0
    %4591 = vdwg.mxu0
    %4592 = vmatpush.bf16.xpose.msra.mxu0 0
    %4593 = vmatpush.bf16.xpose.msra.mxu0 0
    %4594 = vmatpush.bf16.xpose.msra.mxu0 0
    %4595 = vmatpush.bf16.xpose.msra.mxu0 0
    %4596 = vmatpush.bf16.xpose.msra.mxu0 0
    %4597 = vmatpush.bf16.xpose.msra.mxu0 0
    %4598 = vmatpush.bf16.xpose.msra.mxu0 %v2444
    %4599 = vmatpush.bf16.xpose.msra.mxu0 %v2248
    %4600 = vmatmul.bf16.gmra.mxu0 %v664
    %v4601 = vpop.f32.mrf.mxu0
    %v4602 = vadd.f32 %v4589, %v4601
    %v4603 = vpop.f32.mrf.mxu0
    %4604 = vdwg.mxu0
    %4605 = vmatpush.bf16.xpose.msra.mxu0 0
    %4606 = vmatpush.bf16.xpose.msra.mxu0 0
    %4607 = vmatpush.bf16.xpose.msra.mxu0 0
    %4608 = vmatpush.bf16.xpose.msra.mxu0 0
    %4609 = vmatpush.bf16.xpose.msra.mxu0 0
    %4610 = vmatpush.bf16.xpose.msra.mxu0 0
    %4611 = vmatpush.bf16.xpose.msra.mxu0 %v2445
    %4612 = vmatpush.bf16.xpose.msra.mxu0 %v2249
    %4613 = vmatmul.bf16.gmra.mxu0 %v665
    %v4614 = vpop.f32.mrf.mxu0
    %v4615 = vadd.f32 %v4602, %v4614
    %v4616 = vpop.f32.mrf.mxu0
    %4617 = vdwg.mxu0
    %4618 = vmatpush.bf16.xpose.msra.mxu0 0
    %4619 = vmatpush.bf16.xpose.msra.mxu0 0
    %4620 = vmatpush.bf16.xpose.msra.mxu0 0
    %4621 = vmatpush.bf16.xpose.msra.mxu0 0
    %4622 = vmatpush.bf16.xpose.msra.mxu0 0
    %4623 = vmatpush.bf16.xpose.msra.mxu0 0
    %4624 = vmatpush.bf16.xpose.msra.mxu0 %v2446
    %4625 = vmatpush.bf16.xpose.msra.mxu0 %v2250
    %4626 = vmatmul.bf16.gmra.mxu0 %v666
    %v4627 = vpop.f32.mrf.mxu0
    %v4628 = vadd.f32 %v4615, %v4627
    %v4629 = vpop.f32.mrf.mxu0
    %4630 = vdwg.mxu0
    %4631 = vmatpush.bf16.xpose.msra.mxu0 0
    %4632 = vmatpush.bf16.xpose.msra.mxu0 0
    %4633 = vmatpush.bf16.xpose.msra.mxu0 0
    %4634 = vmatpush.bf16.xpose.msra.mxu0 0
    %4635 = vmatpush.bf16.xpose.msra.mxu0 0
    %4636 = vmatpush.bf16.xpose.msra.mxu0 0
    %4637 = vmatpush.bf16.xpose.msra.mxu0 %v2447
    %4638 = vmatpush.bf16.xpose.msra.mxu0 %v2251
    %4639 = vmatmul.bf16.gmra.mxu0 %v667
    %v4640 = vpop.f32.mrf.mxu0
    %v4641 = vadd.f32 %v4628, %v4640
    %v4642 = vpop.f32.mrf.mxu0
    %4643 = vdwg.mxu0
    %4644 = vmatpush.bf16.xpose.msra.mxu0 0
    %4645 = vmatpush.bf16.xpose.msra.mxu0 0
    %4646 = vmatpush.bf16.xpose.msra.mxu0 0
    %4647 = vmatpush.bf16.xpose.msra.mxu0 0
    %4648 = vmatpush.bf16.xpose.msra.mxu0 0
    %4649 = vmatpush.bf16.xpose.msra.mxu0 0
    %4650 = vmatpush.bf16.xpose.msra.mxu0 %v2448
    %4651 = vmatpush.bf16.xpose.msra.mxu0 %v2252
    %4652 = vmatmul.bf16.gmra.mxu0 %v668
    %v4653 = vpop.f32.mrf.mxu0
    %v4654 = vadd.f32 %v4641, %v4653
    %v4655 = vpop.f32.mrf.mxu0
    %4656 = vdwg.mxu0
    %4657 = vmatpush.bf16.xpose.msra.mxu0 0
    %4658 = vmatpush.bf16.xpose.msra.mxu0 0
    %4659 = vmatpush.bf16.xpose.msra.mxu0 0
    %4660 = vmatpush.bf16.xpose.msra.mxu0 0
    %4661 = vmatpush.bf16.xpose.msra.mxu0 0
    %4662 = vmatpush.bf16.xpose.msra.mxu0 0
    %4663 = vmatpush.bf16.xpose.msra.mxu0 %v2449
    %4664 = vmatpush.bf16.xpose.msra.mxu0 %v2253
    %4665 = vmatmul.bf16.gmra.mxu0 %v669
    %v4666 = vpop.f32.mrf.mxu0
    %v4667 = vadd.f32 %v4654, %v4666
    %v4668 = vpop.f32.mrf.mxu0
    %4669 = vdwg.mxu0
    %4670 = vmatpush.bf16.xpose.msra.mxu0 0
    %4671 = vmatpush.bf16.xpose.msra.mxu0 0
    %4672 = vmatpush.bf16.xpose.msra.mxu0 0
    %4673 = vmatpush.bf16.xpose.msra.mxu0 0
    %4674 = vmatpush.bf16.xpose.msra.mxu0 0
    %4675 = vmatpush.bf16.xpose.msra.mxu0 0
    %4676 = vmatpush.bf16.xpose.msra.mxu0 %v2450
    %4677 = vmatpush.bf16.xpose.msra.mxu0 %v2254
    %4678 = vmatmul.bf16.gmra.mxu0 %v672
    %v4679 = vpop.f32.mrf.mxu0
    %v4680 = vadd.f32 %v4667, %v4679
    %v4681 = vpop.f32.mrf.mxu0
    %4682 = vdwg.mxu0
    %4683 = vmatpush.bf16.xpose.msra.mxu0 0
    %4684 = vmatpush.bf16.xpose.msra.mxu0 0
    %4685 = vmatpush.bf16.xpose.msra.mxu0 0
    %4686 = vmatpush.bf16.xpose.msra.mxu0 0
    %4687 = vmatpush.bf16.xpose.msra.mxu0 0
    %4688 = vmatpush.bf16.xpose.msra.mxu0 0
    %4689 = vmatpush.bf16.xpose.msra.mxu0 %v2451
    %4690 = vmatpush.bf16.xpose.msra.mxu0 %v2255
    %4691 = vmatmul.bf16.gmra.mxu0 %v673
    %v4692 = vpop.f32.mrf.mxu0
    %v4693 = vadd.f32 %v4680, %v4692
    %v4694 = vpop.f32.mrf.mxu0
    %4695 = vdwg.mxu0
    %4696 = vmatpush.bf16.xpose.msra.mxu0 0
    %4697 = vmatpush.bf16.xpose.msra.mxu0 0
    %4698 = vmatpush.bf16.xpose.msra.mxu0 0
    %4699 = vmatpush.bf16.xpose.msra.mxu0 0
    %4700 = vmatpush.bf16.xpose.msra.mxu0 0
    %4701 = vmatpush.bf16.xpose.msra.mxu0 0
    %4702 = vmatpush.bf16.xpose.msra.mxu0 %v2452
    %4703 = vmatpush.bf16.xpose.msra.mxu0 %v2256
    %4704 = vmatmul.bf16.gmra.mxu0 %v674
    %v4705 = vpop.f32.mrf.mxu0
    %v4706 = vadd.f32 %v4693, %v4705
    %v4707 = vpop.f32.mrf.mxu0
    %4708 = vdwg.mxu0
    %4709 = vmatpush.bf16.xpose.msra.mxu0 0
    %4710 = vmatpush.bf16.xpose.msra.mxu0 0
    %4711 = vmatpush.bf16.xpose.msra.mxu0 0
    %4712 = vmatpush.bf16.xpose.msra.mxu0 0
    %4713 = vmatpush.bf16.xpose.msra.mxu0 0
    %4714 = vmatpush.bf16.xpose.msra.mxu0 0
    %4715 = vmatpush.bf16.xpose.msra.mxu0 %v2453
    %4716 = vmatpush.bf16.xpose.msra.mxu0 %v2257
    %4717 = vmatmul.bf16.gmra.mxu0 %v675
    %v4718 = vpop.f32.mrf.mxu0
    %v4719 = vadd.f32 %v4706, %v4718
    %v4720 = vpop.f32.mrf.mxu0
    %4721 = vdwg.mxu0
    %4722 = vmatpush.bf16.xpose.msra.mxu0 0
    %4723 = vmatpush.bf16.xpose.msra.mxu0 0
    %4724 = vmatpush.bf16.xpose.msra.mxu0 0
    %4725 = vmatpush.bf16.xpose.msra.mxu0 0
    %4726 = vmatpush.bf16.xpose.msra.mxu0 0
    %4727 = vmatpush.bf16.xpose.msra.mxu0 0
    %4728 = vmatpush.bf16.xpose.msra.mxu0 %v2454
    %4729 = vmatpush.bf16.xpose.msra.mxu0 %v2258
    %4730 = vmatmul.bf16.gmra.mxu0 %v676
    %v4731 = vpop.f32.mrf.mxu0
    %v4732 = vadd.f32 %v4719, %v4731
    %v4733 = vpop.f32.mrf.mxu0
    %4734 = vdwg.mxu0
    %4735 = vmatpush.bf16.xpose.msra.mxu0 0
    %4736 = vmatpush.bf16.xpose.msra.mxu0 0
    %4737 = vmatpush.bf16.xpose.msra.mxu0 0
    %4738 = vmatpush.bf16.xpose.msra.mxu0 0
    %4739 = vmatpush.bf16.xpose.msra.mxu0 0
    %4740 = vmatpush.bf16.xpose.msra.mxu0 0
    %4741 = vmatpush.bf16.xpose.msra.mxu0 %v2455
    %4742 = vmatpush.bf16.xpose.msra.mxu0 %v2259
    %4743 = vmatmul.bf16.gmra.mxu0 %v677
    %v4744 = vpop.f32.mrf.mxu0
    %v4745 = vadd.f32 %v4732, %v4744
    %v4746 = vpop.f32.mrf.mxu0
    %4747 = vdwg.mxu0
    %4748 = vmatpush.bf16.xpose.msra.mxu0 0
    %4749 = vmatpush.bf16.xpose.msra.mxu0 0
    %4750 = vmatpush.bf16.xpose.msra.mxu0 0
    %4751 = vmatpush.bf16.xpose.msra.mxu0 0
    %4752 = vmatpush.bf16.xpose.msra.mxu0 0
    %4753 = vmatpush.bf16.xpose.msra.mxu0 0
    %4754 = vmatpush.bf16.xpose.msra.mxu0 %v2456
    %4755 = vmatpush.bf16.xpose.msra.mxu0 %v2260
    %4756 = vmatmul.bf16.gmra.mxu0 %v678
    %v4757 = vpop.f32.mrf.mxu0
    %v4758 = vadd.f32 %v4745, %v4757
    %v4759 = vpop.f32.mrf.mxu0
    %4760 = vdwg.mxu0
    %4761 = vmatpush.bf16.xpose.msra.mxu0 0
    %4762 = vmatpush.bf16.xpose.msra.mxu0 0
    %4763 = vmatpush.bf16.xpose.msra.mxu0 0
    %4764 = vmatpush.bf16.xpose.msra.mxu0 0
    %4765 = vmatpush.bf16.xpose.msra.mxu0 0
    %4766 = vmatpush.bf16.xpose.msra.mxu0 0
    %4767 = vmatpush.bf16.xpose.msra.mxu0 %v2457
    %4768 = vmatpush.bf16.xpose.msra.mxu0 %v2261
    %4769 = vmatmul.bf16.gmra.mxu0 %v679
    %v4770 = vpop.f32.mrf.mxu0
    %v4771 = vadd.f32 %v4758, %v4770
    %v4772 = vpop.f32.mrf.mxu0
    %4773 = vdwg.mxu0
    %4774 = vmatpush.bf16.xpose.msra.mxu0 0
    %4775 = vmatpush.bf16.xpose.msra.mxu0 0
    %4776 = vmatpush.bf16.xpose.msra.mxu0 0
    %4777 = vmatpush.bf16.xpose.msra.mxu0 0
    %4778 = vmatpush.bf16.xpose.msra.mxu0 0
    %4779 = vmatpush.bf16.xpose.msra.mxu0 0
    %4780 = vmatpush.bf16.xpose.msra.mxu0 %v2458
    %4781 = vmatpush.bf16.xpose.msra.mxu0 %v2262
    %4782 = vmatmul.bf16.gmra.mxu0 %v682
    %v4783 = vpop.f32.mrf.mxu0
    %v4784 = vadd.f32 %v4771, %v4783
    %v4785 = vpop.f32.mrf.mxu0
    %4786 = vdwg.mxu0
    %4787 = vmatpush.bf16.xpose.msra.mxu0 0
    %4788 = vmatpush.bf16.xpose.msra.mxu0 0
    %4789 = vmatpush.bf16.xpose.msra.mxu0 0
    %4790 = vmatpush.bf16.xpose.msra.mxu0 0
    %4791 = vmatpush.bf16.xpose.msra.mxu0 0
    %4792 = vmatpush.bf16.xpose.msra.mxu0 0
    %4793 = vmatpush.bf16.xpose.msra.mxu0 %v2459
    %4794 = vmatpush.bf16.xpose.msra.mxu0 %v2263
    %4795 = vmatmul.bf16.gmra.mxu0 %v683
    %v4796 = vpop.f32.mrf.mxu0
    %v4797 = vadd.f32 %v4784, %v4796
    %v4798 = vpop.f32.mrf.mxu0
    %4799 = vdwg.mxu0
    %4800 = vmatpush.bf16.xpose.msra.mxu0 0
    %4801 = vmatpush.bf16.xpose.msra.mxu0 0
    %4802 = vmatpush.bf16.xpose.msra.mxu0 0
    %4803 = vmatpush.bf16.xpose.msra.mxu0 0
    %4804 = vmatpush.bf16.xpose.msra.mxu0 0
    %4805 = vmatpush.bf16.xpose.msra.mxu0 0
    %4806 = vmatpush.bf16.xpose.msra.mxu0 %v2460
    %4807 = vmatpush.bf16.xpose.msra.mxu0 %v2264
    %4808 = vmatmul.bf16.gmra.mxu0 %v684
    %v4809 = vpop.f32.mrf.mxu0
    %v4810 = vadd.f32 %v4797, %v4809
    %v4811 = vpop.f32.mrf.mxu0
    %4812 = vdwg.mxu0
    %4813 = vmatpush.bf16.xpose.msra.mxu0 0
    %4814 = vmatpush.bf16.xpose.msra.mxu0 0
    %4815 = vmatpush.bf16.xpose.msra.mxu0 0
    %4816 = vmatpush.bf16.xpose.msra.mxu0 0
    %4817 = vmatpush.bf16.xpose.msra.mxu0 0
    %4818 = vmatpush.bf16.xpose.msra.mxu0 0
    %4819 = vmatpush.bf16.xpose.msra.mxu0 %v2461
    %4820 = vmatpush.bf16.xpose.msra.mxu0 %v2265
    %4821 = vmatmul.bf16.gmra.mxu0 %v685
    %v4822 = vpop.f32.mrf.mxu0
    %v4823 = vadd.f32 %v4810, %v4822
    %v4824 = vpop.f32.mrf.mxu0
    %4825 = vdwg.mxu0
    %4826 = vmatpush.bf16.xpose.msra.mxu0 0
    %4827 = vmatpush.bf16.xpose.msra.mxu0 0
    %4828 = vmatpush.bf16.xpose.msra.mxu0 0
    %4829 = vmatpush.bf16.xpose.msra.mxu0 0
    %4830 = vmatpush.bf16.xpose.msra.mxu0 0
    %4831 = vmatpush.bf16.xpose.msra.mxu0 0
    %4832 = vmatpush.bf16.xpose.msra.mxu0 %v2462
    %4833 = vmatpush.bf16.xpose.msra.mxu0 %v2266
    %4834 = vmatmul.bf16.gmra.mxu0 %v686
    %v4835 = vpop.f32.mrf.mxu0
    %v4836 = vadd.f32 %v4823, %v4835
    %v4837 = vpop.f32.mrf.mxu0
    %4838 = vdwg.mxu0
    %4839 = vmatpush.bf16.xpose.msra.mxu0 0
    %4840 = vmatpush.bf16.xpose.msra.mxu0 0
    %4841 = vmatpush.bf16.xpose.msra.mxu0 0
    %4842 = vmatpush.bf16.xpose.msra.mxu0 0
    %4843 = vmatpush.bf16.xpose.msra.mxu0 0
    %4844 = vmatpush.bf16.xpose.msra.mxu0 0
    %4845 = vmatpush.bf16.xpose.msra.mxu0 %v2463
    %4846 = vmatpush.bf16.xpose.msra.mxu0 %v2267
    %4847 = vmatmul.bf16.gmra.mxu0 %v687
    %v4848 = vpop.f32.mrf.mxu0
    %v4849 = vadd.f32 %v4836, %v4848
    %v4850 = vpop.f32.mrf.mxu0
    %4851 = vdwg.mxu0
    %4852 = vmatpush.bf16.xpose.msra.mxu0 0
    %4853 = vmatpush.bf16.xpose.msra.mxu0 0
    %4854 = vmatpush.bf16.xpose.msra.mxu0 0
    %4855 = vmatpush.bf16.xpose.msra.mxu0 0
    %4856 = vmatpush.bf16.xpose.msra.mxu0 0
    %4857 = vmatpush.bf16.xpose.msra.mxu0 0
    %4858 = vmatpush.bf16.xpose.msra.mxu0 %v2464
    %4859 = vmatpush.bf16.xpose.msra.mxu0 %v2268
    %4860 = vmatmul.bf16.gmra.mxu0 %v688
    %v4861 = vpop.f32.mrf.mxu0
    %v4862 = vadd.f32 %v4849, %v4861
    %v4863 = vpop.f32.mrf.mxu0
    %4864 = vdwg.mxu0
    %4865 = vmatpush.bf16.xpose.msra.mxu0 0
    %4866 = vmatpush.bf16.xpose.msra.mxu0 0
    %4867 = vmatpush.bf16.xpose.msra.mxu0 0
    %4868 = vmatpush.bf16.xpose.msra.mxu0 0
    %4869 = vmatpush.bf16.xpose.msra.mxu0 0
    %4870 = vmatpush.bf16.xpose.msra.mxu0 0
    %4871 = vmatpush.bf16.xpose.msra.mxu0 %v2465
    %4872 = vmatpush.bf16.xpose.msra.mxu0 %v2269
    %4873 = vmatmul.bf16.gmra.mxu0 %v689
    %v4874 = vpop.f32.mrf.mxu0
    %v4875 = vadd.f32 %v4862, %v4874
    %v4876 = vpop.f32.mrf.mxu0
    %4877 = vdwg.mxu0
    %4878 = vmatpush.bf16.xpose.msra.mxu0 0
    %4879 = vmatpush.bf16.xpose.msra.mxu0 0
    %4880 = vmatpush.bf16.xpose.msra.mxu0 0
    %4881 = vmatpush.bf16.xpose.msra.mxu0 0
    %4882 = vmatpush.bf16.xpose.msra.mxu0 0
    %4883 = vmatpush.bf16.xpose.msra.mxu0 0
    %4884 = vmatpush.bf16.xpose.msra.mxu0 %v2466
    %4885 = vmatpush.bf16.xpose.msra.mxu0 %v2270
    %4886 = vmatmul.bf16.gmra.mxu0 %v692
    %v4887 = vpop.f32.mrf.mxu0
    %v4888 = vadd.f32 %v4875, %v4887
    %v4889 = vpop.f32.mrf.mxu0
    %4890 = vdwg.mxu0
    %4891 = vmatpush.bf16.xpose.msra.mxu0 0
    %4892 = vmatpush.bf16.xpose.msra.mxu0 0
    %4893 = vmatpush.bf16.xpose.msra.mxu0 0
    %4894 = vmatpush.bf16.xpose.msra.mxu0 0
    %4895 = vmatpush.bf16.xpose.msra.mxu0 0
    %4896 = vmatpush.bf16.xpose.msra.mxu0 0
    %4897 = vmatpush.bf16.xpose.msra.mxu0 %v2467
    %4898 = vmatpush.bf16.xpose.msra.mxu0 %v2271
    %4899 = vmatmul.bf16.gmra.mxu0 %v693
    %v4900 = vpop.f32.mrf.mxu0
    %v4901 = vadd.f32 %v4888, %v4900
    %v4902 = vpop.f32.mrf.mxu0
    %4903 = vdwg.mxu0
    %4904 = vmatpush.bf16.xpose.msra.mxu0 0
    %4905 = vmatpush.bf16.xpose.msra.mxu0 0
    %4906 = vmatpush.bf16.xpose.msra.mxu0 0
    %4907 = vmatpush.bf16.xpose.msra.mxu0 0
    %4908 = vmatpush.bf16.xpose.msra.mxu0 0
    %4909 = vmatpush.bf16.xpose.msra.mxu0 0
    %4910 = vmatpush.bf16.xpose.msra.mxu0 %v2468
    %4911 = vmatpush.bf16.xpose.msra.mxu0 %v2272
    %4912 = vmatmul.bf16.gmra.mxu0 %v694
    %v4913 = vpop.f32.mrf.mxu0
    %v4914 = vadd.f32 %v4901, %v4913
    %v4915 = vpop.f32.mrf.mxu0
    %4916 = vdwg.mxu0
    %4917 = vmatpush.bf16.xpose.msra.mxu0 0
    %4918 = vmatpush.bf16.xpose.msra.mxu0 0
    %4919 = vmatpush.bf16.xpose.msra.mxu0 0
    %4920 = vmatpush.bf16.xpose.msra.mxu0 0
    %4921 = vmatpush.bf16.xpose.msra.mxu0 0
    %4922 = vmatpush.bf16.xpose.msra.mxu0 0
    %4923 = vmatpush.bf16.xpose.msra.mxu0 %v2469
    %4924 = vmatpush.bf16.xpose.msra.mxu0 %v2273
    %4925 = vmatmul.bf16.gmra.mxu0 %v695
    %v4926 = vpop.f32.mrf.mxu0
    %v4927 = vadd.f32 %v4914, %v4926
    %v4928 = vpop.f32.mrf.mxu0
    %4929 = vdwg.mxu0
    %4930 = vmatpush.bf16.xpose.msra.mxu0 0
    %4931 = vmatpush.bf16.xpose.msra.mxu0 0
    %4932 = vmatpush.bf16.xpose.msra.mxu0 0
    %4933 = vmatpush.bf16.xpose.msra.mxu0 0
    %4934 = vmatpush.bf16.xpose.msra.mxu0 0
    %4935 = vmatpush.bf16.xpose.msra.mxu0 0
    %4936 = vmatpush.bf16.xpose.msra.mxu0 %v2470
    %4937 = vmatpush.bf16.xpose.msra.mxu0 %v2274
    %4938 = vmatmul.bf16.gmra.mxu0 %v696
    %v4939 = vpop.f32.mrf.mxu0
    %v4940 = vadd.f32 %v4927, %v4939
    %v4941 = vpop.f32.mrf.mxu0
    %4942 = vdwg.mxu0
    %4943 = vmatpush.bf16.xpose.msra.mxu0 0
    %4944 = vmatpush.bf16.xpose.msra.mxu0 0
    %4945 = vmatpush.bf16.xpose.msra.mxu0 0
    %4946 = vmatpush.bf16.xpose.msra.mxu0 0
    %4947 = vmatpush.bf16.xpose.msra.mxu0 0
    %4948 = vmatpush.bf16.xpose.msra.mxu0 0
    %4949 = vmatpush.bf16.xpose.msra.mxu0 %v2471
    %4950 = vmatpush.bf16.xpose.msra.mxu0 %v2275
    %4951 = vmatmul.bf16.gmra.mxu0 %v697
    %v4952 = vpop.f32.mrf.mxu0
    %v4953 = vadd.f32 %v4940, %v4952
    %v4954 = vpop.f32.mrf.mxu0
    %4955 = vdwg.mxu0
    %4956 = vmatpush.bf16.xpose.msra.mxu0 0
    %4957 = vmatpush.bf16.xpose.msra.mxu0 0
    %4958 = vmatpush.bf16.xpose.msra.mxu0 0
    %4959 = vmatpush.bf16.xpose.msra.mxu0 0
    %4960 = vmatpush.bf16.xpose.msra.mxu0 0
    %4961 = vmatpush.bf16.xpose.msra.mxu0 0
    %4962 = vmatpush.bf16.xpose.msra.mxu0 %v2472
    %4963 = vmatpush.bf16.xpose.msra.mxu0 %v2276
    %4964 = vmatmul.bf16.gmra.mxu0 %v698
    %v4965 = vpop.f32.mrf.mxu0
    %v4966 = vadd.f32 %v4953, %v4965
    %v4967 = vpop.f32.mrf.mxu0
    %4968 = vdwg.mxu0
    %4969 = vmatpush.bf16.xpose.msra.mxu0 0
    %4970 = vmatpush.bf16.xpose.msra.mxu0 0
    %4971 = vmatpush.bf16.xpose.msra.mxu0 0
    %4972 = vmatpush.bf16.xpose.msra.mxu0 0
    %4973 = vmatpush.bf16.xpose.msra.mxu0 0
    %4974 = vmatpush.bf16.xpose.msra.mxu0 0
    %4975 = vmatpush.bf16.xpose.msra.mxu0 %v2473
    %4976 = vmatpush.bf16.xpose.msra.mxu0 %v2277
    %4977 = vmatmul.bf16.gmra.mxu0 %v699
    %v4978 = vpop.f32.mrf.mxu0
    %v4979 = vadd.f32 %v4966, %v4978
    %v4980 = vpop.f32.mrf.mxu0
    %4981 = vdwg.mxu0
    %4982 = vmatpush.bf16.xpose.msra.mxu0 0
    %4983 = vmatpush.bf16.xpose.msra.mxu0 0
    %4984 = vmatpush.bf16.xpose.msra.mxu0 0
    %4985 = vmatpush.bf16.xpose.msra.mxu0 0
    %4986 = vmatpush.bf16.xpose.msra.mxu0 0
    %4987 = vmatpush.bf16.xpose.msra.mxu0 0
    %4988 = vmatpush.bf16.xpose.msra.mxu0 %v2474
    %4989 = vmatpush.bf16.xpose.msra.mxu0 %v2278
    %4990 = vmatmul.bf16.gmra.mxu0 %v702
    %v4991 = vpop.f32.mrf.mxu0
    %v4992 = vadd.f32 %v4979, %v4991
    %v4993 = vpop.f32.mrf.mxu0
    %4994 = vdwg.mxu0
    %4995 = vmatpush.bf16.xpose.msra.mxu0 0
    %4996 = vmatpush.bf16.xpose.msra.mxu0 0
    %4997 = vmatpush.bf16.xpose.msra.mxu0 0
    %4998 = vmatpush.bf16.xpose.msra.mxu0 0
    %4999 = vmatpush.bf16.xpose.msra.mxu0 0
    %5000 = vmatpush.bf16.xpose.msra.mxu0 0
    %5001 = vmatpush.bf16.xpose.msra.mxu0 %v2475
    %5002 = vmatpush.bf16.xpose.msra.mxu0 %v2279
    %5003 = vmatmul.bf16.gmra.mxu0 %v703
    %v5004 = vpop.f32.mrf.mxu0
    %v5005 = vadd.f32 %v4992, %v5004
    %v5006 = vpop.f32.mrf.mxu0
    %5007 = vdwg.mxu0
    %5008 = vmatpush.bf16.xpose.msra.mxu0 0
    %5009 = vmatpush.bf16.xpose.msra.mxu0 0
    %5010 = vmatpush.bf16.xpose.msra.mxu0 0
    %5011 = vmatpush.bf16.xpose.msra.mxu0 0
    %5012 = vmatpush.bf16.xpose.msra.mxu0 0
    %5013 = vmatpush.bf16.xpose.msra.mxu0 0
    %5014 = vmatpush.bf16.xpose.msra.mxu0 %v2476
    %5015 = vmatpush.bf16.xpose.msra.mxu0 %v2280
    %5016 = vmatmul.bf16.gmra.mxu0 %v704
    %v5017 = vpop.f32.mrf.mxu0
    %v5018 = vadd.f32 %v5005, %v5017
    %v5019 = vpop.f32.mrf.mxu0
    %5020 = vdwg.mxu0
    %5021 = vmatpush.bf16.xpose.msra.mxu0 0
    %5022 = vmatpush.bf16.xpose.msra.mxu0 0
    %5023 = vmatpush.bf16.xpose.msra.mxu0 0
    %5024 = vmatpush.bf16.xpose.msra.mxu0 0
    %5025 = vmatpush.bf16.xpose.msra.mxu0 0
    %5026 = vmatpush.bf16.xpose.msra.mxu0 0
    %5027 = vmatpush.bf16.xpose.msra.mxu0 %v2477
    %5028 = vmatpush.bf16.xpose.msra.mxu0 %v2281
    %5029 = vmatmul.bf16.gmra.mxu0 %v705
    %v5030 = vpop.f32.mrf.mxu0
    %v5031 = vadd.f32 %v5018, %v5030
    %v5032 = vpop.f32.mrf.mxu0
    %5033 = vdwg.mxu0
    %5034 = vmatpush.bf16.xpose.msra.mxu0 0
    %5035 = vmatpush.bf16.xpose.msra.mxu0 0
    %5036 = vmatpush.bf16.xpose.msra.mxu0 0
    %5037 = vmatpush.bf16.xpose.msra.mxu0 0
    %5038 = vmatpush.bf16.xpose.msra.mxu0 0
    %5039 = vmatpush.bf16.xpose.msra.mxu0 0
    %5040 = vmatpush.bf16.xpose.msra.mxu0 %v2478
    %5041 = vmatpush.bf16.xpose.msra.mxu0 %v2282
    %5042 = vmatmul.bf16.gmra.mxu0 %v706
    %v5043 = vpop.f32.mrf.mxu0
    %v5044 = vadd.f32 %v5031, %v5043
    %v5045 = vpop.f32.mrf.mxu0
    %5046 = vdwg.mxu0
    %5047 = vmatpush.bf16.xpose.msra.mxu0 0
    %5048 = vmatpush.bf16.xpose.msra.mxu0 0
    %5049 = vmatpush.bf16.xpose.msra.mxu0 0
    %5050 = vmatpush.bf16.xpose.msra.mxu0 0
    %5051 = vmatpush.bf16.xpose.msra.mxu0 0
    %5052 = vmatpush.bf16.xpose.msra.mxu0 0
    %5053 = vmatpush.bf16.xpose.msra.mxu0 %v2479
    %5054 = vmatpush.bf16.xpose.msra.mxu0 %v2283
    %5055 = vmatmul.bf16.gmra.mxu0 %v707
    %v5056 = vpop.f32.mrf.mxu0
    %v5057 = vadd.f32 %v5044, %v5056
    %v5058 = vpop.f32.mrf.mxu0
    %5059 = vdwg.mxu0
    %5060 = vmatpush.bf16.xpose.msra.mxu0 0
    %5061 = vmatpush.bf16.xpose.msra.mxu0 0
    %5062 = vmatpush.bf16.xpose.msra.mxu0 0
    %5063 = vmatpush.bf16.xpose.msra.mxu0 0
    %5064 = vmatpush.bf16.xpose.msra.mxu0 0
    %5065 = vmatpush.bf16.xpose.msra.mxu0 0
    %5066 = vmatpush.bf16.xpose.msra.mxu0 %v2480
    %5067 = vmatpush.bf16.xpose.msra.mxu0 %v2284
    %5068 = vmatmul.bf16.gmra.mxu0 %v708
    %v5069 = vpop.f32.mrf.mxu0
    %v5070 = vadd.f32 %v5057, %v5069
    %v5071 = vpop.f32.mrf.mxu0
    %5072 = vdwg.mxu0
    %5073 = vmatpush.bf16.xpose.msra.mxu0 0
    %5074 = vmatpush.bf16.xpose.msra.mxu0 0
    %5075 = vmatpush.bf16.xpose.msra.mxu0 0
    %5076 = vmatpush.bf16.xpose.msra.mxu0 0
    %5077 = vmatpush.bf16.xpose.msra.mxu0 0
    %5078 = vmatpush.bf16.xpose.msra.mxu0 0
    %5079 = vmatpush.bf16.xpose.msra.mxu0 %v2481
    %5080 = vmatpush.bf16.xpose.msra.mxu0 %v2285
    %5081 = vmatmul.bf16.gmra.mxu0 %v709
    %v5082 = vpop.f32.mrf.mxu0
    %v5083 = vadd.f32 %v5070, %v5082
    %v5084 = vpop.f32.mrf.mxu0
    %5085 = vdwg.mxu0
    %5086 = vmatpush.bf16.xpose.msra.mxu0 0
    %5087 = vmatpush.bf16.xpose.msra.mxu0 0
    %5088 = vmatpush.bf16.xpose.msra.mxu0 0
    %5089 = vmatpush.bf16.xpose.msra.mxu0 0
    %5090 = vmatpush.bf16.xpose.msra.mxu0 0
    %5091 = vmatpush.bf16.xpose.msra.mxu0 0
    %5092 = vmatpush.bf16.xpose.msra.mxu0 %v2482
    %5093 = vmatpush.bf16.xpose.msra.mxu0 %v2286
    %5094 = vmatmul.bf16.gmra.mxu0 %v712
    %v5095 = vpop.f32.mrf.mxu0
    %v5096 = vadd.f32 %v5083, %v5095
    %v5097 = vpop.f32.mrf.mxu0
    %5098 = vdwg.mxu0
    %5099 = vmatpush.bf16.xpose.msra.mxu0 0
    %5100 = vmatpush.bf16.xpose.msra.mxu0 0
    %5101 = vmatpush.bf16.xpose.msra.mxu0 0
    %5102 = vmatpush.bf16.xpose.msra.mxu0 0
    %5103 = vmatpush.bf16.xpose.msra.mxu0 0
    %5104 = vmatpush.bf16.xpose.msra.mxu0 0
    %5105 = vmatpush.bf16.xpose.msra.mxu0 %v2483
    %5106 = vmatpush.bf16.xpose.msra.mxu0 %v2287
    %5107 = vmatmul.bf16.gmra.mxu0 %v713
    %v5108 = vpop.f32.mrf.mxu0
    %v5109 = vadd.f32 %v5096, %v5108
    %v5110 = vpop.f32.mrf.mxu0
    %5111 = vdwg.mxu0
    %5112 = vmatpush.bf16.xpose.msra.mxu0 0
    %5113 = vmatpush.bf16.xpose.msra.mxu0 0
    %5114 = vmatpush.bf16.xpose.msra.mxu0 0
    %5115 = vmatpush.bf16.xpose.msra.mxu0 0
    %5116 = vmatpush.bf16.xpose.msra.mxu0 0
    %5117 = vmatpush.bf16.xpose.msra.mxu0 0
    %5118 = vmatpush.bf16.xpose.msra.mxu0 %v2484
    %5119 = vmatpush.bf16.xpose.msra.mxu0 %v2288
    %5120 = vmatmul.bf16.gmra.mxu0 %v714
    %v5121 = vpop.f32.mrf.mxu0
    %v5122 = vadd.f32 %v5109, %v5121
    %v5123 = vpop.f32.mrf.mxu0
    %5124 = vdwg.mxu0
    %5125 = vmatpush.bf16.xpose.msra.mxu0 0
    %5126 = vmatpush.bf16.xpose.msra.mxu0 0
    %5127 = vmatpush.bf16.xpose.msra.mxu0 0
    %5128 = vmatpush.bf16.xpose.msra.mxu0 0
    %5129 = vmatpush.bf16.xpose.msra.mxu0 0
    %5130 = vmatpush.bf16.xpose.msra.mxu0 0
    %5131 = vmatpush.bf16.xpose.msra.mxu0 %v2485
    %5132 = vmatpush.bf16.xpose.msra.mxu0 %v2289
    %5133 = vmatmul.bf16.gmra.mxu0 %v715
    %v5134 = vpop.f32.mrf.mxu0
    %v5135 = vadd.f32 %v5122, %v5134
    %v5136 = vpop.f32.mrf.mxu0
    %5137 = vdwg.mxu0
    %5138 = vmatpush.bf16.xpose.msra.mxu0 0
    %5139 = vmatpush.bf16.xpose.msra.mxu0 0
    %5140 = vmatpush.bf16.xpose.msra.mxu0 0
    %5141 = vmatpush.bf16.xpose.msra.mxu0 0
    %5142 = vmatpush.bf16.xpose.msra.mxu0 0
    %5143 = vmatpush.bf16.xpose.msra.mxu0 0
    %5144 = vmatpush.bf16.xpose.msra.mxu0 %v2486
    %5145 = vmatpush.bf16.xpose.msra.mxu0 %v2290
    %5146 = vmatmul.bf16.gmra.mxu0 %v716
    %v5147 = vpop.f32.mrf.mxu0
    %v5148 = vadd.f32 %v5135, %v5147
    %v5149 = vpop.f32.mrf.mxu0
    %5150 = vdwg.mxu0
    %5151 = vmatpush.bf16.xpose.msra.mxu0 0
    %5152 = vmatpush.bf16.xpose.msra.mxu0 0
    %5153 = vmatpush.bf16.xpose.msra.mxu0 0
    %5154 = vmatpush.bf16.xpose.msra.mxu0 0
    %5155 = vmatpush.bf16.xpose.msra.mxu0 0
    %5156 = vmatpush.bf16.xpose.msra.mxu0 0
    %5157 = vmatpush.bf16.xpose.msra.mxu0 %v2487
    %5158 = vmatpush.bf16.xpose.msra.mxu0 %v2291
    %5159 = vmatmul.bf16.gmra.mxu0 %v717
    %v5160 = vpop.f32.mrf.mxu0
    %v5161 = vadd.f32 %v5148, %v5160
    %v5162 = vpop.f32.mrf.mxu0
    %5163 = vdwg.mxu0
    %5164 = vmatpush.bf16.xpose.msra.mxu0 0
    %5165 = vmatpush.bf16.xpose.msra.mxu0 0
    %5166 = vmatpush.bf16.xpose.msra.mxu0 0
    %5167 = vmatpush.bf16.xpose.msra.mxu0 0
    %5168 = vmatpush.bf16.xpose.msra.mxu0 0
    %5169 = vmatpush.bf16.xpose.msra.mxu0 0
    %5170 = vmatpush.bf16.xpose.msra.mxu0 %v2488
    %5171 = vmatpush.bf16.xpose.msra.mxu0 %v2292
    %5172 = vmatmul.bf16.gmra.mxu0 %v718
    %v5173 = vpop.f32.mrf.mxu0
    %v5174 = vadd.f32 %v5161, %v5173
    %v5175 = vpop.f32.mrf.mxu0
    %5176 = vdwg.mxu0
    %5177 = vmatpush.bf16.xpose.msra.mxu0 0
    %5178 = vmatpush.bf16.xpose.msra.mxu0 0
    %5179 = vmatpush.bf16.xpose.msra.mxu0 0
    %5180 = vmatpush.bf16.xpose.msra.mxu0 0
    %5181 = vmatpush.bf16.xpose.msra.mxu0 0
    %5182 = vmatpush.bf16.xpose.msra.mxu0 0
    %5183 = vmatpush.bf16.xpose.msra.mxu0 %v2489
    %5184 = vmatpush.bf16.xpose.msra.mxu0 %v2293
    %5185 = vmatmul.bf16.gmra.mxu0 %v719
    %v5186 = vpop.f32.mrf.mxu0
    %v5187 = vadd.f32 %v5174, %v5186
    %v5188 = vpop.f32.mrf.mxu0
    %5189 = vdwg.mxu0
    %5190 = vmatpush.bf16.xpose.msra.mxu0 0
    %5191 = vmatpush.bf16.xpose.msra.mxu0 0
    %5192 = vmatpush.bf16.xpose.msra.mxu0 0
    %5193 = vmatpush.bf16.xpose.msra.mxu0 0
    %5194 = vmatpush.bf16.xpose.msra.mxu0 0
    %5195 = vmatpush.bf16.xpose.msra.mxu0 0
    %5196 = vmatpush.bf16.xpose.msra.mxu0 %v2490
    %5197 = vmatpush.bf16.xpose.msra.mxu0 %v2294
    %5198 = vmatmul.bf16.gmra.mxu0 %v722
    %v5199 = vpop.f32.mrf.mxu0
    %v5200 = vadd.f32 %v5187, %v5199
    %v5201 = vpop.f32.mrf.mxu0
    %5202 = vdwg.mxu0
    %5203 = vmatpush.bf16.xpose.msra.mxu0 0
    %5204 = vmatpush.bf16.xpose.msra.mxu0 0
    %5205 = vmatpush.bf16.xpose.msra.mxu0 0
    %5206 = vmatpush.bf16.xpose.msra.mxu0 0
    %5207 = vmatpush.bf16.xpose.msra.mxu0 0
    %5208 = vmatpush.bf16.xpose.msra.mxu0 0
    %5209 = vmatpush.bf16.xpose.msra.mxu0 %v2491
    %5210 = vmatpush.bf16.xpose.msra.mxu0 %v2295
    %5211 = vmatmul.bf16.gmra.mxu0 %v723
    %v5212 = vpop.f32.mrf.mxu0
    %v5213 = vadd.f32 %v5200, %v5212
    %v5214 = vpop.f32.mrf.mxu0
    %5215 = vdwg.mxu0
    %5216 = vmatpush.bf16.xpose.msra.mxu0 0
    %5217 = vmatpush.bf16.xpose.msra.mxu0 0
    %5218 = vmatpush.bf16.xpose.msra.mxu0 0
    %5219 = vmatpush.bf16.xpose.msra.mxu0 0
    %5220 = vmatpush.bf16.xpose.msra.mxu0 0
    %5221 = vmatpush.bf16.xpose.msra.mxu0 0
    %5222 = vmatpush.bf16.xpose.msra.mxu0 %v2492
    %5223 = vmatpush.bf16.xpose.msra.mxu0 %v2296
    %5224 = vmatmul.bf16.gmra.mxu0 %v724
    %v5225 = vpop.f32.mrf.mxu0
    %v5226 = vadd.f32 %v5213, %v5225
    %v5227 = vpop.f32.mrf.mxu0
    %5228 = vdwg.mxu0
    %5229 = vmatpush.bf16.xpose.msra.mxu0 0
    %5230 = vmatpush.bf16.xpose.msra.mxu0 0
    %5231 = vmatpush.bf16.xpose.msra.mxu0 0
    %5232 = vmatpush.bf16.xpose.msra.mxu0 0
    %5233 = vmatpush.bf16.xpose.msra.mxu0 0
    %5234 = vmatpush.bf16.xpose.msra.mxu0 0
    %5235 = vmatpush.bf16.xpose.msra.mxu0 %v2493
    %5236 = vmatpush.bf16.xpose.msra.mxu0 %v2297
    %5237 = vmatmul.bf16.gmra.mxu0 %v725
    %v5238 = vpop.f32.mrf.mxu0
    %v5239 = vadd.f32 %v5226, %v5238
    %v5240 = vpop.f32.mrf.mxu0
    %5241 = vdwg.mxu0
    %5242 = vmatpush.bf16.xpose.msra.mxu0 0
    %5243 = vmatpush.bf16.xpose.msra.mxu0 0
    %5244 = vmatpush.bf16.xpose.msra.mxu0 0
    %5245 = vmatpush.bf16.xpose.msra.mxu0 0
    %5246 = vmatpush.bf16.xpose.msra.mxu0 0
    %5247 = vmatpush.bf16.xpose.msra.mxu0 0
    %5248 = vmatpush.bf16.xpose.msra.mxu0 %v2494
    %5249 = vmatpush.bf16.xpose.msra.mxu0 %v2298
    %5250 = vmatmul.bf16.gmra.mxu0 %v726
    %v5251 = vpop.f32.mrf.mxu0
    %v5252 = vadd.f32 %v5239, %v5251
    %v5253 = vpop.f32.mrf.mxu0
    %5254 = vdwg.mxu0
    %5255 = vmatpush.bf16.xpose.msra.mxu0 0
    %5256 = vmatpush.bf16.xpose.msra.mxu0 0
    %5257 = vmatpush.bf16.xpose.msra.mxu0 0
    %5258 = vmatpush.bf16.xpose.msra.mxu0 0
    %5259 = vmatpush.bf16.xpose.msra.mxu0 0
    %5260 = vmatpush.bf16.xpose.msra.mxu0 0
    %5261 = vmatpush.bf16.xpose.msra.mxu0 %v2495
    %5262 = vmatpush.bf16.xpose.msra.mxu0 %v2299
    %5263 = vmatmul.bf16.gmra.mxu0 %v727
    %v5264 = vpop.f32.mrf.mxu0
    %v5265 = vadd.f32 %v5252, %v5264
    %v5266 = vpop.f32.mrf.mxu0
    %5267 = vdwg.mxu0
    %5268 = vmatpush.bf16.xpose.msra.mxu0 0
    %5269 = vmatpush.bf16.xpose.msra.mxu0 0
    %5270 = vmatpush.bf16.xpose.msra.mxu0 0
    %5271 = vmatpush.bf16.xpose.msra.mxu0 0
    %5272 = vmatpush.bf16.xpose.msra.mxu0 0
    %5273 = vmatpush.bf16.xpose.msra.mxu0 0
    %5274 = vmatpush.bf16.xpose.msra.mxu0 %v2496
    %5275 = vmatpush.bf16.xpose.msra.mxu0 %v2300
    %5276 = vmatmul.bf16.gmra.mxu0 %v728
    %v5277 = vpop.f32.mrf.mxu0
    %v5278 = vadd.f32 %v5265, %v5277
    %v5279 = vpop.f32.mrf.mxu0
    %5280 = vdwg.mxu0
    %5281 = vmatpush.bf16.xpose.msra.mxu0 0
    %5282 = vmatpush.bf16.xpose.msra.mxu0 0
    %5283 = vmatpush.bf16.xpose.msra.mxu0 0
    %5284 = vmatpush.bf16.xpose.msra.mxu0 0
    %5285 = vmatpush.bf16.xpose.msra.mxu0 0
    %5286 = vmatpush.bf16.xpose.msra.mxu0 0
    %5287 = vmatpush.bf16.xpose.msra.mxu0 %v2497
    %5288 = vmatpush.bf16.xpose.msra.mxu0 %v2301
    %5289 = vmatmul.bf16.gmra.mxu0 %v729
    %v5290 = vpop.f32.mrf.mxu0
    %v5291 = vadd.f32 %v5278, %v5290
    %v5292 = vpop.f32.mrf.mxu0
    %5293 = vdwg.mxu0
    %5294 = vmatpush.bf16.xpose.msra.mxu0 0
    %5295 = vmatpush.bf16.xpose.msra.mxu0 0
    %5296 = vmatpush.bf16.xpose.msra.mxu0 0
    %5297 = vmatpush.bf16.xpose.msra.mxu0 0
    %5298 = vmatpush.bf16.xpose.msra.mxu0 0
    %5299 = vmatpush.bf16.xpose.msra.mxu0 0
    %5300 = vmatpush.bf16.xpose.msra.mxu0 %v2498
    %5301 = vmatpush.bf16.xpose.msra.mxu0 %v2302
    %5302 = vmatmul.bf16.gmra.mxu0 %v732
    %v5303 = vpop.f32.mrf.mxu0
    %v5304 = vadd.f32 %v5291, %v5303
    %v5305 = vpop.f32.mrf.mxu0
    %5306 = vdwg.mxu0
    %5307 = vmatpush.bf16.xpose.msra.mxu0 0
    %5308 = vmatpush.bf16.xpose.msra.mxu0 0
    %5309 = vmatpush.bf16.xpose.msra.mxu0 0
    %5310 = vmatpush.bf16.xpose.msra.mxu0 0
    %5311 = vmatpush.bf16.xpose.msra.mxu0 0
    %5312 = vmatpush.bf16.xpose.msra.mxu0 0
    %5313 = vmatpush.bf16.xpose.msra.mxu0 %v2499
    %5314 = vmatpush.bf16.xpose.msra.mxu0 %v2303
    %5315 = vmatmul.bf16.gmra.mxu0 %v733
    %v5316 = vpop.f32.mrf.mxu0
    %v5317 = vadd.f32 %v5304, %v5316
    %v5318 = vpop.f32.mrf.mxu0
    %5319 = vdwg.mxu0
    %5320 = vmatpush.bf16.xpose.msra.mxu0 0
    %5321 = vmatpush.bf16.xpose.msra.mxu0 0
    %5322 = vmatpush.bf16.xpose.msra.mxu0 0
    %5323 = vmatpush.bf16.xpose.msra.mxu0 0
    %5324 = vmatpush.bf16.xpose.msra.mxu0 0
    %5325 = vmatpush.bf16.xpose.msra.mxu0 0
    %5326 = vmatpush.bf16.xpose.msra.mxu0 %v2500
    %5327 = vmatpush.bf16.xpose.msra.mxu0 %v2304
    %5328 = vmatmul.bf16.gmra.mxu0 %v734
    %v5329 = vpop.f32.mrf.mxu0
    %v5330 = vadd.f32 %v5317, %v5329
    %v5331 = vpop.f32.mrf.mxu0
    %5332 = vdwg.mxu0
    %5333 = vmatpush.bf16.xpose.msra.mxu0 0
    %5334 = vmatpush.bf16.xpose.msra.mxu0 0
    %5335 = vmatpush.bf16.xpose.msra.mxu0 0
    %5336 = vmatpush.bf16.xpose.msra.mxu0 0
    %5337 = vmatpush.bf16.xpose.msra.mxu0 0
    %5338 = vmatpush.bf16.xpose.msra.mxu0 0
    %5339 = vmatpush.bf16.xpose.msra.mxu0 %v2501
    %5340 = vmatpush.bf16.xpose.msra.mxu0 %v2305
    %5341 = vmatmul.bf16.gmra.mxu0 %v735
    %v5342 = vpop.f32.mrf.mxu0
    %v5343 = vadd.f32 %v5330, %v5342
    %v5344 = vpop.f32.mrf.mxu0
    %5345 = vdwg.mxu0
    %5346 = vmatpush.bf16.xpose.msra.mxu0 0
    %5347 = vmatpush.bf16.xpose.msra.mxu0 0
    %5348 = vmatpush.bf16.xpose.msra.mxu0 0
    %5349 = vmatpush.bf16.xpose.msra.mxu0 0
    %5350 = vmatpush.bf16.xpose.msra.mxu0 0
    %5351 = vmatpush.bf16.xpose.msra.mxu0 0
    %5352 = vmatpush.bf16.xpose.msra.mxu0 %v2502
    %5353 = vmatpush.bf16.xpose.msra.mxu0 %v2306
    %5354 = vmatmul.bf16.gmra.mxu0 %v736
    %v5355 = vpop.f32.mrf.mxu0
    %v5356 = vadd.f32 %v5343, %v5355
    %v5357 = vpop.f32.mrf.mxu0
    %5358 = vdwg.mxu0
    %5359 = vmatpush.bf16.xpose.msra.mxu0 0
    %5360 = vmatpush.bf16.xpose.msra.mxu0 0
    %5361 = vmatpush.bf16.xpose.msra.mxu0 0
    %5362 = vmatpush.bf16.xpose.msra.mxu0 0
    %5363 = vmatpush.bf16.xpose.msra.mxu0 0
    %5364 = vmatpush.bf16.xpose.msra.mxu0 0
    %5365 = vmatpush.bf16.xpose.msra.mxu0 %v2503
    %5366 = vmatpush.bf16.xpose.msra.mxu0 %v2307
    %5367 = vmatmul.bf16.gmra.mxu0 %v737
    %v5368 = vpop.f32.mrf.mxu0
    %v5369 = vadd.f32 %v5356, %v5368
    %v5370 = vpop.f32.mrf.mxu0
    %5371 = vdwg.mxu0
    %5372 = vmatpush.bf16.xpose.msra.mxu0 0
    %5373 = vmatpush.bf16.xpose.msra.mxu0 0
    %5374 = vmatpush.bf16.xpose.msra.mxu0 0
    %5375 = vmatpush.bf16.xpose.msra.mxu0 0
    %5376 = vmatpush.bf16.xpose.msra.mxu0 0
    %5377 = vmatpush.bf16.xpose.msra.mxu0 0
    %5378 = vmatpush.bf16.xpose.msra.mxu0 %v2504
    %5379 = vmatpush.bf16.xpose.msra.mxu0 %v2308
    %5380 = vmatmul.bf16.gmra.mxu0 %v738
    %v5381 = vpop.f32.mrf.mxu0
    %v5382 = vadd.f32 %v5369, %v5381
    %v5383 = vpop.f32.mrf.mxu0
    %5384 = vdwg.mxu0
    %5385 = vmatpush.bf16.xpose.msra.mxu0 0
    %5386 = vmatpush.bf16.xpose.msra.mxu0 0
    %5387 = vmatpush.bf16.xpose.msra.mxu0 0
    %5388 = vmatpush.bf16.xpose.msra.mxu0 0
    %5389 = vmatpush.bf16.xpose.msra.mxu0 0
    %5390 = vmatpush.bf16.xpose.msra.mxu0 0
    %5391 = vmatpush.bf16.xpose.msra.mxu0 %v2505
    %5392 = vmatpush.bf16.xpose.msra.mxu0 %v2309
    %5393 = vmatmul.bf16.gmra.mxu0 %v739
    %v5394 = vpop.f32.mrf.mxu0
    %v5395 = vadd.f32 %v5382, %v5394
    %v5396 = vpop.f32.mrf.mxu0
    %5397 = vdwg.mxu0
    %5398 = vmatpush.bf16.xpose.msra.mxu0 0
    %5399 = vmatpush.bf16.xpose.msra.mxu0 0
    %5400 = vmatpush.bf16.xpose.msra.mxu0 0
    %5401 = vmatpush.bf16.xpose.msra.mxu0 0
    %5402 = vmatpush.bf16.xpose.msra.mxu0 0
    %5403 = vmatpush.bf16.xpose.msra.mxu0 0
    %5404 = vmatpush.bf16.xpose.msra.mxu0 %v2506
    %5405 = vmatpush.bf16.xpose.msra.mxu0 %v2310
    %5406 = vmatmul.bf16.gmra.mxu0 %v742
    %v5407 = vpop.f32.mrf.mxu0
    %v5408 = vadd.f32 %v5395, %v5407
    %v5409 = vpop.f32.mrf.mxu0
    %5410 = vdwg.mxu0
    %5411 = vmatpush.bf16.xpose.msra.mxu0 0
    %5412 = vmatpush.bf16.xpose.msra.mxu0 0
    %5413 = vmatpush.bf16.xpose.msra.mxu0 0
    %5414 = vmatpush.bf16.xpose.msra.mxu0 0
    %5415 = vmatpush.bf16.xpose.msra.mxu0 0
    %5416 = vmatpush.bf16.xpose.msra.mxu0 0
    %5417 = vmatpush.bf16.xpose.msra.mxu0 %v2507
    %5418 = vmatpush.bf16.xpose.msra.mxu0 %v2311
    %5419 = vmatmul.bf16.gmra.mxu0 %v743
    %v5420 = vpop.f32.mrf.mxu0
    %v5421 = vadd.f32 %v5408, %v5420
    %v5422 = vpop.f32.mrf.mxu0
    %5423 = vdwg.mxu0
    %5424 = vmatpush.bf16.xpose.msra.mxu0 0
    %5425 = vmatpush.bf16.xpose.msra.mxu0 0
    %5426 = vmatpush.bf16.xpose.msra.mxu0 0
    %5427 = vmatpush.bf16.xpose.msra.mxu0 0
    %5428 = vmatpush.bf16.xpose.msra.mxu0 0
    %5429 = vmatpush.bf16.xpose.msra.mxu0 0
    %5430 = vmatpush.bf16.xpose.msra.mxu0 %v2508
    %5431 = vmatpush.bf16.xpose.msra.mxu0 %v2312
    %5432 = vmatmul.bf16.gmra.mxu0 %v744
    %v5433 = vpop.f32.mrf.mxu0
    %v5434 = vadd.f32 %v5421, %v5433
    %v5435 = vpop.f32.mrf.mxu0
    %5436 = vdwg.mxu0
    %5437 = vmatpush.bf16.xpose.msra.mxu0 0
    %5438 = vmatpush.bf16.xpose.msra.mxu0 0
    %5439 = vmatpush.bf16.xpose.msra.mxu0 0
    %5440 = vmatpush.bf16.xpose.msra.mxu0 0
    %5441 = vmatpush.bf16.xpose.msra.mxu0 0
    %5442 = vmatpush.bf16.xpose.msra.mxu0 0
    %5443 = vmatpush.bf16.xpose.msra.mxu0 %v2509
    %5444 = vmatpush.bf16.xpose.msra.mxu0 %v2313
    %5445 = vmatmul.bf16.gmra.mxu0 %v745
    %v5446 = vpop.f32.mrf.mxu0
    %v5447 = vadd.f32 %v5434, %v5446
    %v5448 = vpop.f32.mrf.mxu0
    %5449 = vdwg.mxu0
    %v5450 = vmax.f32 %v5447, 0.0
    %v5451 = vld [vmem:[%s3] sm:$0xff]
    %v5452 = vld [vmem:[%s3 + $0x8] sm:$0xff]
    %v5453 = vld [vmem:[%s3 + $0x10] sm:$0xff]
    %v5454 = vld [vmem:[%s3 + $0x18] sm:$0xff]
    %v5455 = vld [vmem:[#allocation8] sm:$0x1]
    %v5457 = vperm.slane %v5455, 0
    %vm5459 = vcmask 261120
    %v5461 = vsel %vm5459, %v5450, 0
    %5463 = vmatpush.msra.mxu0 0.0
    %5464 = vmatpush.msra.mxu0 0.0
    %5465 = vmatpush.msra.mxu0 0.0
    %5466 = vmatpush.msra.mxu0 0.0
    %5467 = vmatpush.msra.mxu0 0.0
    %5468 = vmatpush.msra.mxu0 0.0
    %5469 = vmatpush.msra.mxu0 0.0
    %5470 = vmatpush.msra.mxu0 0.0
    %5471 = vmatpush.msra.mxu0 0.0
    %5472 = vmatpush.msra.mxu0 0.0
    %5473 = vmatpush.msra.mxu0 0.0
    %5474 = vmatpush.msra.mxu0 0.0
    %5475 = vmatpush.msra.mxu0 %v5454
    %5476 = vmatpush.msra.mxu0 %v5453
    %5477 = vmatpush.msra.mxu0 %v5452
    %5478 = vmatpush.msra.mxu0 %v5451
    %5479 = vmatmul.f32.gmra.mxu0 %v5461
    %v5480 = vpop.f32.mrf.mxu0
    %v5481 = vadd.f32 %v5457, %v5480
    %5482 = vdwg.mxu0
    %vm5483 = vcmask 58368
    %5484 = vst.msk [vmem:[#allocation10] sm:$0x3] %vm5483, %v5481
    // Predicated region
    $region38: #{tpu_custom_call.1} parent=1 // pred_check
      _
    $region39: #{tpu_custom_call.1} parent=1 // pred_check_branch
      %5486 = sbr.rel (0) target = $region41
    $region40: #{tpu_custom_call.1} parent=1 // pred_region
      %5488 = vsyncadd [#allocation4], 0
      %s5490 = sshll.u32 [#allocation10], 4
      %s5491 = int_to_ptr.vmem [resolvable:$true] %s5490
      %s5492 = sshll.u32 %s5, 4
      %s5493 = int_to_ptr.hbm [resolvable:$true] %s5492
      %5495 = dma.vmem_to_hbm [thread:$0]  %s5491, 32, %s5493, [#allocation4]
    $region41: #{tpu_custom_call.1} parent=1 // pred_fallthru
      _
    // Predicated region
    $region42: #{tpu_custom_call.1} parent=1 // pred_check
      _
    $region43: #{tpu_custom_call.1} parent=1 // pred_check_branch
      %5497 = sbr.rel (0) target = $region45
    $region44: #{tpu_custom_call.1} parent=1 // pred_region
      %5499 = dma.done [#allocation4], 32
    $region45: #{tpu_custom_call.1} parent=1 // pred_fallthru
      _
    %5500 = vsyncpa [#allocation3], 1
    %5501 = vsyncpa [#allocation6], 1
    %5502 = vsyncpa [#allocation9], 1
    %5503 = vsyncpa [#allocation4], 1

</llo_original>
